<compile_context>
chip_gen: v5e
topology: v5e:2x2
jax: 0.10.0
libtpu: 0.0.40
codegen_flags: <defaults>
</compile_context>

<pallas_src>
import functools

import jax
import jax.numpy as jnp
import numpy as np
from jax.experimental import pallas as pl
from jax.experimental.pallas import tpu as pltpu  # noqa: F401  (kept for optional CompilerParams tuning)

# ---------------- small deterministic config (mirrors Config, scaled down) -------------
D_MODEL = 64
N_HEADS = 4
D_HEAD = 16
D_MLP = 128
D_VOCAB = 128
N_CTX = 16
N_LAYERS = 2
INIT_RANGE = 0.02
LN_EPS = 1e-5
IGNORE = -1e5          # matches the module's IGNORE buffer (-100000.0)

BATCH = 2
SEQ = 8

HD = N_HEADS * D_HEAD  # 64
_SQRT_2_OVER_PI = 0.7978845608028654


# ----------------------------------- kernel helpers ------------------------------------
def _layer_norm(x, w, b):
    # mean / biased variance over d_model, exactly as the PyTorch LayerNorm module
    mean = jnp.mean(x, axis=-1, keepdims=True)
    c = x - mean
    var = jnp.mean(c * c, axis=-1, keepdims=True)
    return c * jax.lax.rsqrt(var + LN_EPS) * w + b


def _gelu_new(x):
    # GPT-2 "new" gelu (tanh approximation)
    return 0.5 * x * (1.0 + jnp.tanh(_SQRT_2_OVER_PI * (x + 0.044715 * x ** 3)))


# ------------------------------ fully fused forward kernel -----------------------------
def _fwd_kernel(batch, seq,
                resid_ref,
                ln1w_ref, ln1b_ref, wqkv_ref, bqkv_ref, wo_ref, bo_ref,
                ln2w_ref, ln2b_ref, win_ref, bin_ref, wout_ref, bout_ref,
                lnfw_ref, lnfb_ref, wu_ref, bu_ref,
                out_ref):
    x = resid_ref[...]                                  # (B*S, D) — all tokens at once

    # causal mask built once, reused for every layer / head / batch element
    q_idx = jax.lax.broadcasted_iota(jnp.int32, (seq, seq), 0)
    k_idx = jax.lax.broadcasted_iota(jnp.int32, (seq, seq), 1)
    causal = q_idx >= k_idx

    for l in range(N_LAYERS):                           # static unroll over layers
        # ---- attention ----
        ln1 = _layer_norm(x, ln1w_ref[l], ln1b_ref[l])
        # fused QKV projection: one (B*S,64)x(64,192) MXU op (1/sqrt(d_head) pre-folded)
        qkv = jnp.dot(ln1, wqkv_ref[l], preferred_element_type=jnp.float32) + bqkv_ref[l]
        q = qkv[:, 0:HD]
        k = qkv[:, HD:2 * HD]
        v = qkv[:, 2 * HD:3 * HD]

        z_rows = []
        for b in range(batch):                          # static unroll over batch
            r0 = b * seq
            qb = q[r0:r0 + seq, :]
            kb = k[r0:r0 + seq, :]
            vb = v[r0:r0 + seq, :]
            z_heads = []
            for h in range(N_HEADS):                    # static unroll over heads
                c0 = h * D_HEAD
                qh = qb[:, c0:c0 + D_HEAD]
                kh = kb[:, c0:c0 + D_HEAD]
                vh = vb[:, c0:c0 + D_HEAD]
                # q @ k^T without an explicit transpose (contract the d_head dims)
                scores = jax.lax.dot_general(
                    qh, kh, (((1,), (1,)), ((), ())),
                    preferred_element_type=jnp.float32)            # (S, S)
                scores = jnp.where(causal, scores, IGNORE)
                scores = scores - jnp.max(scores, axis=-1, keepdims=True)
                e = jnp.exp(scores)
                inv = pl.reciprocal(jnp.sum(e, axis=-1, keepdims=True), approx=True)
                probs = e * inv
                z_heads.append(jnp.dot(probs, vh, preferred_element_type=jnp.float32))
            z_rows.append(jnp.concatenate(z_heads, axis=1))         # (S, H*Dh)
        z = jnp.concatenate(z_rows, axis=0)                         # (B*S, H*Dh)

        # single output projection matmul instead of per-head accumulation
        attn_out = jnp.dot(z, wo_ref[l], preferred_element_type=jnp.float32) + bo_ref[l]
        resid_mid = x + attn_out

        # ---- MLP ----
        ln2 = _layer_norm(resid_mid, ln2w_ref[l], ln2b_ref[l])
        hidden = jnp.dot(ln2, win_ref[l], preferred_element_type=jnp.float32) + bin_ref[l]
        hidden = _gelu_new(hidden)
        mlp_out = jnp.dot(hidden, wout_ref[l], preferred_element_type=jnp.float32) + bout_ref[l]
        x = resid_mid + mlp_out

    # ---- final LayerNorm + unembed (lane-dense 128-wide output) ----
    lnf = _layer_norm(x, lnfw_ref[...], lnfb_ref[...])
    out_ref[...] = jnp.dot(lnf, wu_ref[...], preferred_element_type=jnp.float32) + bu_ref[...]


# --------------------------- repack PyTorch-style params for the kernel -----------------
def pack_params(params):
    scale = 1.0 / (float(D_HEAD) ** 0.5)

    def pack_w(W):      # (H, D, Dh) -> (D, H*Dh), column block h == W[h]
        return jnp.transpose(W, (1, 0, 2)).reshape(D_MODEL, HD)

    def pack_b(b):      # (H, Dh) -> (1, H*Dh)
        return b.reshape(1, HD)

    ln1w, ln1b, wqkv, bqkv, wo, bo = [], [], [], [], [], []
    ln2w, ln2b, win, bin_, wout, bout = [], [], [], [], [], []
    for p in params["blocks"]:
        ln1w.append(p["ln1_w"].reshape(1, D_MODEL))
        ln1b.append(p["ln1_b"].reshape(1, D_MODEL))
        wq = pack_w(p["W_Q"]) * scale                   # fold 1/sqrt(d_head) into Q
        bq = pack_b(p["b_Q"]) * scale
        wk, bk = pack_w(p["W_K"]), pack_b(p["b_K"])
        wv, bv = pack_w(p["W_V"]), pack_b(p["b_V"])
        wqkv.append(jnp.concatenate([wq, wk, wv], axis=1))          # (D, 3*H*Dh)
        bqkv.append(jnp.concatenate([bq, bk, bv], axis=1))          # (1, 3*H*Dh)
        wo.append(p["W_O"].reshape(HD, D_MODEL))                    # row block h == W_O[h]
        bo.append(p["b_O"].reshape(1, D_MODEL))
        ln2w.append(p["ln2_w"].reshape(1, D_MODEL))
        ln2b.append(p["ln2_b"].reshape(1, D_MODEL))
        win.append(p["W_in"])
        bin_.append(p["b_in"].reshape(1, D_MLP))
        wout.append(p["W_out"])
        bout.append(p["b_out"].reshape(1, D_MODEL))

    stk = lambda xs: jnp.stack(xs, axis=0)              # stack per-layer weights: (L, ...)
    return (stk(ln1w), stk(ln1b), stk(wqkv), stk(bqkv), stk(wo), stk(bo),
            stk(ln2w), stk(ln2b), stk(win), stk(bin_), stk(wout), stk(bout),
            params["ln_f_w"].reshape(1, D_MODEL), params["ln_f_b"].reshape(1, D_MODEL),
            params["W_U"], params["b_U"].reshape(1, D_VOCAB))


# ------------------------------------- wrapper -------------------------------------------
def demo_transformer_forward(tokens, params):
    B, S = tokens.shape
    # Embed + PosEmbed (gather + broadcast) — plain-JAX glue.
    resid = params["W_E"][tokens] + params["W_pos"][:S][None, :, :]
    resid_flat = resid.reshape(B * S, D_MODEL)
    packed = pack_params(params)
    kernel = functools.partial(_fwd_kernel, B, S)
    logits_flat = pl.pallas_call(
        kernel,
        out_shape=jax.ShapeDtypeStruct((B * S, D_VOCAB), jnp.float32),
    )(resid_flat, *packed)
    return logits_flat.reshape(B, S, D_VOCAB)


# ------------------------------- deterministic parameter init ---------------------------
def init_params(key):
    def normal(k, shape):
        return (jax.random.normal(k, shape, jnp.float32) * INIT_RANGE).astype(jnp.float32)

    keys = jax.random.split(key, 3 + 6 * N_LAYERS)
    ki = iter(range(len(keys)))

    params = {
        "W_E": normal(keys[next(ki)], (D_VOCAB, D_MODEL)),
        "W_pos": normal(keys[next(ki)], (N_CTX, D_MODEL)),
        "W_U": normal(keys[next(ki)], (D_MODEL, D_VOCAB)),
        "b_U": jnp.zeros((D_VOCAB,), jnp.float32),
        "ln_f_w": jnp.ones((D_MODEL,), jnp.float32),
        "ln_f_b": jnp.zeros((D_MODEL,), jnp.float32),
        "blocks": [],
    }

    for _ in range(N_LAYERS):
        blk = {
            "ln1_w": jnp.ones((D_MODEL,), jnp.float32),
            "ln1_b": jnp.zeros((D_MODEL,), jnp.float32),
            "W_Q": normal(keys[next(ki)], (N_HEADS, D_MODEL, D_HEAD)),
            "W_K": normal(keys[next(ki)], (N_HEADS, D_MODEL, D_HEAD)),
            "W_V": normal(keys[next(ki)], (N_HEADS, D_MODEL, D_HEAD)),
            "W_O": normal(keys[next(ki)], (N_HEADS, D_HEAD, D_MODEL)),
            "b_Q": jnp.zeros((N_HEADS, D_HEAD), jnp.float32),
            "b_K": jnp.zeros((N_HEADS, D_HEAD), jnp.float32),
            "b_V": jnp.zeros((N_HEADS, D_HEAD), jnp.float32),
            "b_O": jnp.zeros((D_MODEL,), jnp.float32),
            "ln2_w": jnp.ones((D_MODEL,), jnp.float32),
            "ln2_b": jnp.zeros((D_MODEL,), jnp.float32),
            "W_in": normal(keys[next(ki)], (D_MODEL, D_MLP)),
            "W_out": normal(keys[next(ki)], (D_MLP, D_MODEL)),
            "b_in": jnp.zeros((D_MLP,), jnp.float32),
            "b_out": jnp.zeros((D_MODEL,), jnp.float32),
        }
        params["blocks"].append(blk)
    return params


# ----------------------------------- pure-JAX reference ---------------------------------
def ref_forward(tokens, params):
    # Mirrors the PyTorch module math exactly (raw per-head parameterization).
    def ln(x, w, b):
        m = jnp.mean(x, axis=-1, keepdims=True)
        v = jnp.mean((x - m) ** 2, axis=-1, keepdims=True)
        return (x - m) / jnp.sqrt(v + LN_EPS) * w + b

    B, S = tokens.shape
    x = params["W_E"][tokens] + params["W_pos"][:S][None, :, :]
    causal = jnp.arange(S)[:, None] >= jnp.arange(S)[None, :]
    for p in params["blocks"]:
        n1 = ln(x, p["ln1_w"], p["ln1_b"])
        q = jnp.einsum("bpd,hde->bphe", n1, p["W_Q"]) + p["b_Q"]
        k = jnp.einsum("bpd,hde->bphe", n1, p["W_K"]) + p["b_K"]
        v = jnp.einsum("bpd,hde->bphe", n1, p["W_V"]) + p["b_V"]
        scores = jnp.einsum("bqhe,bkhe->bhqk", q, k) / (D_HEAD ** 0.5)
        scores = jnp.where(causal[None, None], scores, IGNORE)
        probs = jax.nn.softmax(scores, axis=-1)
        z = jnp.einsum("bhqk,bkhe->bqhe", probs, v)
        attn_out = jnp.einsum("bqhe,hed->bqd", z, p["W_O"]) + p["b_O"]
        resid_mid = x + attn_out
        n2 = ln(resid_mid, p["ln2_w"], p["ln2_b"])
        h = n2 @ p["W_in"] + p["b_in"]
        h = 0.5 * h * (1.0 + jnp.tanh(_SQRT_2_OVER_PI * (h + 0.044715 * h ** 3)))
        x = resid_mid + (h @ p["W_out"] + p["b_out"])
    nf = ln(x, params["ln_f_w"], params["ln_f_b"])
    return nf @ params["W_U"] + params["b_U"]


# --------------------------------------- main --------------------------------------------
if __name__ == "__main__":
    key = jax.random.PRNGKey(0)
    k_params, k_tokens = jax.random.split(key)
    params = init_params(k_params)
    tokens = jax.random.randint(k_tokens, (BATCH, SEQ), 0, D_VOCAB, dtype=jnp.int32)

    logits = demo_transformer_forward(tokens, params)
    logits = jax.block_until_ready(logits)

    assert logits.shape == (BATCH, SEQ, D_VOCAB)
    ref = jax.block_until_ready(ref_forward(tokens, params))
    np.testing.assert_allclose(np.asarray(logits), np.asarray(ref), atol=2e-3, rtol=2e-3)

    print("KERNEL_OK")
</pallas_src>

<mosaic_0001>
module attributes {stable_mosaic.version = 11 : i64} {
  func.func @_fwd_kernel(%arg0: memref<16x64xf32, #tpu.memory_space<vmem>>, %arg1: memref<2x1x64xf32, #tpu.memory_space<vmem>>, %arg2: memref<2x1x64xf32, #tpu.memory_space<vmem>>, %arg3: memref<2x64x192xf32, #tpu.memory_space<vmem>>, %arg4: memref<2x1x192xf32, #tpu.memory_space<vmem>>, %arg5: memref<2x64x64xf32, #tpu.memory_space<vmem>>, %arg6: memref<2x1x64xf32, #tpu.memory_space<vmem>>, %arg7: memref<2x1x64xf32, #tpu.memory_space<vmem>>, %arg8: memref<2x1x64xf32, #tpu.memory_space<vmem>>, %arg9: memref<2x64x128xf32, #tpu.memory_space<vmem>>, %arg10: memref<2x1x128xf32, #tpu.memory_space<vmem>>, %arg11: memref<2x128x64xf32, #tpu.memory_space<vmem>>, %arg12: memref<2x1x64xf32, #tpu.memory_space<vmem>>, %arg13: memref<1x64xf32, #tpu.memory_space<vmem>>, %arg14: memref<1x64xf32, #tpu.memory_space<vmem>>, %arg15: memref<64x128xf32, #tpu.memory_space<vmem>>, %arg16: memref<1x128xf32, #tpu.memory_space<vmem>>, %arg17: memref<16x128xf32, #tpu.memory_space<vmem>>) attributes {dimension_semantics = [], scalar_prefetch = 0 : i64, scratch_operands = 0 : i64, tpu.core_type = #tpu.core_type<tc>} {
    %c0 = arith.constant 0 : index
    %c0_0 = arith.constant 0 : index
    %0 = vector.load %arg0[%c0, %c0_0] : memref<16x64xf32, #tpu.memory_space<vmem>>, vector<16x64xf32>
    %1 = tpu.iota {dimensions = array<i32: 0>} : vector<8x8xi32>
    %2 = tpu.iota {dimensions = array<i32: 1>} : vector<8x8xi32>
    %3 = arith.cmpi sge, %1, %2 : vector<8x8xi32>
    %c0_1 = arith.constant 0 : index
    %c0_2 = arith.constant 0 : index
    %c0_3 = arith.constant 0 : index
    %4 = vector.load %arg1[%c0_1, %c0_2, %c0_3] : memref<2x1x64xf32, #tpu.memory_space<vmem>>, vector<1x1x64xf32>
    %5 = vector.shape_cast %4 : vector<1x1x64xf32> to vector<1x64xf32>
    %c0_4 = arith.constant 0 : index
    %c0_5 = arith.constant 0 : index
    %c0_6 = arith.constant 0 : index
    %6 = vector.load %arg2[%c0_4, %c0_5, %c0_6] : memref<2x1x64xf32, #tpu.memory_space<vmem>>, vector<1x1x64xf32>
    %7 = vector.shape_cast %6 : vector<1x1x64xf32> to vector<1x64xf32>
    %cst = arith.constant dense<0.000000e+00> : vector<16xf32>
    %8 = vector.multi_reduction <add>, %0, %cst [1] : vector<16x64xf32> to vector<16xf32>
    %9 = vector.shape_cast %8 : vector<16xf32> to vector<16x1xf32>
    %cst_7 = arith.constant 6.400000e+01 : f32
    %10 = vector.broadcast %cst_7 : f32 to vector<16x1xf32>
    %11 = arith.divf %9, %10 : vector<16x1xf32>
    %12 = vector.broadcast %11 : vector<16x1xf32> to vector<16x64xf32>
    %13 = arith.subf %0, %12 : vector<16x64xf32>
    %14 = arith.mulf %13, %13 : vector<16x64xf32>
    %cst_8 = arith.constant dense<0.000000e+00> : vector<16xf32>
    %15 = vector.multi_reduction <add>, %14, %cst_8 [1] : vector<16x64xf32> to vector<16xf32>
    %16 = vector.shape_cast %15 : vector<16xf32> to vector<16x1xf32>
    %cst_9 = arith.constant 6.400000e+01 : f32
    %17 = vector.broadcast %cst_9 : f32 to vector<16x1xf32>
    %18 = arith.divf %16, %17 : vector<16x1xf32>
    %cst_10 = arith.constant 9.99999974E-6 : f32
    %19 = vector.broadcast %cst_10 : f32 to vector<16x1xf32>
    %20 = arith.addf %18, %19 : vector<16x1xf32>
    %21 = math.rsqrt %20 : vector<16x1xf32>
    %22 = vector.broadcast %21 : vector<16x1xf32> to vector<16x64xf32>
    %23 = arith.mulf %13, %22 : vector<16x64xf32>
    %24 = vector.broadcast %5 : vector<1x64xf32> to vector<16x64xf32>
    %25 = arith.mulf %23, %24 : vector<16x64xf32>
    %26 = vector.broadcast %7 : vector<1x64xf32> to vector<16x64xf32>
    %27 = arith.addf %25, %26 : vector<16x64xf32>
    %c0_11 = arith.constant 0 : index
    %c0_12 = arith.constant 0 : index
    %c0_13 = arith.constant 0 : index
    %28 = vector.load %arg3[%c0_11, %c0_12, %c0_13] : memref<2x64x192xf32, #tpu.memory_space<vmem>>, vector<1x64x192xf32>
    %29 = vector.shape_cast %28 : vector<1x64x192xf32> to vector<64x192xf32>
    %cst_14 = arith.constant dense<0.000000e+00> : vector<16x192xf32>
    %30 = tpu.matmul %27, %29, %cst_14 {dimension_numbers = #tpu.dot_dimension_numbers<[1], [0], [0], [1], [0, 0, 1, 1], [], []>} : vector<16x64xf32>, vector<64x192xf32>, vector<16x192xf32> -> vector<16x192xf32>
    %c0_15 = arith.constant 0 : index
    %c0_16 = arith.constant 0 : index
    %c0_17 = arith.constant 0 : index
    %31 = vector.load %arg4[%c0_15, %c0_16, %c0_17] : memref<2x1x192xf32, #tpu.memory_space<vmem>>, vector<1x1x192xf32>
    %32 = vector.shape_cast %31 : vector<1x1x192xf32> to vector<1x192xf32>
    %33 = vector.broadcast %32 : vector<1x192xf32> to vector<16x192xf32>
    %34 = arith.addf %30, %33 : vector<16x192xf32>
    %35 = vector.extract_strided_slice %34 {offsets = [0, 0], sizes = [16, 64], strides = [1, 1]} : vector<16x192xf32> to vector<16x64xf32>
    %36 = vector.extract_strided_slice %34 {offsets = [0, 64], sizes = [16, 64], strides = [1, 1]} : vector<16x192xf32> to vector<16x64xf32>
    %37 = vector.extract_strided_slice %34 {offsets = [0, 128], sizes = [16, 64], strides = [1, 1]} : vector<16x192xf32> to vector<16x64xf32>
    %38 = vector.extract_strided_slice %35 {offsets = [0, 0], sizes = [8, 64], strides = [1, 1]} : vector<16x64xf32> to vector<8x64xf32>
    %39 = vector.extract_strided_slice %36 {offsets = [0, 0], sizes = [8, 64], strides = [1, 1]} : vector<16x64xf32> to vector<8x64xf32>
    %40 = vector.extract_strided_slice %37 {offsets = [0, 0], sizes = [8, 64], strides = [1, 1]} : vector<16x64xf32> to vector<8x64xf32>
    %41 = vector.extract_strided_slice %38 {offsets = [0, 0], sizes = [8, 16], strides = [1, 1]} : vector<8x64xf32> to vector<8x16xf32>
    %42 = vector.extract_strided_slice %39 {offsets = [0, 0], sizes = [8, 16], strides = [1, 1]} : vector<8x64xf32> to vector<8x16xf32>
    %43 = vector.extract_strided_slice %40 {offsets = [0, 0], sizes = [8, 16], strides = [1, 1]} : vector<8x64xf32> to vector<8x16xf32>
    %cst_18 = arith.constant dense<0.000000e+00> : vector<8x8xf32>
    %44 = tpu.matmul %41, %42, %cst_18 {dimension_numbers = #tpu.dot_dimension_numbers<[1], [1], [0], [0], [0, 0, 1, 0], [], []>} : vector<8x16xf32>, vector<8x16xf32>, vector<8x8xf32> -> vector<8x8xf32>
    %cst_19 = arith.constant -1.000000e+05 : f32
    %45 = vector.broadcast %cst_19 : f32 to vector<8x8xf32>
    %46 = arith.select %3, %44, %45 : vector<8x8xi1>, vector<8x8xf32>
    %cst_20 = arith.constant dense<0xFF800000> : vector<8xf32>
    %47 = vector.multi_reduction <maximumf>, %46, %cst_20 [1] : vector<8x8xf32> to vector<8xf32>
    %48 = vector.shape_cast %47 : vector<8xf32> to vector<8x1xf32>
    %49 = vector.broadcast %48 : vector<8x1xf32> to vector<8x8xf32>
    %50 = arith.subf %46, %49 : vector<8x8xf32>
    %51 = math.exp %50 : vector<8x8xf32>
    %cst_21 = arith.constant dense<0.000000e+00> : vector<8xf32>
    %52 = vector.multi_reduction <add>, %51, %cst_21 [1] : vector<8x8xf32> to vector<8xf32>
    %53 = vector.shape_cast %52 : vector<8xf32> to vector<8x1xf32>
    %54 = tpu.reciprocal %53 {approx = true} : vector<8x1xf32> -> vector<8x1xf32>
    %55 = vector.broadcast %54 : vector<8x1xf32> to vector<8x8xf32>
    %56 = arith.mulf %51, %55 : vector<8x8xf32>
    %cst_22 = arith.constant dense<0.000000e+00> : vector<8x16xf32>
    %57 = tpu.matmul %56, %43, %cst_22 {dimension_numbers = #tpu.dot_dimension_numbers<[1], [0], [0], [1], [0, 0, 1, 1], [], []>} : vector<8x8xf32>, vector<8x16xf32>, vector<8x16xf32> -> vector<8x16xf32>
    %58 = vector.extract_strided_slice %38 {offsets = [0, 16], sizes = [8, 16], strides = [1, 1]} : vector<8x64xf32> to vector<8x16xf32>
    %59 = vector.extract_strided_slice %39 {offsets = [0, 16], sizes = [8, 16], strides = [1, 1]} : vector<8x64xf32> to vector<8x16xf32>
    %60 = vector.extract_strided_slice %40 {offsets = [0, 16], sizes = [8, 16], strides = [1, 1]} : vector<8x64xf32> to vector<8x16xf32>
    %cst_23 = arith.constant dense<0.000000e+00> : vector<8x8xf32>
    %61 = tpu.matmul %58, %59, %cst_23 {dimension_numbers = #tpu.dot_dimension_numbers<[1], [1], [0], [0], [0, 0, 1, 0], [], []>} : vector<8x16xf32>, vector<8x16xf32>, vector<8x8xf32> -> vector<8x8xf32>
    %cst_24 = arith.constant -1.000000e+05 : f32
    %62 = vector.broadcast %cst_24 : f32 to vector<8x8xf32>
    %63 = arith.select %3, %61, %62 : vector<8x8xi1>, vector<8x8xf32>
    %cst_25 = arith.constant dense<0xFF800000> : vector<8xf32>
    %64 = vector.multi_reduction <maximumf>, %63, %cst_25 [1] : vector<8x8xf32> to vector<8xf32>
    %65 = vector.shape_cast %64 : vector<8xf32> to vector<8x1xf32>
    %66 = vector.broadcast %65 : vector<8x1xf32> to vector<8x8xf32>
    %67 = arith.subf %63, %66 : vector<8x8xf32>
    %68 = math.exp %67 : vector<8x8xf32>
    %cst_26 = arith.constant dense<0.000000e+00> : vector<8xf32>
    %69 = vector.multi_reduction <add>, %68, %cst_26 [1] : vector<8x8xf32> to vector<8xf32>
    %70 = vector.shape_cast %69 : vector<8xf32> to vector<8x1xf32>
    %71 = tpu.reciprocal %70 {approx = true} : vector<8x1xf32> -> vector<8x1xf32>
    %72 = vector.broadcast %71 : vector<8x1xf32> to vector<8x8xf32>
    %73 = arith.mulf %68, %72 : vector<8x8xf32>
    %cst_27 = arith.constant dense<0.000000e+00> : vector<8x16xf32>
    %74 = tpu.matmul %73, %60, %cst_27 {dimension_numbers = #tpu.dot_dimension_numbers<[1], [0], [0], [1], [0, 0, 1, 1], [], []>} : vector<8x8xf32>, vector<8x16xf32>, vector<8x16xf32> -> vector<8x16xf32>
    %75 = vector.extract_strided_slice %38 {offsets = [0, 32], sizes = [8, 16], strides = [1, 1]} : vector<8x64xf32> to vector<8x16xf32>
    %76 = vector.extract_strided_slice %39 {offsets = [0, 32], sizes = [8, 16], strides = [1, 1]} : vector<8x64xf32> to vector<8x16xf32>
    %77 = vector.extract_strided_slice %40 {offsets = [0, 32], sizes = [8, 16], strides = [1, 1]} : vector<8x64xf32> to vector<8x16xf32>
    %cst_28 = arith.constant dense<0.000000e+00> : vector<8x8xf32>
    %78 = tpu.matmul %75, %76, %cst_28 {dimension_numbers = #tpu.dot_dimension_numbers<[1], [1], [0], [0], [0, 0, 1, 0], [], []>} : vector<8x16xf32>, vector<8x16xf32>, vector<8x8xf32> -> vector<8x8xf32>
    %cst_29 = arith.constant -1.000000e+05 : f32
    %79 = vector.broadcast %cst_29 : f32 to vector<8x8xf32>
    %80 = arith.select %3, %78, %79 : vector<8x8xi1>, vector<8x8xf32>
    %cst_30 = arith.constant dense<0xFF800000> : vector<8xf32>
    %81 = vector.multi_reduction <maximumf>, %80, %cst_30 [1] : vector<8x8xf32> to vector<8xf32>
    %82 = vector.shape_cast %81 : vector<8xf32> to vector<8x1xf32>
    %83 = vector.broadcast %82 : vector<8x1xf32> to vector<8x8xf32>
    %84 = arith.subf %80, %83 : vector<8x8xf32>
    %85 = math.exp %84 : vector<8x8xf32>
    %cst_31 = arith.constant dense<0.000000e+00> : vector<8xf32>
    %86 = vector.multi_reduction <add>, %85, %cst_31 [1] : vector<8x8xf32> to vector<8xf32>
    %87 = vector.shape_cast %86 : vector<8xf32> to vector<8x1xf32>
    %88 = tpu.reciprocal %87 {approx = true} : vector<8x1xf32> -> vector<8x1xf32>
    %89 = vector.broadcast %88 : vector<8x1xf32> to vector<8x8xf32>
    %90 = arith.mulf %85, %89 : vector<8x8xf32>
    %cst_32 = arith.constant dense<0.000000e+00> : vector<8x16xf32>
    %91 = tpu.matmul %90, %77, %cst_32 {dimension_numbers = #tpu.dot_dimension_numbers<[1], [0], [0], [1], [0, 0, 1, 1], [], []>} : vector<8x8xf32>, vector<8x16xf32>, vector<8x16xf32> -> vector<8x16xf32>
    %92 = vector.extract_strided_slice %38 {offsets = [0, 48], sizes = [8, 16], strides = [1, 1]} : vector<8x64xf32> to vector<8x16xf32>
    %93 = vector.extract_strided_slice %39 {offsets = [0, 48], sizes = [8, 16], strides = [1, 1]} : vector<8x64xf32> to vector<8x16xf32>
    %94 = vector.extract_strided_slice %40 {offsets = [0, 48], sizes = [8, 16], strides = [1, 1]} : vector<8x64xf32> to vector<8x16xf32>
    %cst_33 = arith.constant dense<0.000000e+00> : vector<8x8xf32>
    %95 = tpu.matmul %92, %93, %cst_33 {dimension_numbers = #tpu.dot_dimension_numbers<[1], [1], [0], [0], [0, 0, 1, 0], [], []>} : vector<8x16xf32>, vector<8x16xf32>, vector<8x8xf32> -> vector<8x8xf32>
    %cst_34 = arith.constant -1.000000e+05 : f32
    %96 = vector.broadcast %cst_34 : f32 to vector<8x8xf32>
    %97 = arith.select %3, %95, %96 : vector<8x8xi1>, vector<8x8xf32>
    %cst_35 = arith.constant dense<0xFF800000> : vector<8xf32>
    %98 = vector.multi_reduction <maximumf>, %97, %cst_35 [1] : vector<8x8xf32> to vector<8xf32>
    %99 = vector.shape_cast %98 : vector<8xf32> to vector<8x1xf32>
    %100 = vector.broadcast %99 : vector<8x1xf32> to vector<8x8xf32>
    %101 = arith.subf %97, %100 : vector<8x8xf32>
    %102 = math.exp %101 : vector<8x8xf32>
    %cst_36 = arith.constant dense<0.000000e+00> : vector<8xf32>
    %103 = vector.multi_reduction <add>, %102, %cst_36 [1] : vector<8x8xf32> to vector<8xf32>
    %104 = vector.shape_cast %103 : vector<8xf32> to vector<8x1xf32>
    %105 = tpu.reciprocal %104 {approx = true} : vector<8x1xf32> -> vector<8x1xf32>
    %106 = vector.broadcast %105 : vector<8x1xf32> to vector<8x8xf32>
    %107 = arith.mulf %102, %106 : vector<8x8xf32>
    %cst_37 = arith.constant dense<0.000000e+00> : vector<8x16xf32>
    %108 = tpu.matmul %107, %94, %cst_37 {dimension_numbers = #tpu.dot_dimension_numbers<[1], [0], [0], [1], [0, 0, 1, 1], [], []>} : vector<8x8xf32>, vector<8x16xf32>, vector<8x16xf32> -> vector<8x16xf32>
    %109 = tpu.concatenate %57, %74, %91, %108 in 1 : vector<8x16xf32>, vector<8x16xf32>, vector<8x16xf32>, vector<8x16xf32> -> vector<8x64xf32>
    %110 = vector.extract_strided_slice %35 {offsets = [8, 0], sizes = [8, 64], strides = [1, 1]} : vector<16x64xf32> to vector<8x64xf32>
    %111 = vector.extract_strided_slice %36 {offsets = [8, 0], sizes = [8, 64], strides = [1, 1]} : vector<16x64xf32> to vector<8x64xf32>
    %112 = vector.extract_strided_slice %37 {offsets = [8, 0], sizes = [8, 64], strides = [1, 1]} : vector<16x64xf32> to vector<8x64xf32>
    %113 = vector.extract_strided_slice %110 {offsets = [0, 0], sizes = [8, 16], strides = [1, 1]} : vector<8x64xf32> to vector<8x16xf32>
    %114 = vector.extract_strided_slice %111 {offsets = [0, 0], sizes = [8, 16], strides = [1, 1]} : vector<8x64xf32> to vector<8x16xf32>
    %115 = vector.extract_strided_slice %112 {offsets = [0, 0], sizes = [8, 16], strides = [1, 1]} : vector<8x64xf32> to vector<8x16xf32>
    %cst_38 = arith.constant dense<0.000000e+00> : vector<8x8xf32>
    %116 = tpu.matmul %113, %114, %cst_38 {dimension_numbers = #tpu.dot_dimension_numbers<[1], [1], [0], [0], [0, 0, 1, 0], [], []>} : vector<8x16xf32>, vector<8x16xf32>, vector<8x8xf32> -> vector<8x8xf32>
    %cst_39 = arith.constant -1.000000e+05 : f32
    %117 = vector.broadcast %cst_39 : f32 to vector<8x8xf32>
    %118 = arith.select %3, %116, %117 : vector<8x8xi1>, vector<8x8xf32>
    %cst_40 = arith.constant dense<0xFF800000> : vector<8xf32>
    %119 = vector.multi_reduction <maximumf>, %118, %cst_40 [1] : vector<8x8xf32> to vector<8xf32>
    %120 = vector.shape_cast %119 : vector<8xf32> to vector<8x1xf32>
    %121 = vector.broadcast %120 : vector<8x1xf32> to vector<8x8xf32>
    %122 = arith.subf %118, %121 : vector<8x8xf32>
    %123 = math.exp %122 : vector<8x8xf32>
    %cst_41 = arith.constant dense<0.000000e+00> : vector<8xf32>
    %124 = vector.multi_reduction <add>, %123, %cst_41 [1] : vector<8x8xf32> to vector<8xf32>
    %125 = vector.shape_cast %124 : vector<8xf32> to vector<8x1xf32>
    %126 = tpu.reciprocal %125 {approx = true} : vector<8x1xf32> -> vector<8x1xf32>
    %127 = vector.broadcast %126 : vector<8x1xf32> to vector<8x8xf32>
    %128 = arith.mulf %123, %127 : vector<8x8xf32>
    %cst_42 = arith.constant dense<0.000000e+00> : vector<8x16xf32>
    %129 = tpu.matmul %128, %115, %cst_42 {dimension_numbers = #tpu.dot_dimension_numbers<[1], [0], [0], [1], [0, 0, 1, 1], [], []>} : vector<8x8xf32>, vector<8x16xf32>, vector<8x16xf32> -> vector<8x16xf32>
    %130 = vector.extract_strided_slice %110 {offsets = [0, 16], sizes = [8, 16], strides = [1, 1]} : vector<8x64xf32> to vector<8x16xf32>
    %131 = vector.extract_strided_slice %111 {offsets = [0, 16], sizes = [8, 16], strides = [1, 1]} : vector<8x64xf32> to vector<8x16xf32>
    %132 = vector.extract_strided_slice %112 {offsets = [0, 16], sizes = [8, 16], strides = [1, 1]} : vector<8x64xf32> to vector<8x16xf32>
    %cst_43 = arith.constant dense<0.000000e+00> : vector<8x8xf32>
    %133 = tpu.matmul %130, %131, %cst_43 {dimension_numbers = #tpu.dot_dimension_numbers<[1], [1], [0], [0], [0, 0, 1, 0], [], []>} : vector<8x16xf32>, vector<8x16xf32>, vector<8x8xf32> -> vector<8x8xf32>
    %cst_44 = arith.constant -1.000000e+05 : f32
    %134 = vector.broadcast %cst_44 : f32 to vector<8x8xf32>
    %135 = arith.select %3, %133, %134 : vector<8x8xi1>, vector<8x8xf32>
    %cst_45 = arith.constant dense<0xFF800000> : vector<8xf32>
    %136 = vector.multi_reduction <maximumf>, %135, %cst_45 [1] : vector<8x8xf32> to vector<8xf32>
    %137 = vector.shape_cast %136 : vector<8xf32> to vector<8x1xf32>
    %138 = vector.broadcast %137 : vector<8x1xf32> to vector<8x8xf32>
    %139 = arith.subf %135, %138 : vector<8x8xf32>
    %140 = math.exp %139 : vector<8x8xf32>
    %cst_46 = arith.constant dense<0.000000e+00> : vector<8xf32>
    %141 = vector.multi_reduction <add>, %140, %cst_46 [1] : vector<8x8xf32> to vector<8xf32>
    %142 = vector.shape_cast %141 : vector<8xf32> to vector<8x1xf32>
    %143 = tpu.reciprocal %142 {approx = true} : vector<8x1xf32> -> vector<8x1xf32>
    %144 = vector.broadcast %143 : vector<8x1xf32> to vector<8x8xf32>
    %145 = arith.mulf %140, %144 : vector<8x8xf32>
    %cst_47 = arith.constant dense<0.000000e+00> : vector<8x16xf32>
    %146 = tpu.matmul %145, %132, %cst_47 {dimension_numbers = #tpu.dot_dimension_numbers<[1], [0], [0], [1], [0, 0, 1, 1], [], []>} : vector<8x8xf32>, vector<8x16xf32>, vector<8x16xf32> -> vector<8x16xf32>
    %147 = vector.extract_strided_slice %110 {offsets = [0, 32], sizes = [8, 16], strides = [1, 1]} : vector<8x64xf32> to vector<8x16xf32>
    %148 = vector.extract_strided_slice %111 {offsets = [0, 32], sizes = [8, 16], strides = [1, 1]} : vector<8x64xf32> to vector<8x16xf32>
    %149 = vector.extract_strided_slice %112 {offsets = [0, 32], sizes = [8, 16], strides = [1, 1]} : vector<8x64xf32> to vector<8x16xf32>
    %cst_48 = arith.constant dense<0.000000e+00> : vector<8x8xf32>
    %150 = tpu.matmul %147, %148, %cst_48 {dimension_numbers = #tpu.dot_dimension_numbers<[1], [1], [0], [0], [0, 0, 1, 0], [], []>} : vector<8x16xf32>, vector<8x16xf32>, vector<8x8xf32> -> vector<8x8xf32>
    %cst_49 = arith.constant -1.000000e+05 : f32
    %151 = vector.broadcast %cst_49 : f32 to vector<8x8xf32>
    %152 = arith.select %3, %150, %151 : vector<8x8xi1>, vector<8x8xf32>
    %cst_50 = arith.constant dense<0xFF800000> : vector<8xf32>
    %153 = vector.multi_reduction <maximumf>, %152, %cst_50 [1] : vector<8x8xf32> to vector<8xf32>
    %154 = vector.shape_cast %153 : vector<8xf32> to vector<8x1xf32>
    %155 = vector.broadcast %154 : vector<8x1xf32> to vector<8x8xf32>
    %156 = arith.subf %152, %155 : vector<8x8xf32>
    %157 = math.exp %156 : vector<8x8xf32>
    %cst_51 = arith.constant dense<0.000000e+00> : vector<8xf32>
    %158 = vector.multi_reduction <add>, %157, %cst_51 [1] : vector<8x8xf32> to vector<8xf32>
    %159 = vector.shape_cast %158 : vector<8xf32> to vector<8x1xf32>
    %160 = tpu.reciprocal %159 {approx = true} : vector<8x1xf32> -> vector<8x1xf32>
    %161 = vector.broadcast %160 : vector<8x1xf32> to vector<8x8xf32>
    %162 = arith.mulf %157, %161 : vector<8x8xf32>
    %cst_52 = arith.constant dense<0.000000e+00> : vector<8x16xf32>
    %163 = tpu.matmul %162, %149, %cst_52 {dimension_numbers = #tpu.dot_dimension_numbers<[1], [0], [0], [1], [0, 0, 1, 1], [], []>} : vector<8x8xf32>, vector<8x16xf32>, vector<8x16xf32> -> vector<8x16xf32>
    %164 = vector.extract_strided_slice %110 {offsets = [0, 48], sizes = [8, 16], strides = [1, 1]} : vector<8x64xf32> to vector<8x16xf32>
    %165 = vector.extract_strided_slice %111 {offsets = [0, 48], sizes = [8, 16], strides = [1, 1]} : vector<8x64xf32> to vector<8x16xf32>
    %166 = vector.extract_strided_slice %112 {offsets = [0, 48], sizes = [8, 16], strides = [1, 1]} : vector<8x64xf32> to vector<8x16xf32>
    %cst_53 = arith.constant dense<0.000000e+00> : vector<8x8xf32>
    %167 = tpu.matmul %164, %165, %cst_53 {dimension_numbers = #tpu.dot_dimension_numbers<[1], [1], [0], [0], [0, 0, 1, 0], [], []>} : vector<8x16xf32>, vector<8x16xf32>, vector<8x8xf32> -> vector<8x8xf32>
    %cst_54 = arith.constant -1.000000e+05 : f32
    %168 = vector.broadcast %cst_54 : f32 to vector<8x8xf32>
    %169 = arith.select %3, %167, %168 : vector<8x8xi1>, vector<8x8xf32>
    %cst_55 = arith.constant dense<0xFF800000> : vector<8xf32>
    %170 = vector.multi_reduction <maximumf>, %169, %cst_55 [1] : vector<8x8xf32> to vector<8xf32>
    %171 = vector.shape_cast %170 : vector<8xf32> to vector<8x1xf32>
    %172 = vector.broadcast %171 : vector<8x1xf32> to vector<8x8xf32>
    %173 = arith.subf %169, %172 : vector<8x8xf32>
    %174 = math.exp %173 : vector<8x8xf32>
    %cst_56 = arith.constant dense<0.000000e+00> : vector<8xf32>
    %175 = vector.multi_reduction <add>, %174, %cst_56 [1] : vector<8x8xf32> to vector<8xf32>
    %176 = vector.shape_cast %175 : vector<8xf32> to vector<8x1xf32>
    %177 = tpu.reciprocal %176 {approx = true} : vector<8x1xf32> -> vector<8x1xf32>
    %178 = vector.broadcast %177 : vector<8x1xf32> to vector<8x8xf32>
    %179 = arith.mulf %174, %178 : vector<8x8xf32>
    %cst_57 = arith.constant dense<0.000000e+00> : vector<8x16xf32>
    %180 = tpu.matmul %179, %166, %cst_57 {dimension_numbers = #tpu.dot_dimension_numbers<[1], [0], [0], [1], [0, 0, 1, 1], [], []>} : vector<8x8xf32>, vector<8x16xf32>, vector<8x16xf32> -> vector<8x16xf32>
    %181 = tpu.concatenate %129, %146, %163, %180 in 1 : vector<8x16xf32>, vector<8x16xf32>, vector<8x16xf32>, vector<8x16xf32> -> vector<8x64xf32>
    %182 = tpu.concatenate %109, %181 in 0 : vector<8x64xf32>, vector<8x64xf32> -> vector<16x64xf32>
    %c0_58 = arith.constant 0 : index
    %c0_59 = arith.constant 0 : index
    %c0_60 = arith.constant 0 : index
    %183 = vector.load %arg5[%c0_58, %c0_59, %c0_60] : memref<2x64x64xf32, #tpu.memory_space<vmem>>, vector<1x64x64xf32>
    %184 = vector.shape_cast %183 : vector<1x64x64xf32> to vector<64x64xf32>
    %cst_61 = arith.constant dense<0.000000e+00> : vector<16x64xf32>
    %185 = tpu.matmul %182, %184, %cst_61 {dimension_numbers = #tpu.dot_dimension_numbers<[1], [0], [0], [1], [0, 0, 1, 1], [], []>} : vector<16x64xf32>, vector<64x64xf32>, vector<16x64xf32> -> vector<16x64xf32>
    %c0_62 = arith.constant 0 : index
    %c0_63 = arith.constant 0 : index
    %c0_64 = arith.constant 0 : index
    %186 = vector.load %arg6[%c0_62, %c0_63, %c0_64] : memref<2x1x64xf32, #tpu.memory_space<vmem>>, vector<1x1x64xf32>
    %187 = vector.shape_cast %186 : vector<1x1x64xf32> to vector<1x64xf32>
    %188 = vector.broadcast %187 : vector<1x64xf32> to vector<16x64xf32>
    %189 = arith.addf %185, %188 : vector<16x64xf32>
    %190 = arith.addf %0, %189 : vector<16x64xf32>
    %c0_65 = arith.constant 0 : index
    %c0_66 = arith.constant 0 : index
    %c0_67 = arith.constant 0 : index
    %191 = vector.load %arg7[%c0_65, %c0_66, %c0_67] : memref<2x1x64xf32, #tpu.memory_space<vmem>>, vector<1x1x64xf32>
    %192 = vector.shape_cast %191 : vector<1x1x64xf32> to vector<1x64xf32>
    %c0_68 = arith.constant 0 : index
    %c0_69 = arith.constant 0 : index
    %c0_70 = arith.constant 0 : index
    %193 = vector.load %arg8[%c0_68, %c0_69, %c0_70] : memref<2x1x64xf32, #tpu.memory_space<vmem>>, vector<1x1x64xf32>
    %194 = vector.shape_cast %193 : vector<1x1x64xf32> to vector<1x64xf32>
    %cst_71 = arith.constant dense<0.000000e+00> : vector<16xf32>
    %195 = vector.multi_reduction <add>, %190, %cst_71 [1] : vector<16x64xf32> to vector<16xf32>
    %196 = vector.shape_cast %195 : vector<16xf32> to vector<16x1xf32>
    %cst_72 = arith.constant 6.400000e+01 : f32
    %197 = vector.broadcast %cst_72 : f32 to vector<16x1xf32>
    %198 = arith.divf %196, %197 : vector<16x1xf32>
    %199 = vector.broadcast %198 : vector<16x1xf32> to vector<16x64xf32>
    %200 = arith.subf %190, %199 : vector<16x64xf32>
    %201 = arith.mulf %200, %200 : vector<16x64xf32>
    %cst_73 = arith.constant dense<0.000000e+00> : vector<16xf32>
    %202 = vector.multi_reduction <add>, %201, %cst_73 [1] : vector<16x64xf32> to vector<16xf32>
    %203 = vector.shape_cast %202 : vector<16xf32> to vector<16x1xf32>
    %cst_74 = arith.constant 6.400000e+01 : f32
    %204 = vector.broadcast %cst_74 : f32 to vector<16x1xf32>
    %205 = arith.divf %203, %204 : vector<16x1xf32>
    %cst_75 = arith.constant 9.99999974E-6 : f32
    %206 = vector.broadcast %cst_75 : f32 to vector<16x1xf32>
    %207 = arith.addf %205, %206 : vector<16x1xf32>
    %208 = math.rsqrt %207 : vector<16x1xf32>
    %209 = vector.broadcast %208 : vector<16x1xf32> to vector<16x64xf32>
    %210 = arith.mulf %200, %209 : vector<16x64xf32>
    %211 = vector.broadcast %192 : vector<1x64xf32> to vector<16x64xf32>
    %212 = arith.mulf %210, %211 : vector<16x64xf32>
    %213 = vector.broadcast %194 : vector<1x64xf32> to vector<16x64xf32>
    %214 = arith.addf %212, %213 : vector<16x64xf32>
    %c0_76 = arith.constant 0 : index
    %c0_77 = arith.constant 0 : index
    %c0_78 = arith.constant 0 : index
    %215 = vector.load %arg9[%c0_76, %c0_77, %c0_78] : memref<2x64x128xf32, #tpu.memory_space<vmem>>, vector<1x64x128xf32>
    %216 = vector.shape_cast %215 : vector<1x64x128xf32> to vector<64x128xf32>
    %cst_79 = arith.constant dense<0.000000e+00> : vector<16x128xf32>
    %217 = tpu.matmul %214, %216, %cst_79 {dimension_numbers = #tpu.dot_dimension_numbers<[1], [0], [0], [1], [0, 0, 1, 1], [], []>} : vector<16x64xf32>, vector<64x128xf32>, vector<16x128xf32> -> vector<16x128xf32>
    %c0_80 = arith.constant 0 : index
    %c0_81 = arith.constant 0 : index
    %c0_82 = arith.constant 0 : index
    %218 = vector.load %arg10[%c0_80, %c0_81, %c0_82] : memref<2x1x128xf32, #tpu.memory_space<vmem>>, vector<1x1x128xf32>
    %219 = vector.shape_cast %218 : vector<1x1x128xf32> to vector<1x128xf32>
    %220 = vector.broadcast %219 : vector<1x128xf32> to vector<16x128xf32>
    %221 = arith.addf %217, %220 : vector<16x128xf32>
    %cst_83 = arith.constant 5.000000e-01 : f32
    %222 = vector.broadcast %cst_83 : f32 to vector<16x128xf32>
    %223 = arith.mulf %222, %221 : vector<16x128xf32>
    %224 = arith.mulf %221, %221 : vector<16x128xf32>
    %225 = arith.mulf %221, %224 : vector<16x128xf32>
    %cst_84 = arith.constant 4.471500e-02 : f32
    %226 = vector.broadcast %cst_84 : f32 to vector<16x128xf32>
    %227 = arith.mulf %226, %225 : vector<16x128xf32>
    %228 = arith.addf %221, %227 : vector<16x128xf32>
    %cst_85 = arith.constant 0.797884583 : f32
    %229 = vector.broadcast %cst_85 : f32 to vector<16x128xf32>
    %230 = arith.mulf %229, %228 : vector<16x128xf32>
    %231 = math.tanh %230 : vector<16x128xf32>
    %cst_86 = arith.constant 1.000000e+00 : f32
    %232 = vector.broadcast %cst_86 : f32 to vector<16x128xf32>
    %233 = arith.addf %232, %231 : vector<16x128xf32>
    %234 = arith.mulf %223, %233 : vector<16x128xf32>
    %c0_87 = arith.constant 0 : index
    %c0_88 = arith.constant 0 : index
    %c0_89 = arith.constant 0 : index
    %235 = vector.load %arg11[%c0_87, %c0_88, %c0_89] : memref<2x128x64xf32, #tpu.memory_space<vmem>>, vector<1x128x64xf32>
    %236 = vector.shape_cast %235 : vector<1x128x64xf32> to vector<128x64xf32>
    %cst_90 = arith.constant dense<0.000000e+00> : vector<16x64xf32>
    %237 = tpu.matmul %234, %236, %cst_90 {dimension_numbers = #tpu.dot_dimension_numbers<[1], [0], [0], [1], [0, 0, 1, 1], [], []>} : vector<16x128xf32>, vector<128x64xf32>, vector<16x64xf32> -> vector<16x64xf32>
    %c0_91 = arith.constant 0 : index
    %c0_92 = arith.constant 0 : index
    %c0_93 = arith.constant 0 : index
    %238 = vector.load %arg12[%c0_91, %c0_92, %c0_93] : memref<2x1x64xf32, #tpu.memory_space<vmem>>, vector<1x1x64xf32>
    %239 = vector.shape_cast %238 : vector<1x1x64xf32> to vector<1x64xf32>
    %240 = vector.broadcast %239 : vector<1x64xf32> to vector<16x64xf32>
    %241 = arith.addf %237, %240 : vector<16x64xf32>
    %242 = arith.addf %190, %241 : vector<16x64xf32>
    %c1 = arith.constant 1 : index
    %c0_94 = arith.constant 0 : index
    %c0_95 = arith.constant 0 : index
    %243 = vector.load %arg1[%c1, %c0_94, %c0_95] : memref<2x1x64xf32, #tpu.memory_space<vmem>>, vector<1x1x64xf32>
    %244 = vector.shape_cast %243 : vector<1x1x64xf32> to vector<1x64xf32>
    %c1_96 = arith.constant 1 : index
    %c0_97 = arith.constant 0 : index
    %c0_98 = arith.constant 0 : index
    %245 = vector.load %arg2[%c1_96, %c0_97, %c0_98] : memref<2x1x64xf32, #tpu.memory_space<vmem>>, vector<1x1x64xf32>
    %246 = vector.shape_cast %245 : vector<1x1x64xf32> to vector<1x64xf32>
    %cst_99 = arith.constant dense<0.000000e+00> : vector<16xf32>
    %247 = vector.multi_reduction <add>, %242, %cst_99 [1] : vector<16x64xf32> to vector<16xf32>
    %248 = vector.shape_cast %247 : vector<16xf32> to vector<16x1xf32>
    %cst_100 = arith.constant 6.400000e+01 : f32
    %249 = vector.broadcast %cst_100 : f32 to vector<16x1xf32>
    %250 = arith.divf %248, %249 : vector<16x1xf32>
    %251 = vector.broadcast %250 : vector<16x1xf32> to vector<16x64xf32>
    %252 = arith.subf %242, %251 : vector<16x64xf32>
    %253 = arith.mulf %252, %252 : vector<16x64xf32>
    %cst_101 = arith.constant dense<0.000000e+00> : vector<16xf32>
    %254 = vector.multi_reduction <add>, %253, %cst_101 [1] : vector<16x64xf32> to vector<16xf32>
    %255 = vector.shape_cast %254 : vector<16xf32> to vector<16x1xf32>
    %cst_102 = arith.constant 6.400000e+01 : f32
    %256 = vector.broadcast %cst_102 : f32 to vector<16x1xf32>
    %257 = arith.divf %255, %256 : vector<16x1xf32>
    %cst_103 = arith.constant 9.99999974E-6 : f32
    %258 = vector.broadcast %cst_103 : f32 to vector<16x1xf32>
    %259 = arith.addf %257, %258 : vector<16x1xf32>
    %260 = math.rsqrt %259 : vector<16x1xf32>
    %261 = vector.broadcast %260 : vector<16x1xf32> to vector<16x64xf32>
    %262 = arith.mulf %252, %261 : vector<16x64xf32>
    %263 = vector.broadcast %244 : vector<1x64xf32> to vector<16x64xf32>
    %264 = arith.mulf %262, %263 : vector<16x64xf32>
    %265 = vector.broadcast %246 : vector<1x64xf32> to vector<16x64xf32>
    %266 = arith.addf %264, %265 : vector<16x64xf32>
    %c1_104 = arith.constant 1 : index
    %c0_105 = arith.constant 0 : index
    %c0_106 = arith.constant 0 : index
    %267 = vector.load %arg3[%c1_104, %c0_105, %c0_106] : memref<2x64x192xf32, #tpu.memory_space<vmem>>, vector<1x64x192xf32>
    %268 = vector.shape_cast %267 : vector<1x64x192xf32> to vector<64x192xf32>
    %cst_107 = arith.constant dense<0.000000e+00> : vector<16x192xf32>
    %269 = tpu.matmul %266, %268, %cst_107 {dimension_numbers = #tpu.dot_dimension_numbers<[1], [0], [0], [1], [0, 0, 1, 1], [], []>} : vector<16x64xf32>, vector<64x192xf32>, vector<16x192xf32> -> vector<16x192xf32>
    %c1_108 = arith.constant 1 : index
    %c0_109 = arith.constant 0 : index
    %c0_110 = arith.constant 0 : index
    %270 = vector.load %arg4[%c1_108, %c0_109, %c0_110] : memref<2x1x192xf32, #tpu.memory_space<vmem>>, vector<1x1x192xf32>
    %271 = vector.shape_cast %270 : vector<1x1x192xf32> to vector<1x192xf32>
    %272 = vector.broadcast %271 : vector<1x192xf32> to vector<16x192xf32>
    %273 = arith.addf %269, %272 : vector<16x192xf32>
    %274 = vector.extract_strided_slice %273 {offsets = [0, 0], sizes = [16, 64], strides = [1, 1]} : vector<16x192xf32> to vector<16x64xf32>
    %275 = vector.extract_strided_slice %273 {offsets = [0, 64], sizes = [16, 64], strides = [1, 1]} : vector<16x192xf32> to vector<16x64xf32>
    %276 = vector.extract_strided_slice %273 {offsets = [0, 128], sizes = [16, 64], strides = [1, 1]} : vector<16x192xf32> to vector<16x64xf32>
    %277 = vector.extract_strided_slice %274 {offsets = [0, 0], sizes = [8, 64], strides = [1, 1]} : vector<16x64xf32> to vector<8x64xf32>
    %278 = vector.extract_strided_slice %275 {offsets = [0, 0], sizes = [8, 64], strides = [1, 1]} : vector<16x64xf32> to vector<8x64xf32>
    %279 = vector.extract_strided_slice %276 {offsets = [0, 0], sizes = [8, 64], strides = [1, 1]} : vector<16x64xf32> to vector<8x64xf32>
    %280 = vector.extract_strided_slice %277 {offsets = [0, 0], sizes = [8, 16], strides = [1, 1]} : vector<8x64xf32> to vector<8x16xf32>
    %281 = vector.extract_strided_slice %278 {offsets = [0, 0], sizes = [8, 16], strides = [1, 1]} : vector<8x64xf32> to vector<8x16xf32>
    %282 = vector.extract_strided_slice %279 {offsets = [0, 0], sizes = [8, 16], strides = [1, 1]} : vector<8x64xf32> to vector<8x16xf32>
    %cst_111 = arith.constant dense<0.000000e+00> : vector<8x8xf32>
    %283 = tpu.matmul %280, %281, %cst_111 {dimension_numbers = #tpu.dot_dimension_numbers<[1], [1], [0], [0], [0, 0, 1, 0], [], []>} : vector<8x16xf32>, vector<8x16xf32>, vector<8x8xf32> -> vector<8x8xf32>
    %cst_112 = arith.constant -1.000000e+05 : f32
    %284 = vector.broadcast %cst_112 : f32 to vector<8x8xf32>
    %285 = arith.select %3, %283, %284 : vector<8x8xi1>, vector<8x8xf32>
    %cst_113 = arith.constant dense<0xFF800000> : vector<8xf32>
    %286 = vector.multi_reduction <maximumf>, %285, %cst_113 [1] : vector<8x8xf32> to vector<8xf32>
    %287 = vector.shape_cast %286 : vector<8xf32> to vector<8x1xf32>
    %288 = vector.broadcast %287 : vector<8x1xf32> to vector<8x8xf32>
    %289 = arith.subf %285, %288 : vector<8x8xf32>
    %290 = math.exp %289 : vector<8x8xf32>
    %cst_114 = arith.constant dense<0.000000e+00> : vector<8xf32>
    %291 = vector.multi_reduction <add>, %290, %cst_114 [1] : vector<8x8xf32> to vector<8xf32>
    %292 = vector.shape_cast %291 : vector<8xf32> to vector<8x1xf32>
    %293 = tpu.reciprocal %292 {approx = true} : vector<8x1xf32> -> vector<8x1xf32>
    %294 = vector.broadcast %293 : vector<8x1xf32> to vector<8x8xf32>
    %295 = arith.mulf %290, %294 : vector<8x8xf32>
    %cst_115 = arith.constant dense<0.000000e+00> : vector<8x16xf32>
    %296 = tpu.matmul %295, %282, %cst_115 {dimension_numbers = #tpu.dot_dimension_numbers<[1], [0], [0], [1], [0, 0, 1, 1], [], []>} : vector<8x8xf32>, vector<8x16xf32>, vector<8x16xf32> -> vector<8x16xf32>
    %297 = vector.extract_strided_slice %277 {offsets = [0, 16], sizes = [8, 16], strides = [1, 1]} : vector<8x64xf32> to vector<8x16xf32>
    %298 = vector.extract_strided_slice %278 {offsets = [0, 16], sizes = [8, 16], strides = [1, 1]} : vector<8x64xf32> to vector<8x16xf32>
    %299 = vector.extract_strided_slice %279 {offsets = [0, 16], sizes = [8, 16], strides = [1, 1]} : vector<8x64xf32> to vector<8x16xf32>
    %cst_116 = arith.constant dense<0.000000e+00> : vector<8x8xf32>
    %300 = tpu.matmul %297, %298, %cst_116 {dimension_numbers = #tpu.dot_dimension_numbers<[1], [1], [0], [0], [0, 0, 1, 0], [], []>} : vector<8x16xf32>, vector<8x16xf32>, vector<8x8xf32> -> vector<8x8xf32>
    %cst_117 = arith.constant -1.000000e+05 : f32
    %301 = vector.broadcast %cst_117 : f32 to vector<8x8xf32>
    %302 = arith.select %3, %300, %301 : vector<8x8xi1>, vector<8x8xf32>
    %cst_118 = arith.constant dense<0xFF800000> : vector<8xf32>
    %303 = vector.multi_reduction <maximumf>, %302, %cst_118 [1] : vector<8x8xf32> to vector<8xf32>
    %304 = vector.shape_cast %303 : vector<8xf32> to vector<8x1xf32>
    %305 = vector.broadcast %304 : vector<8x1xf32> to vector<8x8xf32>
    %306 = arith.subf %302, %305 : vector<8x8xf32>
    %307 = math.exp %306 : vector<8x8xf32>
    %cst_119 = arith.constant dense<0.000000e+00> : vector<8xf32>
    %308 = vector.multi_reduction <add>, %307, %cst_119 [1] : vector<8x8xf32> to vector<8xf32>
    %309 = vector.shape_cast %308 : vector<8xf32> to vector<8x1xf32>
    %310 = tpu.reciprocal %309 {approx = true} : vector<8x1xf32> -> vector<8x1xf32>
    %311 = vector.broadcast %310 : vector<8x1xf32> to vector<8x8xf32>
    %312 = arith.mulf %307, %311 : vector<8x8xf32>
    %cst_120 = arith.constant dense<0.000000e+00> : vector<8x16xf32>
    %313 = tpu.matmul %312, %299, %cst_120 {dimension_numbers = #tpu.dot_dimension_numbers<[1], [0], [0], [1], [0, 0, 1, 1], [], []>} : vector<8x8xf32>, vector<8x16xf32>, vector<8x16xf32> -> vector<8x16xf32>
    %314 = vector.extract_strided_slice %277 {offsets = [0, 32], sizes = [8, 16], strides = [1, 1]} : vector<8x64xf32> to vector<8x16xf32>
    %315 = vector.extract_strided_slice %278 {offsets = [0, 32], sizes = [8, 16], strides = [1, 1]} : vector<8x64xf32> to vector<8x16xf32>
    %316 = vector.extract_strided_slice %279 {offsets = [0, 32], sizes = [8, 16], strides = [1, 1]} : vector<8x64xf32> to vector<8x16xf32>
    %cst_121 = arith.constant dense<0.000000e+00> : vector<8x8xf32>
    %317 = tpu.matmul %314, %315, %cst_121 {dimension_numbers = #tpu.dot_dimension_numbers<[1], [1], [0], [0], [0, 0, 1, 0], [], []>} : vector<8x16xf32>, vector<8x16xf32>, vector<8x8xf32> -> vector<8x8xf32>
    %cst_122 = arith.constant -1.000000e+05 : f32
    %318 = vector.broadcast %cst_122 : f32 to vector<8x8xf32>
    %319 = arith.select %3, %317, %318 : vector<8x8xi1>, vector<8x8xf32>
    %cst_123 = arith.constant dense<0xFF800000> : vector<8xf32>
    %320 = vector.multi_reduction <maximumf>, %319, %cst_123 [1] : vector<8x8xf32> to vector<8xf32>
    %321 = vector.shape_cast %320 : vector<8xf32> to vector<8x1xf32>
    %322 = vector.broadcast %321 : vector<8x1xf32> to vector<8x8xf32>
    %323 = arith.subf %319, %322 : vector<8x8xf32>
    %324 = math.exp %323 : vector<8x8xf32>
    %cst_124 = arith.constant dense<0.000000e+00> : vector<8xf32>
    %325 = vector.multi_reduction <add>, %324, %cst_124 [1] : vector<8x8xf32> to vector<8xf32>
    %326 = vector.shape_cast %325 : vector<8xf32> to vector<8x1xf32>
    %327 = tpu.reciprocal %326 {approx = true} : vector<8x1xf32> -> vector<8x1xf32>
    %328 = vector.broadcast %327 : vector<8x1xf32> to vector<8x8xf32>
    %329 = arith.mulf %324, %328 : vector<8x8xf32>
    %cst_125 = arith.constant dense<0.000000e+00> : vector<8x16xf32>
    %330 = tpu.matmul %329, %316, %cst_125 {dimension_numbers = #tpu.dot_dimension_numbers<[1], [0], [0], [1], [0, 0, 1, 1], [], []>} : vector<8x8xf32>, vector<8x16xf32>, vector<8x16xf32> -> vector<8x16xf32>
    %331 = vector.extract_strided_slice %277 {offsets = [0, 48], sizes = [8, 16], strides = [1, 1]} : vector<8x64xf32> to vector<8x16xf32>
    %332 = vector.extract_strided_slice %278 {offsets = [0, 48], sizes = [8, 16], strides = [1, 1]} : vector<8x64xf32> to vector<8x16xf32>
    %333 = vector.extract_strided_slice %279 {offsets = [0, 48], sizes = [8, 16], strides = [1, 1]} : vector<8x64xf32> to vector<8x16xf32>
    %cst_126 = arith.constant dense<0.000000e+00> : vector<8x8xf32>
    %334 = tpu.matmul %331, %332, %cst_126 {dimension_numbers = #tpu.dot_dimension_numbers<[1], [1], [0], [0], [0, 0, 1, 0], [], []>} : vector<8x16xf32>, vector<8x16xf32>, vector<8x8xf32> -> vector<8x8xf32>
    %cst_127 = arith.constant -1.000000e+05 : f32
    %335 = vector.broadcast %cst_127 : f32 to vector<8x8xf32>
    %336 = arith.select %3, %334, %335 : vector<8x8xi1>, vector<8x8xf32>
    %cst_128 = arith.constant dense<0xFF800000> : vector<8xf32>
    %337 = vector.multi_reduction <maximumf>, %336, %cst_128 [1] : vector<8x8xf32> to vector<8xf32>
    %338 = vector.shape_cast %337 : vector<8xf32> to vector<8x1xf32>
    %339 = vector.broadcast %338 : vector<8x1xf32> to vector<8x8xf32>
    %340 = arith.subf %336, %339 : vector<8x8xf32>
    %341 = math.exp %340 : vector<8x8xf32>
    %cst_129 = arith.constant dense<0.000000e+00> : vector<8xf32>
    %342 = vector.multi_reduction <add>, %341, %cst_129 [1] : vector<8x8xf32> to vector<8xf32>
    %343 = vector.shape_cast %342 : vector<8xf32> to vector<8x1xf32>
    %344 = tpu.reciprocal %343 {approx = true} : vector<8x1xf32> -> vector<8x1xf32>
    %345 = vector.broadcast %344 : vector<8x1xf32> to vector<8x8xf32>
    %346 = arith.mulf %341, %345 : vector<8x8xf32>
    %cst_130 = arith.constant dense<0.000000e+00> : vector<8x16xf32>
    %347 = tpu.matmul %346, %333, %cst_130 {dimension_numbers = #tpu.dot_dimension_numbers<[1], [0], [0], [1], [0, 0, 1, 1], [], []>} : vector<8x8xf32>, vector<8x16xf32>, vector<8x16xf32> -> vector<8x16xf32>
    %348 = tpu.concatenate %296, %313, %330, %347 in 1 : vector<8x16xf32>, vector<8x16xf32>, vector<8x16xf32>, vector<8x16xf32> -> vector<8x64xf32>
    %349 = vector.extract_strided_slice %274 {offsets = [8, 0], sizes = [8, 64], strides = [1, 1]} : vector<16x64xf32> to vector<8x64xf32>
    %350 = vector.extract_strided_slice %275 {offsets = [8, 0], sizes = [8, 64], strides = [1, 1]} : vector<16x64xf32> to vector<8x64xf32>
    %351 = vector.extract_strided_slice %276 {offsets = [8, 0], sizes = [8, 64], strides = [1, 1]} : vector<16x64xf32> to vector<8x64xf32>
    %352 = vector.extract_strided_slice %349 {offsets = [0, 0], sizes = [8, 16], strides = [1, 1]} : vector<8x64xf32> to vector<8x16xf32>
    %353 = vector.extract_strided_slice %350 {offsets = [0, 0], sizes = [8, 16], strides = [1, 1]} : vector<8x64xf32> to vector<8x16xf32>
    %354 = vector.extract_strided_slice %351 {offsets = [0, 0], sizes = [8, 16], strides = [1, 1]} : vector<8x64xf32> to vector<8x16xf32>
    %cst_131 = arith.constant dense<0.000000e+00> : vector<8x8xf32>
    %355 = tpu.matmul %352, %353, %cst_131 {dimension_numbers = #tpu.dot_dimension_numbers<[1], [1], [0], [0], [0, 0, 1, 0], [], []>} : vector<8x16xf32>, vector<8x16xf32>, vector<8x8xf32> -> vector<8x8xf32>
    %cst_132 = arith.constant -1.000000e+05 : f32
    %356 = vector.broadcast %cst_132 : f32 to vector<8x8xf32>
    %357 = arith.select %3, %355, %356 : vector<8x8xi1>, vector<8x8xf32>
    %cst_133 = arith.constant dense<0xFF800000> : vector<8xf32>
    %358 = vector.multi_reduction <maximumf>, %357, %cst_133 [1] : vector<8x8xf32> to vector<8xf32>
    %359 = vector.shape_cast %358 : vector<8xf32> to vector<8x1xf32>
    %360 = vector.broadcast %359 : vector<8x1xf32> to vector<8x8xf32>
    %361 = arith.subf %357, %360 : vector<8x8xf32>
    %362 = math.exp %361 : vector<8x8xf32>
    %cst_134 = arith.constant dense<0.000000e+00> : vector<8xf32>
    %363 = vector.multi_reduction <add>, %362, %cst_134 [1] : vector<8x8xf32> to vector<8xf32>
    %364 = vector.shape_cast %363 : vector<8xf32> to vector<8x1xf32>
    %365 = tpu.reciprocal %364 {approx = true} : vector<8x1xf32> -> vector<8x1xf32>
    %366 = vector.broadcast %365 : vector<8x1xf32> to vector<8x8xf32>
    %367 = arith.mulf %362, %366 : vector<8x8xf32>
    %cst_135 = arith.constant dense<0.000000e+00> : vector<8x16xf32>
    %368 = tpu.matmul %367, %354, %cst_135 {dimension_numbers = #tpu.dot_dimension_numbers<[1], [0], [0], [1], [0, 0, 1, 1], [], []>} : vector<8x8xf32>, vector<8x16xf32>, vector<8x16xf32> -> vector<8x16xf32>
    %369 = vector.extract_strided_slice %349 {offsets = [0, 16], sizes = [8, 16], strides = [1, 1]} : vector<8x64xf32> to vector<8x16xf32>
    %370 = vector.extract_strided_slice %350 {offsets = [0, 16], sizes = [8, 16], strides = [1, 1]} : vector<8x64xf32> to vector<8x16xf32>
    %371 = vector.extract_strided_slice %351 {offsets = [0, 16], sizes = [8, 16], strides = [1, 1]} : vector<8x64xf32> to vector<8x16xf32>
    %cst_136 = arith.constant dense<0.000000e+00> : vector<8x8xf32>
    %372 = tpu.matmul %369, %370, %cst_136 {dimension_numbers = #tpu.dot_dimension_numbers<[1], [1], [0], [0], [0, 0, 1, 0], [], []>} : vector<8x16xf32>, vector<8x16xf32>, vector<8x8xf32> -> vector<8x8xf32>
    %cst_137 = arith.constant -1.000000e+05 : f32
    %373 = vector.broadcast %cst_137 : f32 to vector<8x8xf32>
    %374 = arith.select %3, %372, %373 : vector<8x8xi1>, vector<8x8xf32>
    %cst_138 = arith.constant dense<0xFF800000> : vector<8xf32>
    %375 = vector.multi_reduction <maximumf>, %374, %cst_138 [1] : vector<8x8xf32> to vector<8xf32>
    %376 = vector.shape_cast %375 : vector<8xf32> to vector<8x1xf32>
    %377 = vector.broadcast %376 : vector<8x1xf32> to vector<8x8xf32>
    %378 = arith.subf %374, %377 : vector<8x8xf32>
    %379 = math.exp %378 : vector<8x8xf32>
    %cst_139 = arith.constant dense<0.000000e+00> : vector<8xf32>
    %380 = vector.multi_reduction <add>, %379, %cst_139 [1] : vector<8x8xf32> to vector<8xf32>
    %381 = vector.shape_cast %380 : vector<8xf32> to vector<8x1xf32>
    %382 = tpu.reciprocal %381 {approx = true} : vector<8x1xf32> -> vector<8x1xf32>
    %383 = vector.broadcast %382 : vector<8x1xf32> to vector<8x8xf32>
    %384 = arith.mulf %379, %383 : vector<8x8xf32>
    %cst_140 = arith.constant dense<0.000000e+00> : vector<8x16xf32>
    %385 = tpu.matmul %384, %371, %cst_140 {dimension_numbers = #tpu.dot_dimension_numbers<[1], [0], [0], [1], [0, 0, 1, 1], [], []>} : vector<8x8xf32>, vector<8x16xf32>, vector<8x16xf32> -> vector<8x16xf32>
    %386 = vector.extract_strided_slice %349 {offsets = [0, 32], sizes = [8, 16], strides = [1, 1]} : vector<8x64xf32> to vector<8x16xf32>
    %387 = vector.extract_strided_slice %350 {offsets = [0, 32], sizes = [8, 16], strides = [1, 1]} : vector<8x64xf32> to vector<8x16xf32>
    %388 = vector.extract_strided_slice %351 {offsets = [0, 32], sizes = [8, 16], strides = [1, 1]} : vector<8x64xf32> to vector<8x16xf32>
    %cst_141 = arith.constant dense<0.000000e+00> : vector<8x8xf32>
    %389 = tpu.matmul %386, %387, %cst_141 {dimension_numbers = #tpu.dot_dimension_numbers<[1], [1], [0], [0], [0, 0, 1, 0], [], []>} : vector<8x16xf32>, vector<8x16xf32>, vector<8x8xf32> -> vector<8x8xf32>
    %cst_142 = arith.constant -1.000000e+05 : f32
    %390 = vector.broadcast %cst_142 : f32 to vector<8x8xf32>
    %391 = arith.select %3, %389, %390 : vector<8x8xi1>, vector<8x8xf32>
    %cst_143 = arith.constant dense<0xFF800000> : vector<8xf32>
    %392 = vector.multi_reduction <maximumf>, %391, %cst_143 [1] : vector<8x8xf32> to vector<8xf32>
    %393 = vector.shape_cast %392 : vector<8xf32> to vector<8x1xf32>
    %394 = vector.broadcast %393 : vector<8x1xf32> to vector<8x8xf32>
    %395 = arith.subf %391, %394 : vector<8x8xf32>
    %396 = math.exp %395 : vector<8x8xf32>
    %cst_144 = arith.constant dense<0.000000e+00> : vector<8xf32>
    %397 = vector.multi_reduction <add>, %396, %cst_144 [1] : vector<8x8xf32> to vector<8xf32>
    %398 = vector.shape_cast %397 : vector<8xf32> to vector<8x1xf32>
    %399 = tpu.reciprocal %398 {approx = true} : vector<8x1xf32> -> vector<8x1xf32>
    %400 = vector.broadcast %399 : vector<8x1xf32> to vector<8x8xf32>
    %401 = arith.mulf %396, %400 : vector<8x8xf32>
    %cst_145 = arith.constant dense<0.000000e+00> : vector<8x16xf32>
    %402 = tpu.matmul %401, %388, %cst_145 {dimension_numbers = #tpu.dot_dimension_numbers<[1], [0], [0], [1], [0, 0, 1, 1], [], []>} : vector<8x8xf32>, vector<8x16xf32>, vector<8x16xf32> -> vector<8x16xf32>
    %403 = vector.extract_strided_slice %349 {offsets = [0, 48], sizes = [8, 16], strides = [1, 1]} : vector<8x64xf32> to vector<8x16xf32>
    %404 = vector.extract_strided_slice %350 {offsets = [0, 48], sizes = [8, 16], strides = [1, 1]} : vector<8x64xf32> to vector<8x16xf32>
    %405 = vector.extract_strided_slice %351 {offsets = [0, 48], sizes = [8, 16], strides = [1, 1]} : vector<8x64xf32> to vector<8x16xf32>
    %cst_146 = arith.constant dense<0.000000e+00> : vector<8x8xf32>
    %406 = tpu.matmul %403, %404, %cst_146 {dimension_numbers = #tpu.dot_dimension_numbers<[1], [1], [0], [0], [0, 0, 1, 0], [], []>} : vector<8x16xf32>, vector<8x16xf32>, vector<8x8xf32> -> vector<8x8xf32>
    %cst_147 = arith.constant -1.000000e+05 : f32
    %407 = vector.broadcast %cst_147 : f32 to vector<8x8xf32>
    %408 = arith.select %3, %406, %407 : vector<8x8xi1>, vector<8x8xf32>
    %cst_148 = arith.constant dense<0xFF800000> : vector<8xf32>
    %409 = vector.multi_reduction <maximumf>, %408, %cst_148 [1] : vector<8x8xf32> to vector<8xf32>
    %410 = vector.shape_cast %409 : vector<8xf32> to vector<8x1xf32>
    %411 = vector.broadcast %410 : vector<8x1xf32> to vector<8x8xf32>
    %412 = arith.subf %408, %411 : vector<8x8xf32>
    %413 = math.exp %412 : vector<8x8xf32>
    %cst_149 = arith.constant dense<0.000000e+00> : vector<8xf32>
    %414 = vector.multi_reduction <add>, %413, %cst_149 [1] : vector<8x8xf32> to vector<8xf32>
    %415 = vector.shape_cast %414 : vector<8xf32> to vector<8x1xf32>
    %416 = tpu.reciprocal %415 {approx = true} : vector<8x1xf32> -> vector<8x1xf32>
    %417 = vector.broadcast %416 : vector<8x1xf32> to vector<8x8xf32>
    %418 = arith.mulf %413, %417 : vector<8x8xf32>
    %cst_150 = arith.constant dense<0.000000e+00> : vector<8x16xf32>
    %419 = tpu.matmul %418, %405, %cst_150 {dimension_numbers = #tpu.dot_dimension_numbers<[1], [0], [0], [1], [0, 0, 1, 1], [], []>} : vector<8x8xf32>, vector<8x16xf32>, vector<8x16xf32> -> vector<8x16xf32>
    %420 = tpu.concatenate %368, %385, %402, %419 in 1 : vector<8x16xf32>, vector<8x16xf32>, vector<8x16xf32>, vector<8x16xf32> -> vector<8x64xf32>
    %421 = tpu.concatenate %348, %420 in 0 : vector<8x64xf32>, vector<8x64xf32> -> vector<16x64xf32>
    %c1_151 = arith.constant 1 : index
    %c0_152 = arith.constant 0 : index
    %c0_153 = arith.constant 0 : index
    %422 = vector.load %arg5[%c1_151, %c0_152, %c0_153] : memref<2x64x64xf32, #tpu.memory_space<vmem>>, vector<1x64x64xf32>
    %423 = vector.shape_cast %422 : vector<1x64x64xf32> to vector<64x64xf32>
    %cst_154 = arith.constant dense<0.000000e+00> : vector<16x64xf32>
    %424 = tpu.matmul %421, %423, %cst_154 {dimension_numbers = #tpu.dot_dimension_numbers<[1], [0], [0], [1], [0, 0, 1, 1], [], []>} : vector<16x64xf32>, vector<64x64xf32>, vector<16x64xf32> -> vector<16x64xf32>
    %c1_155 = arith.constant 1 : index
    %c0_156 = arith.constant 0 : index
    %c0_157 = arith.constant 0 : index
    %425 = vector.load %arg6[%c1_155, %c0_156, %c0_157] : memref<2x1x64xf32, #tpu.memory_space<vmem>>, vector<1x1x64xf32>
    %426 = vector.shape_cast %425 : vector<1x1x64xf32> to vector<1x64xf32>
    %427 = vector.broadcast %426 : vector<1x64xf32> to vector<16x64xf32>
    %428 = arith.addf %424, %427 : vector<16x64xf32>
    %429 = arith.addf %242, %428 : vector<16x64xf32>
    %c1_158 = arith.constant 1 : index
    %c0_159 = arith.constant 0 : index
    %c0_160 = arith.constant 0 : index
    %430 = vector.load %arg7[%c1_158, %c0_159, %c0_160] : memref<2x1x64xf32, #tpu.memory_space<vmem>>, vector<1x1x64xf32>
    %431 = vector.shape_cast %430 : vector<1x1x64xf32> to vector<1x64xf32>
    %c1_161 = arith.constant 1 : index
    %c0_162 = arith.constant 0 : index
    %c0_163 = arith.constant 0 : index
    %432 = vector.load %arg8[%c1_161, %c0_162, %c0_163] : memref<2x1x64xf32, #tpu.memory_space<vmem>>, vector<1x1x64xf32>
    %433 = vector.shape_cast %432 : vector<1x1x64xf32> to vector<1x64xf32>
    %cst_164 = arith.constant dense<0.000000e+00> : vector<16xf32>
    %434 = vector.multi_reduction <add>, %429, %cst_164 [1] : vector<16x64xf32> to vector<16xf32>
    %435 = vector.shape_cast %434 : vector<16xf32> to vector<16x1xf32>
    %cst_165 = arith.constant 6.400000e+01 : f32
    %436 = vector.broadcast %cst_165 : f32 to vector<16x1xf32>
    %437 = arith.divf %435, %436 : vector<16x1xf32>
    %438 = vector.broadcast %437 : vector<16x1xf32> to vector<16x64xf32>
    %439 = arith.subf %429, %438 : vector<16x64xf32>
    %440 = arith.mulf %439, %439 : vector<16x64xf32>
    %cst_166 = arith.constant dense<0.000000e+00> : vector<16xf32>
    %441 = vector.multi_reduction <add>, %440, %cst_166 [1] : vector<16x64xf32> to vector<16xf32>
    %442 = vector.shape_cast %441 : vector<16xf32> to vector<16x1xf32>
    %cst_167 = arith.constant 6.400000e+01 : f32
    %443 = vector.broadcast %cst_167 : f32 to vector<16x1xf32>
    %444 = arith.divf %442, %443 : vector<16x1xf32>
    %cst_168 = arith.constant 9.99999974E-6 : f32
    %445 = vector.broadcast %cst_168 : f32 to vector<16x1xf32>
    %446 = arith.addf %444, %445 : vector<16x1xf32>
    %447 = math.rsqrt %446 : vector<16x1xf32>
    %448 = vector.broadcast %447 : vector<16x1xf32> to vector<16x64xf32>
    %449 = arith.mulf %439, %448 : vector<16x64xf32>
    %450 = vector.broadcast %431 : vector<1x64xf32> to vector<16x64xf32>
    %451 = arith.mulf %449, %450 : vector<16x64xf32>
    %452 = vector.broadcast %433 : vector<1x64xf32> to vector<16x64xf32>
    %453 = arith.addf %451, %452 : vector<16x64xf32>
    %c1_169 = arith.constant 1 : index
    %c0_170 = arith.constant 0 : index
    %c0_171 = arith.constant 0 : index
    %454 = vector.load %arg9[%c1_169, %c0_170, %c0_171] : memref<2x64x128xf32, #tpu.memory_space<vmem>>, vector<1x64x128xf32>
    %455 = vector.shape_cast %454 : vector<1x64x128xf32> to vector<64x128xf32>
    %cst_172 = arith.constant dense<0.000000e+00> : vector<16x128xf32>
    %456 = tpu.matmul %453, %455, %cst_172 {dimension_numbers = #tpu.dot_dimension_numbers<[1], [0], [0], [1], [0, 0, 1, 1], [], []>} : vector<16x64xf32>, vector<64x128xf32>, vector<16x128xf32> -> vector<16x128xf32>
    %c1_173 = arith.constant 1 : index
    %c0_174 = arith.constant 0 : index
    %c0_175 = arith.constant 0 : index
    %457 = vector.load %arg10[%c1_173, %c0_174, %c0_175] : memref<2x1x128xf32, #tpu.memory_space<vmem>>, vector<1x1x128xf32>
    %458 = vector.shape_cast %457 : vector<1x1x128xf32> to vector<1x128xf32>
    %459 = vector.broadcast %458 : vector<1x128xf32> to vector<16x128xf32>
    %460 = arith.addf %456, %459 : vector<16x128xf32>
    %cst_176 = arith.constant 5.000000e-01 : f32
    %461 = vector.broadcast %cst_176 : f32 to vector<16x128xf32>
    %462 = arith.mulf %461, %460 : vector<16x128xf32>
    %463 = arith.mulf %460, %460 : vector<16x128xf32>
    %464 = arith.mulf %460, %463 : vector<16x128xf32>
    %cst_177 = arith.constant 4.471500e-02 : f32
    %465 = vector.broadcast %cst_177 : f32 to vector<16x128xf32>
    %466 = arith.mulf %465, %464 : vector<16x128xf32>
    %467 = arith.addf %460, %466 : vector<16x128xf32>
    %cst_178 = arith.constant 0.797884583 : f32
    %468 = vector.broadcast %cst_178 : f32 to vector<16x128xf32>
    %469 = arith.mulf %468, %467 : vector<16x128xf32>
    %470 = math.tanh %469 : vector<16x128xf32>
    %cst_179 = arith.constant 1.000000e+00 : f32
    %471 = vector.broadcast %cst_179 : f32 to vector<16x128xf32>
    %472 = arith.addf %471, %470 : vector<16x128xf32>
    %473 = arith.mulf %462, %472 : vector<16x128xf32>
    %c1_180 = arith.constant 1 : index
    %c0_181 = arith.constant 0 : index
    %c0_182 = arith.constant 0 : index
    %474 = vector.load %arg11[%c1_180, %c0_181, %c0_182] : memref<2x128x64xf32, #tpu.memory_space<vmem>>, vector<1x128x64xf32>
    %475 = vector.shape_cast %474 : vector<1x128x64xf32> to vector<128x64xf32>
    %cst_183 = arith.constant dense<0.000000e+00> : vector<16x64xf32>
    %476 = tpu.matmul %473, %475, %cst_183 {dimension_numbers = #tpu.dot_dimension_numbers<[1], [0], [0], [1], [0, 0, 1, 1], [], []>} : vector<16x128xf32>, vector<128x64xf32>, vector<16x64xf32> -> vector<16x64xf32>
    %c1_184 = arith.constant 1 : index
    %c0_185 = arith.constant 0 : index
    %c0_186 = arith.constant 0 : index
    %477 = vector.load %arg12[%c1_184, %c0_185, %c0_186] : memref<2x1x64xf32, #tpu.memory_space<vmem>>, vector<1x1x64xf32>
    %478 = vector.shape_cast %477 : vector<1x1x64xf32> to vector<1x64xf32>
    %479 = vector.broadcast %478 : vector<1x64xf32> to vector<16x64xf32>
    %480 = arith.addf %476, %479 : vector<16x64xf32>
    %481 = arith.addf %429, %480 : vector<16x64xf32>
    %c0_187 = arith.constant 0 : index
    %c0_188 = arith.constant 0 : index
    %482 = vector.load %arg13[%c0_187, %c0_188] : memref<1x64xf32, #tpu.memory_space<vmem>>, vector<1x64xf32>
    %c0_189 = arith.constant 0 : index
    %c0_190 = arith.constant 0 : index
    %483 = vector.load %arg14[%c0_189, %c0_190] : memref<1x64xf32, #tpu.memory_space<vmem>>, vector<1x64xf32>
    %cst_191 = arith.constant dense<0.000000e+00> : vector<16xf32>
    %484 = vector.multi_reduction <add>, %481, %cst_191 [1] : vector<16x64xf32> to vector<16xf32>
    %485 = vector.shape_cast %484 : vector<16xf32> to vector<16x1xf32>
    %cst_192 = arith.constant 6.400000e+01 : f32
    %486 = vector.broadcast %cst_192 : f32 to vector<16x1xf32>
    %487 = arith.divf %485, %486 : vector<16x1xf32>
    %488 = vector.broadcast %487 : vector<16x1xf32> to vector<16x64xf32>
    %489 = arith.subf %481, %488 : vector<16x64xf32>
    %490 = arith.mulf %489, %489 : vector<16x64xf32>
    %cst_193 = arith.constant dense<0.000000e+00> : vector<16xf32>
    %491 = vector.multi_reduction <add>, %490, %cst_193 [1] : vector<16x64xf32> to vector<16xf32>
    %492 = vector.shape_cast %491 : vector<16xf32> to vector<16x1xf32>
    %cst_194 = arith.constant 6.400000e+01 : f32
    %493 = vector.broadcast %cst_194 : f32 to vector<16x1xf32>
    %494 = arith.divf %492, %493 : vector<16x1xf32>
    %cst_195 = arith.constant 9.99999974E-6 : f32
    %495 = vector.broadcast %cst_195 : f32 to vector<16x1xf32>
    %496 = arith.addf %494, %495 : vector<16x1xf32>
    %497 = math.rsqrt %496 : vector<16x1xf32>
    %498 = vector.broadcast %497 : vector<16x1xf32> to vector<16x64xf32>
    %499 = arith.mulf %489, %498 : vector<16x64xf32>
    %500 = vector.broadcast %482 : vector<1x64xf32> to vector<16x64xf32>
    %501 = arith.mulf %499, %500 : vector<16x64xf32>
    %502 = vector.broadcast %483 : vector<1x64xf32> to vector<16x64xf32>
    %503 = arith.addf %501, %502 : vector<16x64xf32>
    %c0_196 = arith.constant 0 : index
    %c0_197 = arith.constant 0 : index
    %504 = vector.load %arg15[%c0_196, %c0_197] : memref<64x128xf32, #tpu.memory_space<vmem>>, vector<64x128xf32>
    %cst_198 = arith.constant dense<0.000000e+00> : vector<16x128xf32>
    %505 = tpu.matmul %503, %504, %cst_198 {dimension_numbers = #tpu.dot_dimension_numbers<[1], [0], [0], [1], [0, 0, 1, 1], [], []>} : vector<16x64xf32>, vector<64x128xf32>, vector<16x128xf32> -> vector<16x128xf32>
    %c0_199 = arith.constant 0 : index
    %c0_200 = arith.constant 0 : index
    %506 = vector.load %arg16[%c0_199, %c0_200] : memref<1x128xf32, #tpu.memory_space<vmem>>, vector<1x128xf32>
    %507 = vector.broadcast %506 : vector<1x128xf32> to vector<16x128xf32>
    %508 = arith.addf %505, %507 : vector<16x128xf32>
    %c0_201 = arith.constant 0 : index
    %c0_202 = arith.constant 0 : index
    %509 = vector.load %arg17[%c0_201, %c0_202] : memref<16x128xf32, #tpu.memory_space<vmem>>, vector<16x128xf32>
    tpu.vector_store %arg17[%c0_201, %c0_202], %508 {strides = array<i32>} : memref<16x128xf32, #tpu.memory_space<vmem>>, vector<16x128xf32>,
    return
  }
}

</mosaic_0001>

<llo_original>
// kernel: tpu_custom_call.1
$region0: #{tpu_custom_call.1}
  #allocation0 [shape = 'u32[]', space=smem, size = 0x4, offset = 0x4, fixed_abs, tag = 'smem constant byte address 0x4 - core index']
  #allocation1 [shape = 'u32[72,128]{1,0:T(1,128)}', space=vmem, size = 0x9000, scoped, tag = 'internal scratch']
  %s0 = inlined_call_operand.hbm [shape: f32[16,64], index: 0, kind: input, shape index: {}]
  %s1 = inlined_call_operand.vmem [shape: f32[2,1,64], index: 1, kind: input, shape index: {}]
  %s2 = inlined_call_operand.hbm [shape: f32[2,1,64], index: 2, kind: input, shape index: {}]
  %s3 = inlined_call_operand.vmem [shape: f32[2,64,192], index: 3, kind: input, shape index: {}]
  %s4 = inlined_call_operand.hbm [shape: f32[2,1,192], index: 4, kind: input, shape index: {}]
  %s5 = inlined_call_operand.vmem [shape: f32[2,64,64], index: 5, kind: input, shape index: {}]
  %s6 = inlined_call_operand.vmem [shape: f32[2,1,64], index: 6, kind: input, shape index: {}]
  %s7 = inlined_call_operand.hbm [shape: f32[2,1,64], index: 7, kind: input, shape index: {}]
  %s8 = inlined_call_operand.hbm [shape: f32[2,1,64], index: 8, kind: input, shape index: {}]
  %s9 = inlined_call_operand.hbm [shape: f32[2,64,128], index: 9, kind: input, shape index: {}]
  %s10 = inlined_call_operand.vmem [shape: f32[2,1,128], index: 10, kind: input, shape index: {}]
  %s11 = inlined_call_operand.vmem [shape: f32[2,128,64], index: 11, kind: input, shape index: {}]
  %s12 = inlined_call_operand.vmem [shape: f32[2,1,64], index: 12, kind: input, shape index: {}]
  %s13 = inlined_call_operand.vmem [shape: f32[1,64], index: 13, kind: input, shape index: {}]
  %s14 = inlined_call_operand.hbm [shape: f32[1,64], index: 14, kind: input, shape index: {}]
  %s15 = inlined_call_operand.hbm [shape: f32[64,128], index: 15, kind: input, shape index: {}]
  %s16 = inlined_call_operand.vmem [shape: f32[1,128], index: 16, kind: input, shape index: {}]
  %s17 = inlined_call_operand.hbm [shape: f32[16,128], index: 17, kind: output, shape index: {}]
  %s18 = sld [smem:[#allocation0]]
  $region110: #{tpu_custom_call.1} parent=0
    _
  %s20 = ssub.s32 1, %s18
  %s21 = scalar_select 0, %s20, %s18
  $region1: #{tpu_custom_call.1} parent=0
    #allocation2 [shape = 'u8[8192]{0}', space=vmem, size = 0x2000, scoped, tag = 'input window, operand 0, single buffered']
    #allocation3 [shape = 's32[1]{0}', space=sflag, size = 0x4, scoped, tag = 'scoped memory for tpu_custom_call.1']
    #allocation4 [shape = 's32[1]{0}', space=sflag, size = 0x4, scoped, tag = 'scoped memory for tpu_custom_call.1']
    #allocation5 [shape = 'u8[1024]{0}', space=vmem, size = 0x400, scoped, tag = 'input window, operand 2, single buffered']
    #allocation6 [shape = 's32[1]{0}', space=sflag, size = 0x4, scoped, tag = 'scoped memory for tpu_custom_call.1']
    #allocation7 [shape = 'u8[2048]{0}', space=vmem, size = 0x800, scoped, tag = 'input window, operand 4, single buffered']
    #allocation8 [shape = 'u8[1024]{0}', space=vmem, size = 0x400, scoped, tag = 'input window, operand 7, single buffered']
    #allocation9 [shape = 's32[1]{0}', space=sflag, size = 0x4, scoped, tag = 'scoped memory for tpu_custom_call.1']
    #allocation10 [shape = 'u8[1024]{0}', space=vmem, size = 0x400, scoped, tag = 'input window, operand 8, single buffered']
    #allocation11 [shape = 'u8[65536]{0}', space=vmem, size = 0x10000, scoped, tag = 'input window, operand 9, single buffered']
    #allocation12 [shape = 's32[1]{0}', space=sflag, size = 0x4, scoped, tag = 'scoped memory for tpu_custom_call.1']
    #allocation13 [shape = 'u8[512]{0}', space=vmem, size = 0x400, scoped, tag = 'input window, operand 14, single buffered']
    #allocation14 [shape = 'u8[32768]{0}', space=vmem, size = 0x8000, scoped, tag = 'input window, operand 15, single buffered']
    #allocation15 [shape = 's32[1]{0}', space=sflag, size = 0x4, scoped, tag = 'scoped memory for tpu_custom_call.1']
    #allocation16 [shape = 'u8[8192]{0}', space=vmem, size = 0x2000, scoped, tag = 'output window, operand 0, single buffered']
    %22 = vsyncpa [#allocation3], 0
    %23 = vsyncpa [#allocation6], 0
    %24 = vsyncpa [#allocation9], 0
    %25 = vsyncpa [#allocation12], 0
    %26 = vsyncpa [#allocation15], 0
    %27 = vsyncpa [#allocation4], 0
    // Predicated region
    $region2: #{tpu_custom_call.1} parent=1 // pred_check
      _
    $region3: #{tpu_custom_call.1} parent=1 // pred_check_branch
      %29 = sbr.rel (0) target = $region5
    $region4: #{tpu_custom_call.1} parent=1 // pred_region
      %31 = vsyncadd [#allocation3], 0
      %s32 = sshll.u32 %s0, 4
      %s33 = int_to_ptr.hbm [resolvable:$true] %s32
      %s34 = sshll.u32 [#allocation2], 4
      %s35 = int_to_ptr.vmem [resolvable:$true] %s34
      %40 = dma.hbm_to_vmem [thread:$0]  %s33, 256, %s35, [#allocation3], 128, 128, 8
    $region5: #{tpu_custom_call.1} parent=1 // pred_fallthru
      _
    // Predicated region
    $region6: #{tpu_custom_call.1} parent=1 // pred_check
      _
    $region7: #{tpu_custom_call.1} parent=1 // pred_check_branch
      %42 = sbr.rel (0) target = $region9
    $region8: #{tpu_custom_call.1} parent=1 // pred_region
      _
    $region9: #{tpu_custom_call.1} parent=1 // pred_fallthru
      _
    // Predicated region
    $region10: #{tpu_custom_call.1} parent=1 // pred_check
      _
    $region11: #{tpu_custom_call.1} parent=1 // pred_check_branch
      %44 = sbr.rel (0) target = $region13
    $region12: #{tpu_custom_call.1} parent=1 // pred_region
      %46 = vsyncadd [#allocation6], 0
      %s47 = sshll.u32 %s2, 4
      %s48 = int_to_ptr.hbm [resolvable:$true] %s47
      %s49 = sshll.u32 [#allocation5], 4
      %s50 = int_to_ptr.vmem [resolvable:$true] %s49
      %55 = dma.hbm_to_vmem [thread:$0]  %s48, 32, %s50, [#allocation6], 16, 16, 1
    $region13: #{tpu_custom_call.1} parent=1 // pred_fallthru
      _
    // Predicated region
    $region14: #{tpu_custom_call.1} parent=1 // pred_check
      _
    $region15: #{tpu_custom_call.1} parent=1 // pred_check_branch
      %57 = sbr.rel (0) target = $region17
    $region16: #{tpu_custom_call.1} parent=1 // pred_region
      _
    $region17: #{tpu_custom_call.1} parent=1 // pred_fallthru
      _
    // Predicated region
    $region18: #{tpu_custom_call.1} parent=1 // pred_check
      _
    $region19: #{tpu_custom_call.1} parent=1 // pred_check_branch
      %59 = sbr.rel (0) target = $region21
    $region20: #{tpu_custom_call.1} parent=1 // pred_region
      %61 = vsyncadd [#allocation6], 0
      %s62 = sshll.u32 %s4, 4
      %s63 = int_to_ptr.hbm [resolvable:$true] %s62
      %s64 = sshll.u32 [#allocation7], 4
      %s65 = int_to_ptr.vmem [resolvable:$true] %s64
      %70 = dma.hbm_to_vmem [thread:$0]  %s63, 64, %s65, [#allocation6], 32, 32, 2
    $region21: #{tpu_custom_call.1} parent=1 // pred_fallthru
      _
    // Predicated region
    $region22: #{tpu_custom_call.1} parent=1 // pred_check
      _
    $region23: #{tpu_custom_call.1} parent=1 // pred_check_branch
      %72 = sbr.rel (0) target = $region25
    $region24: #{tpu_custom_call.1} parent=1 // pred_region
      _
    $region25: #{tpu_custom_call.1} parent=1 // pred_fallthru
      _
    // Predicated region
    $region26: #{tpu_custom_call.1} parent=1 // pred_check
      _
    $region27: #{tpu_custom_call.1} parent=1 // pred_check_branch
      %74 = sbr.rel (0) target = $region29
    $region28: #{tpu_custom_call.1} parent=1 // pred_region
      _
    $region29: #{tpu_custom_call.1} parent=1 // pred_fallthru
      _
    // Predicated region
    $region30: #{tpu_custom_call.1} parent=1 // pred_check
      _
    $region31: #{tpu_custom_call.1} parent=1 // pred_check_branch
      %76 = sbr.rel (0) target = $region33
    $region32: #{tpu_custom_call.1} parent=1 // pred_region
      %78 = vsyncadd [#allocation9], 0
      %s79 = sshll.u32 %s7, 4
      %s80 = int_to_ptr.hbm [resolvable:$true] %s79
      %s81 = sshll.u32 [#allocation8], 4
      %s82 = int_to_ptr.vmem [resolvable:$true] %s81
      %87 = dma.hbm_to_vmem [thread:$0]  %s80, 32, %s82, [#allocation9], 16, 16, 1
    $region33: #{tpu_custom_call.1} parent=1 // pred_fallthru
      _
    // Predicated region
    $region34: #{tpu_custom_call.1} parent=1 // pred_check
      _
    $region35: #{tpu_custom_call.1} parent=1 // pred_check_branch
      %89 = sbr.rel (0) target = $region37
    $region36: #{tpu_custom_call.1} parent=1 // pred_region
      %91 = vsyncadd [#allocation9], 0
      %s92 = sshll.u32 %s8, 4
      %s93 = int_to_ptr.hbm [resolvable:$true] %s92
      %s94 = sshll.u32 [#allocation10], 4
      %s95 = int_to_ptr.vmem [resolvable:$true] %s94
      %100 = dma.hbm_to_vmem [thread:$0]  %s93, 32, %s95, [#allocation9], 16, 16, 1
    $region37: #{tpu_custom_call.1} parent=1 // pred_fallthru
      _
    // Predicated region
    $region38: #{tpu_custom_call.1} parent=1 // pred_check
      _
    $region39: #{tpu_custom_call.1} parent=1 // pred_check_branch
      %102 = sbr.rel (0) target = $region41
    $region40: #{tpu_custom_call.1} parent=1 // pred_region
      %104 = vsyncadd [#allocation12], 0
      %s105 = sshll.u32 %s9, 4
      %s106 = int_to_ptr.hbm [resolvable:$true] %s105
      %s107 = sshll.u32 [#allocation11], 4
      %s108 = int_to_ptr.vmem [resolvable:$true] %s107
      %113 = dma.hbm_to_vmem [thread:$0]  %s106, 2048, %s108, [#allocation12], 128, 128, 8
    $region41: #{tpu_custom_call.1} parent=1 // pred_fallthru
      _
    // Predicated region
    $region42: #{tpu_custom_call.1} parent=1 // pred_check
      _
    $region43: #{tpu_custom_call.1} parent=1 // pred_check_branch
      %115 = sbr.rel (0) target = $region45
    $region44: #{tpu_custom_call.1} parent=1 // pred_region
      _
    $region45: #{tpu_custom_call.1} parent=1 // pred_fallthru
      _
    // Predicated region
    $region46: #{tpu_custom_call.1} parent=1 // pred_check
      _
    $region47: #{tpu_custom_call.1} parent=1 // pred_check_branch
      %117 = sbr.rel (0) target = $region49
    $region48: #{tpu_custom_call.1} parent=1 // pred_region
      _
    $region49: #{tpu_custom_call.1} parent=1 // pred_fallthru
      _
    // Predicated region
    $region50: #{tpu_custom_call.1} parent=1 // pred_check
      _
    $region51: #{tpu_custom_call.1} parent=1 // pred_check_branch
      %119 = sbr.rel (0) target = $region53
    $region52: #{tpu_custom_call.1} parent=1 // pred_region
      _
    $region53: #{tpu_custom_call.1} parent=1 // pred_fallthru
      _
    // Predicated region
    $region54: #{tpu_custom_call.1} parent=1 // pred_check
      _
    $region55: #{tpu_custom_call.1} parent=1 // pred_check_branch
      %121 = sbr.rel (0) target = $region57
    $region56: #{tpu_custom_call.1} parent=1 // pred_region
      _
    $region57: #{tpu_custom_call.1} parent=1 // pred_fallthru
      _
    // Predicated region
    $region58: #{tpu_custom_call.1} parent=1 // pred_check
      _
    $region59: #{tpu_custom_call.1} parent=1 // pred_check_branch
      %123 = sbr.rel (0) target = $region61
    $region60: #{tpu_custom_call.1} parent=1 // pred_region
      %125 = vsyncadd [#allocation12], 0
      %s127 = sshll.u32 %s14, 4
      %s128 = int_to_ptr.hbm [resolvable:$true] %s127
      %s129 = sshll.u32 [#allocation13], 4
      %s130 = int_to_ptr.vmem [resolvable:$true] %s129
      %132 = dma.hbm_to_vmem [thread:$0]  %s128, 16, %s130, [#allocation12]
    $region61: #{tpu_custom_call.1} parent=1 // pred_fallthru
      _
    // Predicated region
    $region62: #{tpu_custom_call.1} parent=1 // pred_check
      _
    $region63: #{tpu_custom_call.1} parent=1 // pred_check_branch
      %134 = sbr.rel (0) target = $region65
    $region64: #{tpu_custom_call.1} parent=1 // pred_region
      %136 = vsyncadd [#allocation15], 0
      %s137 = sshll.u32 %s15, 4
      %s138 = int_to_ptr.hbm [resolvable:$true] %s137
      %s139 = sshll.u32 [#allocation14], 4
      %s140 = int_to_ptr.vmem [resolvable:$true] %s139
      %145 = dma.hbm_to_vmem [thread:$0]  %s138, 1024, %s140, [#allocation15], 128, 128, 8
    $region65: #{tpu_custom_call.1} parent=1 // pred_fallthru
      _
    // Predicated region
    $region66: #{tpu_custom_call.1} parent=1 // pred_check
      _
    $region67: #{tpu_custom_call.1} parent=1 // pred_check_branch
      %147 = sbr.rel (0) target = $region69
    $region68: #{tpu_custom_call.1} parent=1 // pred_region
      _
    $region69: #{tpu_custom_call.1} parent=1 // pred_fallthru
      _
    // Predicated region
    $region70: #{tpu_custom_call.1} parent=1 // pred_check
      _
    $region71: #{tpu_custom_call.1} parent=1 // pred_check_branch
      %149 = sbr.rel (0) target = $region73
    $region72: #{tpu_custom_call.1} parent=1 // pred_region
      %151 = dma.done [#allocation3], 256
    $region73: #{tpu_custom_call.1} parent=1 // pred_fallthru
      _
    // Predicated region
    $region74: #{tpu_custom_call.1} parent=1 // pred_check
      _
    $region75: #{tpu_custom_call.1} parent=1 // pred_check_branch
      %153 = sbr.rel (0) target = $region77
    $region76: #{tpu_custom_call.1} parent=1 // pred_region
      %155 = dma.done [#allocation6], 32
    $region77: #{tpu_custom_call.1} parent=1 // pred_fallthru
      _
    // Predicated region
    $region78: #{tpu_custom_call.1} parent=1 // pred_check
      _
    $region79: #{tpu_custom_call.1} parent=1 // pred_check_branch
      %157 = sbr.rel (0) target = $region81
    $region80: #{tpu_custom_call.1} parent=1 // pred_region
      %159 = dma.done [#allocation6], 64
    $region81: #{tpu_custom_call.1} parent=1 // pred_fallthru
      _
    // Predicated region
    $region82: #{tpu_custom_call.1} parent=1 // pred_check
      _
    $region83: #{tpu_custom_call.1} parent=1 // pred_check_branch
      %161 = sbr.rel (0) target = $region85
    $region84: #{tpu_custom_call.1} parent=1 // pred_region
      %163 = dma.done [#allocation9], 32
    $region85: #{tpu_custom_call.1} parent=1 // pred_fallthru
      _
    // Predicated region
    $region86: #{tpu_custom_call.1} parent=1 // pred_check
      _
    $region87: #{tpu_custom_call.1} parent=1 // pred_check_branch
      %165 = sbr.rel (0) target = $region89
    $region88: #{tpu_custom_call.1} parent=1 // pred_region
      %167 = dma.done [#allocation9], 32
    $region89: #{tpu_custom_call.1} parent=1 // pred_fallthru
      _
    // Predicated region
    $region90: #{tpu_custom_call.1} parent=1 // pred_check
      _
    $region91: #{tpu_custom_call.1} parent=1 // pred_check_branch
      %169 = sbr.rel (0) target = $region93
    $region92: #{tpu_custom_call.1} parent=1 // pred_region
      %171 = dma.done [#allocation12], 2048
    $region93: #{tpu_custom_call.1} parent=1 // pred_fallthru
      _
    // Predicated region
    $region94: #{tpu_custom_call.1} parent=1 // pred_check
      _
    $region95: #{tpu_custom_call.1} parent=1 // pred_check_branch
      %173 = sbr.rel (0) target = $region97
    $region96: #{tpu_custom_call.1} parent=1 // pred_region
      %175 = dma.done [#allocation12], 16
    $region97: #{tpu_custom_call.1} parent=1 // pred_fallthru
      _
    // Predicated region
    $region98: #{tpu_custom_call.1} parent=1 // pred_check
      _
    $region99: #{tpu_custom_call.1} parent=1 // pred_check_branch
      %177 = sbr.rel (0) target = $region101
    $region100: #{tpu_custom_call.1} parent=1 // pred_region
      %179 = dma.done [#allocation15], 1024
    $region101: #{tpu_custom_call.1} parent=1 // pred_fallthru
      _
    %v180 = vld [vmem:[#allocation2] sm:$0xff]
    %v181 = vld [vmem:[#allocation2 + $0x8] sm:$0xff]
    %v182 = vlaneseq
    %v183 = vshrl.u32 %v182, 7
    %v184 = vlaneseq
    %v185 = vand.u32 %v184, 127
    %vm186 = vcmp.ge.s32.totalorder %v183, %v185
    %v187 = vld [vmem:[%s1] sm:$0x1]
    %v188 = vld [vmem:[#allocation5] sm:$0x1]
    %vm189 = vcmask 523264
    %v190 = vsel %vm189, %v180, 0.0
    %191 = vadd.xlane.f32.xlu0 %v190
    %v192 = vpop.xlane.xlu0 %191
    %v193 = vsel %vm189, %v181, 0.0
    %194 = vadd.xlane.f32.xlu0 %v193
    %v195 = vpop.xlane.xlu0 %194
    %v196 = vrcp.pop 64.0
    %v197 = vmul.f32 64.0, %v196
    %v198 = vsub.f32 1.0, %v197
    %v199 = vmul.f32 %v196, %v198
    %v200 = vadd.f32 %v196, %v199
    %vm201 = vweird.f32 %v196
    %v202 = vsel %vm201, %v196, %v200
    %v203 = vmul.f32 %v192, %v202
    %v204 = vmul.f32 %v195, %v202
    %v205 = vsub.f32 %v180, %v203
    %v206 = vsub.f32 %v181, %v204
    %v207 = vmul.f32 %v205, %v205
    %v208 = vmul.f32 %v206, %v206
    %v209 = vsel %vm189, %v207, 0.0
    %210 = vadd.xlane.f32.xlu0 %v209
    %v211 = vpop.xlane.xlu0 %210
    %v212 = vsel %vm189, %v208, 0.0
    %213 = vadd.xlane.f32.xlu0 %v212
    %v214 = vpop.xlane.xlu0 %213
    %v215 = vmul.f32 %v211, %v202
    %v216 = vmul.f32 %v214, %v202
    %v217 = vadd.f32 %v215, 1e-05
    %v218 = vadd.f32 %v216, 1e-05
    %v219 = vrsqrt.pop %v217
    %v220 = vmul.f32 %v219, %v217
    %v221 = vmul.f32 %v220, %v219
    %v222 = vmul.f32 0.5, %v221
    %v223 = vsub.f32 1.5, %v222
    %v224 = vmul.f32 %v219, %v223
    %vm225 = vweird.f32 %v217
    %vm226 = vweird.f32 %v219
    %vm227 = vmor %vm225, %vm226
    %v228 = vsel %vm227, %v219, %v224
    %v229 = vrsqrt.pop %v218
    %v230 = vmul.f32 %v229, %v218
    %v231 = vmul.f32 %v230, %v229
    %v232 = vmul.f32 0.5, %v231
    %v233 = vsub.f32 1.5, %v232
    %v234 = vmul.f32 %v229, %v233
    %vm235 = vweird.f32 %v218
    %vm236 = vweird.f32 %v229
    %vm237 = vmor %vm235, %vm236
    %v238 = vsel %vm237, %v229, %v234
    %v239 = vmul.f32 %v205, %v228
    %v240 = vmul.f32 %v206, %v238
    %v242 = vperm.slane %v187, 0
    %v244 = vmul.f32 %v239, %v242
    %v245 = vmul.f32 %v240, %v242
    %v247 = vperm.slane %v188, 0
    %v249 = vadd.f32 %v244, %v247
    %v250 = vadd.f32 %v245, %v247
    %v251 = vld [vmem:[%s3] sm:$0xff]
    %v252 = vld [vmem:[%s3 + $0x8] sm:$0xff]
    %v253 = vld [vmem:[%s3 + $0x10] sm:$0xff]
    %v254 = vld [vmem:[%s3 + $0x18] sm:$0xff]
    %v255 = vld [vmem:[%s3 + $0x20] sm:$0xff]
    %v256 = vld [vmem:[%s3 + $0x28] sm:$0xff]
    %v257 = vld [vmem:[%s3 + $0x30] sm:$0xff]
    %v258 = vld [vmem:[%s3 + $0x38] sm:$0xff]
    %v259 = vld [vmem:[%s3 + $0x40] sm:$0xff]
    %v260 = vld [vmem:[%s3 + $0x48] sm:$0xff]
    %v261 = vld [vmem:[%s3 + $0x50] sm:$0xff]
    %v262 = vld [vmem:[%s3 + $0x58] sm:$0xff]
    %v263 = vld [vmem:[%s3 + $0x60] sm:$0xff]
    %v264 = vld [vmem:[%s3 + $0x68] sm:$0xff]
    %v265 = vld [vmem:[%s3 + $0x70] sm:$0xff]
    %v266 = vld [vmem:[%s3 + $0x78] sm:$0xff]
    %v267 = vld [vmem:[#allocation7] sm:$0x3]
    %v269 = vperm.slane %v267, 0
    %v270 = vperm.slane %v267, 1
    %v274 = vsel %vm189, %v249, 0
    %v277 = vsel %vm189, %v250, 0
    %279 = vmatpush.msra.mxu0 0.0
    %280 = vmatpush.msra.mxu0 0.0
    %281 = vmatpush.msra.mxu0 0.0
    %282 = vmatpush.msra.mxu0 0.0
    %283 = vmatpush.msra.mxu0 0.0
    %284 = vmatpush.msra.mxu0 0.0
    %285 = vmatpush.msra.mxu0 0.0
    %286 = vmatpush.msra.mxu0 0.0
    %287 = vmatpush.msra.mxu0 %v265
    %288 = vmatpush.msra.mxu0 %v263
    %289 = vmatpush.msra.mxu0 %v261
    %290 = vmatpush.msra.mxu0 %v259
    %291 = vmatpush.msra.mxu0 %v257
    %292 = vmatpush.msra.mxu0 %v255
    %293 = vmatpush.msra.mxu0 %v253
    %294 = vmatpush.msra.mxu0 %v251
    %295 = vmatmul.f32.gmra.mxu0 %v274
    %v296 = vpop.f32.mrf.mxu0
    %v297 = vadd.f32 %v269, %v296
    %298 = vmatmul.f32.gmra.mxu0 %v277
    %v299 = vpop.f32.mrf.mxu0
    %v300 = vadd.f32 %v269, %v299
    %301 = vdwg.mxu0
    %302 = vmatpush.msra.mxu0 0.0
    %303 = vmatpush.msra.mxu0 0.0
    %304 = vmatpush.msra.mxu0 0.0
    %305 = vmatpush.msra.mxu0 0.0
    %306 = vmatpush.msra.mxu0 0.0
    %307 = vmatpush.msra.mxu0 0.0
    %308 = vmatpush.msra.mxu0 0.0
    %309 = vmatpush.msra.mxu0 0.0
    %310 = vmatpush.msra.mxu0 %v266
    %311 = vmatpush.msra.mxu0 %v264
    %312 = vmatpush.msra.mxu0 %v262
    %313 = vmatpush.msra.mxu0 %v260
    %314 = vmatpush.msra.mxu0 %v258
    %315 = vmatpush.msra.mxu0 %v256
    %316 = vmatpush.msra.mxu0 %v254
    %317 = vmatpush.msra.mxu0 %v252
    %318 = vmatmul.f32.gmra.mxu0 %v274
    %v319 = vpop.f32.mrf.mxu0
    %v320 = vadd.f32 %v270, %v319
    %321 = vmatmul.f32.gmra.mxu0 %v277
    %v322 = vpop.f32.mrf.mxu0
    %v323 = vadd.f32 %v270, %v322
    %324 = vdwg.mxu0
    %326 = vrot.lane.b32.xlu0 %v297, 64
    %v327 = vpop.permute.xlu0 %326
    %vm328 = vcmask 130048
    %v329 = vsel %vm328, %v297, 0
    %v331 = vsel %vm328, %v327, 0
    %333 = vmatpush.xpose.msra.mxu0 0.0
    %334 = vmatpush.xpose.msra.mxu0 0.0
    %335 = vmatpush.xpose.msra.mxu0 0.0
    %336 = vmatpush.xpose.msra.mxu0 0.0
    %337 = vmatpush.xpose.msra.mxu0 0.0
    %338 = vmatpush.xpose.msra.mxu0 0.0
    %339 = vmatpush.xpose.msra.mxu0 0.0
    %340 = vmatpush.xpose.msra.mxu0 0.0
    %341 = vmatpush.xpose.msra.mxu0 0.0
    %342 = vmatpush.xpose.msra.mxu0 0.0
    %343 = vmatpush.xpose.msra.mxu0 0.0
    %344 = vmatpush.xpose.msra.mxu0 0.0
    %345 = vmatpush.xpose.msra.mxu0 0.0
    %346 = vmatpush.xpose.msra.mxu0 0.0
    %347 = vmatpush.xpose.msra.mxu0 0.0
    %348 = vmatpush.xpose.msra.mxu0 %v331
    %349 = vmatmul.f32.gmra.mxu0 %v329
    %v350 = vpop.f32.mrf.mxu0
    %v351 = vadd.f32 0.0, %v350
    %352 = vdwg.mxu0
    %v353 = vsel %vm186, %v351, -100000.0
    %vm354 = vcmask 64512
    %v355 = vsel %vm354, %v353, -inf
    %356 = vmax.xlane.f32.xlu0 %v355
    %v357 = vpop.xlane.xlu0 %356
    %v358 = vsub.f32 %v353, %v357
    %v359 = vmul.f32 %v358, 1.442695
    %v360 = vpow.pop %v359
    %v361 = vsel %vm354, %v360, 0.0
    %362 = vadd.xlane.f32.xlu0 %v361
    %v363 = vpop.xlane.xlu0 %362
    %v364 = vrcp.pop %v363
    %v365 = vmul.f32 %v360, %v364
    %v367 = vsel %vm354, %v365, 0
    %369 = vmatpush.msra.mxu0 0.0
    %370 = vmatpush.msra.mxu0 0.0
    %371 = vmatpush.msra.mxu0 0.0
    %372 = vmatpush.msra.mxu0 0.0
    %373 = vmatpush.msra.mxu0 0.0
    %374 = vmatpush.msra.mxu0 0.0
    %375 = vmatpush.msra.mxu0 0.0
    %376 = vmatpush.msra.mxu0 0.0
    %377 = vmatpush.msra.mxu0 0.0
    %378 = vmatpush.msra.mxu0 0.0
    %379 = vmatpush.msra.mxu0 0.0
    %380 = vmatpush.msra.mxu0 0.0
    %381 = vmatpush.msra.mxu0 0.0
    %382 = vmatpush.msra.mxu0 0.0
    %383 = vmatpush.msra.mxu0 0.0
    %384 = vmatpush.msra.mxu0 %v320
    %385 = vmatmul.f32.gmra.mxu0 %v367
    %v386 = vpop.f32.mrf.mxu0
    %v387 = vadd.f32 0.0, %v386
    %388 = vdwg.mxu0
    %389 = vrot.lane.b32.xlu0 %v297, 112
    %v390 = vpop.permute.xlu0 %389
    %391 = vrot.lane.b32.xlu0 %v297, 48
    %v392 = vpop.permute.xlu0 %391
    %v393 = vsel %vm328, %v390, 0
    %v395 = vsel %vm328, %v392, 0
    %397 = vmatpush.xpose.msra.mxu0 0.0
    %398 = vmatpush.xpose.msra.mxu0 0.0
    %399 = vmatpush.xpose.msra.mxu0 0.0
    %400 = vmatpush.xpose.msra.mxu0 0.0
    %401 = vmatpush.xpose.msra.mxu0 0.0
    %402 = vmatpush.xpose.msra.mxu0 0.0
    %403 = vmatpush.xpose.msra.mxu0 0.0
    %404 = vmatpush.xpose.msra.mxu0 0.0
    %405 = vmatpush.xpose.msra.mxu0 0.0
    %406 = vmatpush.xpose.msra.mxu0 0.0
    %407 = vmatpush.xpose.msra.mxu0 0.0
    %408 = vmatpush.xpose.msra.mxu0 0.0
    %409 = vmatpush.xpose.msra.mxu0 0.0
    %410 = vmatpush.xpose.msra.mxu0 0.0
    %411 = vmatpush.xpose.msra.mxu0 0.0
    %412 = vmatpush.xpose.msra.mxu0 %v395
    %413 = vmatmul.f32.gmra.mxu0 %v393
    %v414 = vpop.f32.mrf.mxu0
    %v415 = vadd.f32 0.0, %v414
    %416 = vdwg.mxu0
    %v417 = vsel %vm186, %v415, -100000.0
    %v418 = vsel %vm354, %v417, -inf
    %419 = vmax.xlane.f32.xlu0 %v418
    %v420 = vpop.xlane.xlu0 %419
    %v421 = vsub.f32 %v417, %v420
    %v422 = vmul.f32 %v421, 1.442695
    %v423 = vpow.pop %v422
    %v424 = vsel %vm354, %v423, 0.0
    %425 = vadd.xlane.f32.xlu0 %v424
    %v426 = vpop.xlane.xlu0 %425
    %v427 = vrcp.pop %v426
    %v428 = vmul.f32 %v423, %v427
    %430 = vrot.lane.b32.xlu0 %v320, 112
    %v431 = vpop.permute.xlu0 %430
    %v434 = vsel %vm354, %v428, 0
    %436 = vmatpush.msra.mxu0 0.0
    %437 = vmatpush.msra.mxu0 0.0
    %438 = vmatpush.msra.mxu0 0.0
    %439 = vmatpush.msra.mxu0 0.0
    %440 = vmatpush.msra.mxu0 0.0
    %441 = vmatpush.msra.mxu0 0.0
    %442 = vmatpush.msra.mxu0 0.0
    %443 = vmatpush.msra.mxu0 0.0
    %444 = vmatpush.msra.mxu0 0.0
    %445 = vmatpush.msra.mxu0 0.0
    %446 = vmatpush.msra.mxu0 0.0
    %447 = vmatpush.msra.mxu0 0.0
    %448 = vmatpush.msra.mxu0 0.0
    %449 = vmatpush.msra.mxu0 0.0
    %450 = vmatpush.msra.mxu0 0.0
    %451 = vmatpush.msra.mxu0 %v431
    %452 = vmatmul.f32.gmra.mxu0 %v434
    %v453 = vpop.f32.mrf.mxu0
    %v454 = vadd.f32 0.0, %v453
    %455 = vdwg.mxu0
    %456 = vrot.lane.b32.xlu0 %v297, 96
    %v457 = vpop.permute.xlu0 %456
    %458 = vrot.lane.b32.xlu0 %v297, 32
    %v459 = vpop.permute.xlu0 %458
    %v460 = vsel %vm328, %v457, 0
    %v462 = vsel %vm328, %v459, 0
    %464 = vmatpush.xpose.msra.mxu0 0.0
    %465 = vmatpush.xpose.msra.mxu0 0.0
    %466 = vmatpush.xpose.msra.mxu0 0.0
    %467 = vmatpush.xpose.msra.mxu0 0.0
    %468 = vmatpush.xpose.msra.mxu0 0.0
    %469 = vmatpush.xpose.msra.mxu0 0.0
    %470 = vmatpush.xpose.msra.mxu0 0.0
    %471 = vmatpush.xpose.msra.mxu0 0.0
    %472 = vmatpush.xpose.msra.mxu0 0.0
    %473 = vmatpush.xpose.msra.mxu0 0.0
    %474 = vmatpush.xpose.msra.mxu0 0.0
    %475 = vmatpush.xpose.msra.mxu0 0.0
    %476 = vmatpush.xpose.msra.mxu0 0.0
    %477 = vmatpush.xpose.msra.mxu0 0.0
    %478 = vmatpush.xpose.msra.mxu0 0.0
    %479 = vmatpush.xpose.msra.mxu0 %v462
    %480 = vmatmul.f32.gmra.mxu0 %v460
    %v481 = vpop.f32.mrf.mxu0
    %v482 = vadd.f32 0.0, %v481
    %483 = vdwg.mxu0
    %v484 = vsel %vm186, %v482, -100000.0
    %v485 = vsel %vm354, %v484, -inf
    %486 = vmax.xlane.f32.xlu0 %v485
    %v487 = vpop.xlane.xlu0 %486
    %v488 = vsub.f32 %v484, %v487
    %v489 = vmul.f32 %v488, 1.442695
    %v490 = vpow.pop %v489
    %v491 = vsel %vm354, %v490, 0.0
    %492 = vadd.xlane.f32.xlu0 %v491
    %v493 = vpop.xlane.xlu0 %492
    %v494 = vrcp.pop %v493
    %v495 = vmul.f32 %v490, %v494
    %496 = vrot.lane.b32.xlu0 %v320, 96
    %v497 = vpop.permute.xlu0 %496
    %v500 = vsel %vm354, %v495, 0
    %502 = vmatpush.msra.mxu0 0.0
    %503 = vmatpush.msra.mxu0 0.0
    %504 = vmatpush.msra.mxu0 0.0
    %505 = vmatpush.msra.mxu0 0.0
    %506 = vmatpush.msra.mxu0 0.0
    %507 = vmatpush.msra.mxu0 0.0
    %508 = vmatpush.msra.mxu0 0.0
    %509 = vmatpush.msra.mxu0 0.0
    %510 = vmatpush.msra.mxu0 0.0
    %511 = vmatpush.msra.mxu0 0.0
    %512 = vmatpush.msra.mxu0 0.0
    %513 = vmatpush.msra.mxu0 0.0
    %514 = vmatpush.msra.mxu0 0.0
    %515 = vmatpush.msra.mxu0 0.0
    %516 = vmatpush.msra.mxu0 0.0
    %517 = vmatpush.msra.mxu0 %v497
    %518 = vmatmul.f32.gmra.mxu0 %v500
    %v519 = vpop.f32.mrf.mxu0
    %v520 = vadd.f32 0.0, %v519
    %521 = vdwg.mxu0
    %522 = vrot.lane.b32.xlu0 %v297, 80
    %v523 = vpop.permute.xlu0 %522
    %524 = vrot.lane.b32.xlu0 %v297, 16
    %v525 = vpop.permute.xlu0 %524
    %v526 = vsel %vm328, %v523, 0
    %v528 = vsel %vm328, %v525, 0
    %530 = vmatpush.xpose.msra.mxu0 0.0
    %531 = vmatpush.xpose.msra.mxu0 0.0
    %532 = vmatpush.xpose.msra.mxu0 0.0
    %533 = vmatpush.xpose.msra.mxu0 0.0
    %534 = vmatpush.xpose.msra.mxu0 0.0
    %535 = vmatpush.xpose.msra.mxu0 0.0
    %536 = vmatpush.xpose.msra.mxu0 0.0
    %537 = vmatpush.xpose.msra.mxu0 0.0
    %538 = vmatpush.xpose.msra.mxu0 0.0
    %539 = vmatpush.xpose.msra.mxu0 0.0
    %540 = vmatpush.xpose.msra.mxu0 0.0
    %541 = vmatpush.xpose.msra.mxu0 0.0
    %542 = vmatpush.xpose.msra.mxu0 0.0
    %543 = vmatpush.xpose.msra.mxu0 0.0
    %544 = vmatpush.xpose.msra.mxu0 0.0
    %545 = vmatpush.xpose.msra.mxu0 %v528
    %546 = vmatmul.f32.gmra.mxu0 %v526
    %v547 = vpop.f32.mrf.mxu0
    %v548 = vadd.f32 0.0, %v547
    %549 = vdwg.mxu0
    %v550 = vsel %vm186, %v548, -100000.0
    %v551 = vsel %vm354, %v550, -inf
    %552 = vmax.xlane.f32.xlu0 %v551
    %v553 = vpop.xlane.xlu0 %552
    %v554 = vsub.f32 %v550, %v553
    %v555 = vmul.f32 %v554, 1.442695
    %v556 = vpow.pop %v555
    %v557 = vsel %vm354, %v556, 0.0
    %558 = vadd.xlane.f32.xlu0 %v557
    %v559 = vpop.xlane.xlu0 %558
    %v560 = vrcp.pop %v559
    %v561 = vmul.f32 %v556, %v560
    %562 = vrot.lane.b32.xlu0 %v320, 80
    %v563 = vpop.permute.xlu0 %562
    %v566 = vsel %vm354, %v561, 0
    %568 = vmatpush.msra.mxu0 0.0
    %569 = vmatpush.msra.mxu0 0.0
    %570 = vmatpush.msra.mxu0 0.0
    %571 = vmatpush.msra.mxu0 0.0
    %572 = vmatpush.msra.mxu0 0.0
    %573 = vmatpush.msra.mxu0 0.0
    %574 = vmatpush.msra.mxu0 0.0
    %575 = vmatpush.msra.mxu0 0.0
    %576 = vmatpush.msra.mxu0 0.0
    %577 = vmatpush.msra.mxu0 0.0
    %578 = vmatpush.msra.mxu0 0.0
    %579 = vmatpush.msra.mxu0 0.0
    %580 = vmatpush.msra.mxu0 0.0
    %581 = vmatpush.msra.mxu0 0.0
    %582 = vmatpush.msra.mxu0 0.0
    %583 = vmatpush.msra.mxu0 %v563
    %584 = vmatmul.f32.gmra.mxu0 %v566
    %v585 = vpop.f32.mrf.mxu0
    %v586 = vadd.f32 0.0, %v585
    %587 = vdwg.mxu0
    %589 = vrot.lane.b32.xlu0 %v454, 16
    %v590 = vpop.permute.xlu0 %589
    %593 = vrot.lane.b32.xlu0 %v520, 32
    %v594 = vpop.permute.xlu0 %593
    %597 = vrot.lane.b32.xlu0 %v586, 48
    %v598 = vpop.permute.xlu0 %597
    %v600 = vsel %vm328, %v387, %v590
    %vm601 = vcmask 261120
    %v602 = vsel %vm601, %v600, %v594
    %vm603 = vcmask 392192
    %v604 = vsel %vm603, %v602, %v598
    %606 = vrot.lane.b32.xlu0 %v300, 64
    %v607 = vpop.permute.xlu0 %606
    %v608 = vsel %vm328, %v300, 0
    %v610 = vsel %vm328, %v607, 0
    %612 = vmatpush.xpose.msra.mxu0 0.0
    %613 = vmatpush.xpose.msra.mxu0 0.0
    %614 = vmatpush.xpose.msra.mxu0 0.0
    %615 = vmatpush.xpose.msra.mxu0 0.0
    %616 = vmatpush.xpose.msra.mxu0 0.0
    %617 = vmatpush.xpose.msra.mxu0 0.0
    %618 = vmatpush.xpose.msra.mxu0 0.0
    %619 = vmatpush.xpose.msra.mxu0 0.0
    %620 = vmatpush.xpose.msra.mxu0 0.0
    %621 = vmatpush.xpose.msra.mxu0 0.0
    %622 = vmatpush.xpose.msra.mxu0 0.0
    %623 = vmatpush.xpose.msra.mxu0 0.0
    %624 = vmatpush.xpose.msra.mxu0 0.0
    %625 = vmatpush.xpose.msra.mxu0 0.0
    %626 = vmatpush.xpose.msra.mxu0 0.0
    %627 = vmatpush.xpose.msra.mxu0 %v610
    %628 = vmatmul.f32.gmra.mxu0 %v608
    %v629 = vpop.f32.mrf.mxu0
    %v630 = vadd.f32 0.0, %v629
    %631 = vdwg.mxu0
    %v632 = vsel %vm186, %v630, -100000.0
    %v633 = vsel %vm354, %v632, -inf
    %634 = vmax.xlane.f32.xlu0 %v633
    %v635 = vpop.xlane.xlu0 %634
    %v636 = vsub.f32 %v632, %v635
    %v637 = vmul.f32 %v636, 1.442695
    %v638 = vpow.pop %v637
    %v639 = vsel %vm354, %v638, 0.0
    %640 = vadd.xlane.f32.xlu0 %v639
    %v641 = vpop.xlane.xlu0 %640
    %v642 = vrcp.pop %v641
    %v643 = vmul.f32 %v638, %v642
    %v645 = vsel %vm354, %v643, 0
    %647 = vmatpush.msra.mxu0 0.0
    %648 = vmatpush.msra.mxu0 0.0
    %649 = vmatpush.msra.mxu0 0.0
    %650 = vmatpush.msra.mxu0 0.0
    %651 = vmatpush.msra.mxu0 0.0
    %652 = vmatpush.msra.mxu0 0.0
    %653 = vmatpush.msra.mxu0 0.0
    %654 = vmatpush.msra.mxu0 0.0
    %655 = vmatpush.msra.mxu0 0.0
    %656 = vmatpush.msra.mxu0 0.0
    %657 = vmatpush.msra.mxu0 0.0
    %658 = vmatpush.msra.mxu0 0.0
    %659 = vmatpush.msra.mxu0 0.0
    %660 = vmatpush.msra.mxu0 0.0
    %661 = vmatpush.msra.mxu0 0.0
    %662 = vmatpush.msra.mxu0 %v323
    %663 = vmatmul.f32.gmra.mxu0 %v645
    %v664 = vpop.f32.mrf.mxu0
    %v665 = vadd.f32 0.0, %v664
    %666 = vdwg.mxu0
    %667 = vrot.lane.b32.xlu0 %v300, 112
    %v668 = vpop.permute.xlu0 %667
    %669 = vrot.lane.b32.xlu0 %v300, 48
    %v670 = vpop.permute.xlu0 %669
    %v671 = vsel %vm328, %v668, 0
    %v673 = vsel %vm328, %v670, 0
    %675 = vmatpush.xpose.msra.mxu0 0.0
    %676 = vmatpush.xpose.msra.mxu0 0.0
    %677 = vmatpush.xpose.msra.mxu0 0.0
    %678 = vmatpush.xpose.msra.mxu0 0.0
    %679 = vmatpush.xpose.msra.mxu0 0.0
    %680 = vmatpush.xpose.msra.mxu0 0.0
    %681 = vmatpush.xpose.msra.mxu0 0.0
    %682 = vmatpush.xpose.msra.mxu0 0.0
    %683 = vmatpush.xpose.msra.mxu0 0.0
    %684 = vmatpush.xpose.msra.mxu0 0.0
    %685 = vmatpush.xpose.msra.mxu0 0.0
    %686 = vmatpush.xpose.msra.mxu0 0.0
    %687 = vmatpush.xpose.msra.mxu0 0.0
    %688 = vmatpush.xpose.msra.mxu0 0.0
    %689 = vmatpush.xpose.msra.mxu0 0.0
    %690 = vmatpush.xpose.msra.mxu0 %v673
    %691 = vmatmul.f32.gmra.mxu0 %v671
    %v692 = vpop.f32.mrf.mxu0
    %v693 = vadd.f32 0.0, %v692
    %694 = vdwg.mxu0
    %v695 = vsel %vm186, %v693, -100000.0
    %v696 = vsel %vm354, %v695, -inf
    %697 = vmax.xlane.f32.xlu0 %v696
    %v698 = vpop.xlane.xlu0 %697
    %v699 = vsub.f32 %v695, %v698
    %v700 = vmul.f32 %v699, 1.442695
    %v701 = vpow.pop %v700
    %v702 = vsel %vm354, %v701, 0.0
    %703 = vadd.xlane.f32.xlu0 %v702
    %v704 = vpop.xlane.xlu0 %703
    %v705 = vrcp.pop %v704
    %v706 = vmul.f32 %v701, %v705
    %708 = vrot.lane.b32.xlu0 %v323, 112
    %v709 = vpop.permute.xlu0 %708
    %v712 = vsel %vm354, %v706, 0
    %714 = vmatpush.msra.mxu0 0.0
    %715 = vmatpush.msra.mxu0 0.0
    %716 = vmatpush.msra.mxu0 0.0
    %717 = vmatpush.msra.mxu0 0.0
    %718 = vmatpush.msra.mxu0 0.0
    %719 = vmatpush.msra.mxu0 0.0
    %720 = vmatpush.msra.mxu0 0.0
    %721 = vmatpush.msra.mxu0 0.0
    %722 = vmatpush.msra.mxu0 0.0
    %723 = vmatpush.msra.mxu0 0.0
    %724 = vmatpush.msra.mxu0 0.0
    %725 = vmatpush.msra.mxu0 0.0
    %726 = vmatpush.msra.mxu0 0.0
    %727 = vmatpush.msra.mxu0 0.0
    %728 = vmatpush.msra.mxu0 0.0
    %729 = vmatpush.msra.mxu0 %v709
    %730 = vmatmul.f32.gmra.mxu0 %v712
    %v731 = vpop.f32.mrf.mxu0
    %v732 = vadd.f32 0.0, %v731
    %733 = vdwg.mxu0
    %734 = vrot.lane.b32.xlu0 %v300, 96
    %v735 = vpop.permute.xlu0 %734
    %736 = vrot.lane.b32.xlu0 %v300, 32
    %v737 = vpop.permute.xlu0 %736
    %v738 = vsel %vm328, %v735, 0
    %v740 = vsel %vm328, %v737, 0
    %742 = vmatpush.xpose.msra.mxu0 0.0
    %743 = vmatpush.xpose.msra.mxu0 0.0
    %744 = vmatpush.xpose.msra.mxu0 0.0
    %745 = vmatpush.xpose.msra.mxu0 0.0
    %746 = vmatpush.xpose.msra.mxu0 0.0
    %747 = vmatpush.xpose.msra.mxu0 0.0
    %748 = vmatpush.xpose.msra.mxu0 0.0
    %749 = vmatpush.xpose.msra.mxu0 0.0
    %750 = vmatpush.xpose.msra.mxu0 0.0
    %751 = vmatpush.xpose.msra.mxu0 0.0
    %752 = vmatpush.xpose.msra.mxu0 0.0
    %753 = vmatpush.xpose.msra.mxu0 0.0
    %754 = vmatpush.xpose.msra.mxu0 0.0
    %755 = vmatpush.xpose.msra.mxu0 0.0
    %756 = vmatpush.xpose.msra.mxu0 0.0
    %757 = vmatpush.xpose.msra.mxu0 %v740
    %758 = vmatmul.f32.gmra.mxu0 %v738
    %v759 = vpop.f32.mrf.mxu0
    %v760 = vadd.f32 0.0, %v759
    %761 = vdwg.mxu0
    %v762 = vsel %vm186, %v760, -100000.0
    %v763 = vsel %vm354, %v762, -inf
    %764 = vmax.xlane.f32.xlu0 %v763
    %v765 = vpop.xlane.xlu0 %764
    %v766 = vsub.f32 %v762, %v765
    %v767 = vmul.f32 %v766, 1.442695
    %v768 = vpow.pop %v767
    %v769 = vsel %vm354, %v768, 0.0
    %770 = vadd.xlane.f32.xlu0 %v769
    %v771 = vpop.xlane.xlu0 %770
    %v772 = vrcp.pop %v771
    %v773 = vmul.f32 %v768, %v772
    %774 = vrot.lane.b32.xlu0 %v323, 96
    %v775 = vpop.permute.xlu0 %774
    %v778 = vsel %vm354, %v773, 0
    %780 = vmatpush.msra.mxu0 0.0
    %781 = vmatpush.msra.mxu0 0.0
    %782 = vmatpush.msra.mxu0 0.0
    %783 = vmatpush.msra.mxu0 0.0
    %784 = vmatpush.msra.mxu0 0.0
    %785 = vmatpush.msra.mxu0 0.0
    %786 = vmatpush.msra.mxu0 0.0
    %787 = vmatpush.msra.mxu0 0.0
    %788 = vmatpush.msra.mxu0 0.0
    %789 = vmatpush.msra.mxu0 0.0
    %790 = vmatpush.msra.mxu0 0.0
    %791 = vmatpush.msra.mxu0 0.0
    %792 = vmatpush.msra.mxu0 0.0
    %793 = vmatpush.msra.mxu0 0.0
    %794 = vmatpush.msra.mxu0 0.0
    %795 = vmatpush.msra.mxu0 %v775
    %796 = vmatmul.f32.gmra.mxu0 %v778
    %v797 = vpop.f32.mrf.mxu0
    %v798 = vadd.f32 0.0, %v797
    %799 = vdwg.mxu0
    %800 = vrot.lane.b32.xlu0 %v300, 80
    %v801 = vpop.permute.xlu0 %800
    %802 = vrot.lane.b32.xlu0 %v300, 16
    %v803 = vpop.permute.xlu0 %802
    %v804 = vsel %vm328, %v801, 0
    %v806 = vsel %vm328, %v803, 0
    %808 = vmatpush.xpose.msra.mxu0 0.0
    %809 = vmatpush.xpose.msra.mxu0 0.0
    %810 = vmatpush.xpose.msra.mxu0 0.0
    %811 = vmatpush.xpose.msra.mxu0 0.0
    %812 = vmatpush.xpose.msra.mxu0 0.0
    %813 = vmatpush.xpose.msra.mxu0 0.0
    %814 = vmatpush.xpose.msra.mxu0 0.0
    %815 = vmatpush.xpose.msra.mxu0 0.0
    %816 = vmatpush.xpose.msra.mxu0 0.0
    %817 = vmatpush.xpose.msra.mxu0 0.0
    %818 = vmatpush.xpose.msra.mxu0 0.0
    %819 = vmatpush.xpose.msra.mxu0 0.0
    %820 = vmatpush.xpose.msra.mxu0 0.0
    %821 = vmatpush.xpose.msra.mxu0 0.0
    %822 = vmatpush.xpose.msra.mxu0 0.0
    %823 = vmatpush.xpose.msra.mxu0 %v806
    %824 = vmatmul.f32.gmra.mxu0 %v804
    %v825 = vpop.f32.mrf.mxu0
    %v826 = vadd.f32 0.0, %v825
    %827 = vdwg.mxu0
    %v828 = vsel %vm186, %v826, -100000.0
    %v829 = vsel %vm354, %v828, -inf
    %830 = vmax.xlane.f32.xlu0 %v829
    %v831 = vpop.xlane.xlu0 %830
    %v832 = vsub.f32 %v828, %v831
    %v833 = vmul.f32 %v832, 1.442695
    %v834 = vpow.pop %v833
    %v835 = vsel %vm354, %v834, 0.0
    %836 = vadd.xlane.f32.xlu0 %v835
    %v837 = vpop.xlane.xlu0 %836
    %v838 = vrcp.pop %v837
    %v839 = vmul.f32 %v834, %v838
    %840 = vrot.lane.b32.xlu0 %v323, 80
    %v841 = vpop.permute.xlu0 %840
    %v844 = vsel %vm354, %v839, 0
    %846 = vmatpush.msra.mxu0 0.0
    %847 = vmatpush.msra.mxu0 0.0
    %848 = vmatpush.msra.mxu0 0.0
    %849 = vmatpush.msra.mxu0 0.0
    %850 = vmatpush.msra.mxu0 0.0
    %851 = vmatpush.msra.mxu0 0.0
    %852 = vmatpush.msra.mxu0 0.0
    %853 = vmatpush.msra.mxu0 0.0
    %854 = vmatpush.msra.mxu0 0.0
    %855 = vmatpush.msra.mxu0 0.0
    %856 = vmatpush.msra.mxu0 0.0
    %857 = vmatpush.msra.mxu0 0.0
    %858 = vmatpush.msra.mxu0 0.0
    %859 = vmatpush.msra.mxu0 0.0
    %860 = vmatpush.msra.mxu0 0.0
    %861 = vmatpush.msra.mxu0 %v841
    %862 = vmatmul.f32.gmra.mxu0 %v844
    %v863 = vpop.f32.mrf.mxu0
    %v864 = vadd.f32 0.0, %v863
    %865 = vdwg.mxu0
    %867 = vrot.lane.b32.xlu0 %v732, 16
    %v868 = vpop.permute.xlu0 %867
    %871 = vrot.lane.b32.xlu0 %v798, 32
    %v872 = vpop.permute.xlu0 %871
    %875 = vrot.lane.b32.xlu0 %v864, 48
    %v876 = vpop.permute.xlu0 %875
    %v878 = vsel %vm328, %v665, %v868
    %v879 = vsel %vm601, %v878, %v872
    %v880 = vsel %vm603, %v879, %v876
    %v881 = vld [vmem:[%s5] sm:$0xff]
    %v882 = vld [vmem:[%s5 + $0x8] sm:$0xff]
    %v883 = vld [vmem:[%s5 + $0x10] sm:$0xff]
    %v884 = vld [vmem:[%s5 + $0x18] sm:$0xff]
    %v885 = vld [vmem:[%s5 + $0x20] sm:$0xff]
    %v886 = vld [vmem:[%s5 + $0x28] sm:$0xff]
    %v887 = vld [vmem:[%s5 + $0x30] sm:$0xff]
    %v888 = vld [vmem:[%s5 + $0x38] sm:$0xff]
    %v889 = vld [vmem:[%s6] sm:$0x1]
    %v891 = vperm.slane %v889, 0
    %v894 = vsel %vm189, %v604, 0
    %v897 = vsel %vm189, %v880, 0
    %899 = vmatpush.msra.mxu0 0.0
    %900 = vmatpush.msra.mxu0 0.0
    %901 = vmatpush.msra.mxu0 0.0
    %902 = vmatpush.msra.mxu0 0.0
    %903 = vmatpush.msra.mxu0 0.0
    %904 = vmatpush.msra.mxu0 0.0
    %905 = vmatpush.msra.mxu0 0.0
    %906 = vmatpush.msra.mxu0 0.0
    %907 = vmatpush.msra.mxu0 %v888
    %908 = vmatpush.msra.mxu0 %v887
    %909 = vmatpush.msra.mxu0 %v886
    %910 = vmatpush.msra.mxu0 %v885
    %911 = vmatpush.msra.mxu0 %v884
    %912 = vmatpush.msra.mxu0 %v883
    %913 = vmatpush.msra.mxu0 %v882
    %914 = vmatpush.msra.mxu0 %v881
    %915 = vmatmul.f32.gmra.mxu0 %v894
    %v916 = vpop.f32.mrf.mxu0
    %v917 = vadd.f32 %v891, %v916
    %918 = vmatmul.f32.gmra.mxu0 %v897
    %v919 = vpop.f32.mrf.mxu0
    %v920 = vadd.f32 %v891, %v919
    %921 = vdwg.mxu0
    %v922 = vadd.f32 %v180, %v917
    %v923 = vadd.f32 %v181, %v920
    %v924 = vld [vmem:[#allocation8] sm:$0x1]
    %v925 = vld [vmem:[#allocation10] sm:$0x1]
    %v926 = vsel %vm189, %v922, 0.0
    %927 = vadd.xlane.f32.xlu0 %v926
    %v928 = vpop.xlane.xlu0 %927
    %v929 = vsel %vm189, %v923, 0.0
    %930 = vadd.xlane.f32.xlu0 %v929
    %v931 = vpop.xlane.xlu0 %930
    %v932 = vmul.f32 %v928, %v202
    %v933 = vmul.f32 %v931, %v202
    %v934 = vsub.f32 %v922, %v932
    %v935 = vsub.f32 %v923, %v933
    %v936 = vmul.f32 %v934, %v934
    %v937 = vmul.f32 %v935, %v935
    %v938 = vsel %vm189, %v936, 0.0
    %939 = vadd.xlane.f32.xlu0 %v938
    %v940 = vpop.xlane.xlu0 %939
    %v941 = vsel %vm189, %v937, 0.0
    %942 = vadd.xlane.f32.xlu0 %v941
    %v943 = vpop.xlane.xlu0 %942
    %v944 = vmul.f32 %v940, %v202
    %v945 = vmul.f32 %v943, %v202
    %v946 = vadd.f32 %v944, 1e-05
    %v947 = vadd.f32 %v945, 1e-05
    %v948 = vrsqrt.pop %v946
    %v949 = vmul.f32 %v948, %v946
    %v950 = vmul.f32 %v949, %v948
    %v951 = vmul.f32 0.5, %v950
    %v952 = vsub.f32 1.5, %v951
    %v953 = vmul.f32 %v948, %v952
    %vm954 = vweird.f32 %v946
    %vm955 = vweird.f32 %v948
    %vm956 = vmor %vm954, %vm955
    %v957 = vsel %vm956, %v948, %v953
    %v958 = vrsqrt.pop %v947
    %v959 = vmul.f32 %v958, %v947
    %v960 = vmul.f32 %v959, %v958
    %v961 = vmul.f32 0.5, %v960
    %v962 = vsub.f32 1.5, %v961
    %v963 = vmul.f32 %v958, %v962
    %vm964 = vweird.f32 %v947
    %vm965 = vweird.f32 %v958
    %vm966 = vmor %vm964, %vm965
    %v967 = vsel %vm966, %v958, %v963
    %v968 = vmul.f32 %v934, %v957
    %v969 = vmul.f32 %v935, %v967
    %v971 = vperm.slane %v924, 0
    %v973 = vmul.f32 %v968, %v971
    %v974 = vmul.f32 %v969, %v971
    %v976 = vperm.slane %v925, 0
    %v978 = vadd.f32 %v973, %v976
    %v979 = vadd.f32 %v974, %v976
    %v980 = vld [vmem:[#allocation11] sm:$0xff]
    %v981 = vld [vmem:[#allocation11 + $0x8] sm:$0xff]
    %v982 = vld [vmem:[#allocation11 + $0x10] sm:$0xff]
    %v983 = vld [vmem:[#allocation11 + $0x18] sm:$0xff]
    %v984 = vld [vmem:[#allocation11 + $0x20] sm:$0xff]
    %v985 = vld [vmem:[#allocation11 + $0x28] sm:$0xff]
    %v986 = vld [vmem:[#allocation11 + $0x30] sm:$0xff]
    %v987 = vld [vmem:[#allocation11 + $0x38] sm:$0xff]
    %v988 = vld [vmem:[%s10] sm:$0x1]
    %v990 = vperm.slane %v988, 0
    %v993 = vsel %vm189, %v978, 0
    %v996 = vsel %vm189, %v979, 0
    %998 = vmatpush.msra.mxu0 0.0
    %999 = vmatpush.msra.mxu0 0.0
    %1000 = vmatpush.msra.mxu0 0.0
    %1001 = vmatpush.msra.mxu0 0.0
    %1002 = vmatpush.msra.mxu0 0.0
    %1003 = vmatpush.msra.mxu0 0.0
    %1004 = vmatpush.msra.mxu0 0.0
    %1005 = vmatpush.msra.mxu0 0.0
    %1006 = vmatpush.msra.mxu0 %v987
    %1007 = vmatpush.msra.mxu0 %v986
    %1008 = vmatpush.msra.mxu0 %v985
    %1009 = vmatpush.msra.mxu0 %v984
    %1010 = vmatpush.msra.mxu0 %v983
    %1011 = vmatpush.msra.mxu0 %v982
    %1012 = vmatpush.msra.mxu0 %v981
    %1013 = vmatpush.msra.mxu0 %v980
    %1014 = vmatmul.f32.gmra.mxu0 %v993
    %v1015 = vpop.f32.mrf.mxu0
    %v1016 = vadd.f32 %v990, %v1015
    %1017 = vmatmul.f32.gmra.mxu0 %v996
    %v1018 = vpop.f32.mrf.mxu0
    %v1019 = vadd.f32 %v990, %v1018
    %1020 = vdwg.mxu0
    %v1021 = vmul.f32 %v1016, 0.5
    %v1022 = vmul.f32 %v1019, 0.5
    %v1023 = vmul.f32 %v1016, %v1016
    %v1024 = vmul.f32 %v1019, %v1019
    %v1025 = vmul.f32 %v1016, %v1023
    %v1026 = vmul.f32 %v1019, %v1024
    %v1027 = vmul.f32 %v1025, 0.044715
    %v1028 = vmul.f32 %v1026, 0.044715
    %v1029 = vadd.f32 %v1016, %v1027
    %v1030 = vadd.f32 %v1019, %v1028
    %v1031 = vmul.f32 %v1029, 0.7978846
    %v1032 = vmul.f32 %v1030, 0.7978846
    %v1033 = vtanh.pop %v1031
    %v1034 = vtanh.pop %v1032
    %v1035 = vadd.f32 %v1033, 1.0
    %v1036 = vadd.f32 %v1034, 1.0
    %v1037 = vmul.f32 %v1021, %v1035
    %v1038 = vmul.f32 %v1022, %v1036
    %v1039 = vld [vmem:[%s11] sm:$0xff]
    %v1040 = vld [vmem:[%s11 + $0x8] sm:$0xff]
    %v1041 = vld [vmem:[%s11 + $0x10] sm:$0xff]
    %v1042 = vld [vmem:[%s11 + $0x18] sm:$0xff]
    %v1043 = vld [vmem:[%s11 + $0x20] sm:$0xff]
    %v1044 = vld [vmem:[%s11 + $0x28] sm:$0xff]
    %v1045 = vld [vmem:[%s11 + $0x30] sm:$0xff]
    %v1046 = vld [vmem:[%s11 + $0x38] sm:$0xff]
    %v1047 = vld [vmem:[%s11 + $0x40] sm:$0xff]
    %v1048 = vld [vmem:[%s11 + $0x48] sm:$0xff]
    %v1049 = vld [vmem:[%s11 + $0x50] sm:$0xff]
    %v1050 = vld [vmem:[%s11 + $0x58] sm:$0xff]
    %v1051 = vld [vmem:[%s11 + $0x60] sm:$0xff]
    %v1052 = vld [vmem:[%s11 + $0x68] sm:$0xff]
    %v1053 = vld [vmem:[%s11 + $0x70] sm:$0xff]
    %v1054 = vld [vmem:[%s11 + $0x78] sm:$0xff]
    %v1055 = vld [vmem:[%s12] sm:$0x1]
    %v1057 = vperm.slane %v1055, 0
    %1059 = vmatpush.msra.mxu0 %v1054
    %1060 = vmatpush.msra.mxu0 %v1053
    %1061 = vmatpush.msra.mxu0 %v1052
    %1062 = vmatpush.msra.mxu0 %v1051
    %1063 = vmatpush.msra.mxu0 %v1050
    %1064 = vmatpush.msra.mxu0 %v1049
    %1065 = vmatpush.msra.mxu0 %v1048
    %1066 = vmatpush.msra.mxu0 %v1047
    %1067 = vmatpush.msra.mxu0 %v1046
    %1068 = vmatpush.msra.mxu0 %v1045
    %1069 = vmatpush.msra.mxu0 %v1044
    %1070 = vmatpush.msra.mxu0 %v1043
    %1071 = vmatpush.msra.mxu0 %v1042
    %1072 = vmatpush.msra.mxu0 %v1041
    %1073 = vmatpush.msra.mxu0 %v1040
    %1074 = vmatpush.msra.mxu0 %v1039
    %1075 = vmatmul.f32.gmra.mxu0 %v1037
    %v1076 = vpop.f32.mrf.mxu0
    %v1077 = vadd.f32 %v1057, %v1076
    %1078 = vmatmul.f32.gmra.mxu0 %v1038
    %v1079 = vpop.f32.mrf.mxu0
    %v1080 = vadd.f32 %v1057, %v1079
    %1081 = vdwg.mxu0
    %v1082 = vadd.f32 %v922, %v1077
    %v1083 = vadd.f32 %v923, %v1080
    %s1084 = scalar_lea.vmem %s1, 1
    %v1085 = vld [vmem:[%s1084] sm:$0x1]
    %s1086 = scalar_lea.vmem [#allocation5], 1
    %v1087 = vld [vmem:[%s1086] sm:$0x1]
    %v1088 = vsel %vm189, %v1082, 0.0
    %1089 = vadd.xlane.f32.xlu0 %v1088
    %v1090 = vpop.xlane.xlu0 %1089
    %v1091 = vsel %vm189, %v1083, 0.0
    %1092 = vadd.xlane.f32.xlu0 %v1091
    %v1093 = vpop.xlane.xlu0 %1092
    %v1094 = vmul.f32 %v1090, %v202
    %v1095 = vmul.f32 %v1093, %v202
    %v1096 = vsub.f32 %v1082, %v1094
    %v1097 = vsub.f32 %v1083, %v1095
    %v1098 = vmul.f32 %v1096, %v1096
    %v1099 = vmul.f32 %v1097, %v1097
    %v1100 = vsel %vm189, %v1098, 0.0
    %1101 = vadd.xlane.f32.xlu0 %v1100
    %v1102 = vpop.xlane.xlu0 %1101
    %v1103 = vsel %vm189, %v1099, 0.0
    %1104 = vadd.xlane.f32.xlu0 %v1103
    %v1105 = vpop.xlane.xlu0 %1104
    %v1106 = vmul.f32 %v1102, %v202
    %v1107 = vmul.f32 %v1105, %v202
    %v1108 = vadd.f32 %v1106, 1e-05
    %v1109 = vadd.f32 %v1107, 1e-05
    %v1110 = vrsqrt.pop %v1108
    %v1111 = vmul.f32 %v1110, %v1108
    %v1112 = vmul.f32 %v1111, %v1110
    %v1113 = vmul.f32 0.5, %v1112
    %v1114 = vsub.f32 1.5, %v1113
    %v1115 = vmul.f32 %v1110, %v1114
    %vm1116 = vweird.f32 %v1108
    %vm1117 = vweird.f32 %v1110
    %vm1118 = vmor %vm1116, %vm1117
    %v1119 = vsel %vm1118, %v1110, %v1115
    %v1120 = vrsqrt.pop %v1109
    %v1121 = vmul.f32 %v1120, %v1109
    %v1122 = vmul.f32 %v1121, %v1120
    %v1123 = vmul.f32 0.5, %v1122
    %v1124 = vsub.f32 1.5, %v1123
    %v1125 = vmul.f32 %v1120, %v1124
    %vm1126 = vweird.f32 %v1109
    %vm1127 = vweird.f32 %v1120
    %vm1128 = vmor %vm1126, %vm1127
    %v1129 = vsel %vm1128, %v1120, %v1125
    %v1130 = vmul.f32 %v1096, %v1119
    %v1131 = vmul.f32 %v1097, %v1129
    %v1133 = vperm.slane %v1085, 0
    %v1135 = vmul.f32 %v1130, %v1133
    %v1136 = vmul.f32 %v1131, %v1133
    %v1138 = vperm.slane %v1087, 0
    %v1140 = vadd.f32 %v1135, %v1138
    %v1141 = vadd.f32 %v1136, %v1138
    %s1142 = scalar_lea.vmem %s3, 128
    %v1143 = vld [vmem:[%s1142] sm:$0xff]
    %v1144 = vld [vmem:[%s1142 + $0x8] sm:$0xff]
    %v1145 = vld [vmem:[%s1142 + $0x10] sm:$0xff]
    %v1146 = vld [vmem:[%s1142 + $0x18] sm:$0xff]
    %v1147 = vld [vmem:[%s1142 + $0x20] sm:$0xff]
    %v1148 = vld [vmem:[%s1142 + $0x28] sm:$0xff]
    %v1149 = vld [vmem:[%s1142 + $0x30] sm:$0xff]
    %v1150 = vld [vmem:[%s1142 + $0x38] sm:$0xff]
    %v1151 = vld [vmem:[%s1142 + $0x40] sm:$0xff]
    %v1152 = vld [vmem:[%s1142 + $0x48] sm:$0xff]
    %v1153 = vld [vmem:[%s1142 + $0x50] sm:$0xff]
    %v1154 = vld [vmem:[%s1142 + $0x58] sm:$0xff]
    %v1155 = vld [vmem:[%s1142 + $0x60] sm:$0xff]
    %v1156 = vld [vmem:[%s1142 + $0x68] sm:$0xff]
    %v1157 = vld [vmem:[%s1142 + $0x70] sm:$0xff]
    %v1158 = vld [vmem:[%s1142 + $0x78] sm:$0xff]
    %s1159 = scalar_lea.vmem [#allocation7], 2
    %v1160 = vld [vmem:[%s1159] sm:$0x3]
    %v1162 = vperm.slane %v1160, 0
    %v1163 = vperm.slane %v1160, 1
    %v1167 = vsel %vm189, %v1140, 0
    %v1170 = vsel %vm189, %v1141, 0
    %1172 = vmatpush.msra.mxu0 0.0
    %1173 = vmatpush.msra.mxu0 0.0
    %1174 = vmatpush.msra.mxu0 0.0
    %1175 = vmatpush.msra.mxu0 0.0
    %1176 = vmatpush.msra.mxu0 0.0
    %1177 = vmatpush.msra.mxu0 0.0
    %1178 = vmatpush.msra.mxu0 0.0
    %1179 = vmatpush.msra.mxu0 0.0
    %1180 = vmatpush.msra.mxu0 %v1157
    %1181 = vmatpush.msra.mxu0 %v1155
    %1182 = vmatpush.msra.mxu0 %v1153
    %1183 = vmatpush.msra.mxu0 %v1151
    %1184 = vmatpush.msra.mxu0 %v1149
    %1185 = vmatpush.msra.mxu0 %v1147
    %1186 = vmatpush.msra.mxu0 %v1145
    %1187 = vmatpush.msra.mxu0 %v1143
    %1188 = vmatmul.f32.gmra.mxu0 %v1167
    %v1189 = vpop.f32.mrf.mxu0
    %v1190 = vadd.f32 %v1162, %v1189
    %1191 = vmatmul.f32.gmra.mxu0 %v1170
    %v1192 = vpop.f32.mrf.mxu0
    %v1193 = vadd.f32 %v1162, %v1192
    %1194 = vdwg.mxu0
    %1195 = vmatpush.msra.mxu0 0.0
    %1196 = vmatpush.msra.mxu0 0.0
    %1197 = vmatpush.msra.mxu0 0.0
    %1198 = vmatpush.msra.mxu0 0.0
    %1199 = vmatpush.msra.mxu0 0.0
    %1200 = vmatpush.msra.mxu0 0.0
    %1201 = vmatpush.msra.mxu0 0.0
    %1202 = vmatpush.msra.mxu0 0.0
    %1203 = vmatpush.msra.mxu0 %v1158
    %1204 = vmatpush.msra.mxu0 %v1156
    %1205 = vmatpush.msra.mxu0 %v1154
    %1206 = vmatpush.msra.mxu0 %v1152
    %1207 = vmatpush.msra.mxu0 %v1150
    %1208 = vmatpush.msra.mxu0 %v1148
    %1209 = vmatpush.msra.mxu0 %v1146
    %1210 = vmatpush.msra.mxu0 %v1144
    %1211 = vmatmul.f32.gmra.mxu0 %v1167
    %v1212 = vpop.f32.mrf.mxu0
    %v1213 = vadd.f32 %v1163, %v1212
    %1214 = vmatmul.f32.gmra.mxu0 %v1170
    %v1215 = vpop.f32.mrf.mxu0
    %v1216 = vadd.f32 %v1163, %v1215
    %1217 = vdwg.mxu0
    %1219 = vrot.lane.b32.xlu0 %v1190, 64
    %v1220 = vpop.permute.xlu0 %1219
    %v1221 = vsel %vm328, %v1190, 0
    %v1223 = vsel %vm328, %v1220, 0
    %1225 = vmatpush.xpose.msra.mxu0 0.0
    %1226 = vmatpush.xpose.msra.mxu0 0.0
    %1227 = vmatpush.xpose.msra.mxu0 0.0
    %1228 = vmatpush.xpose.msra.mxu0 0.0
    %1229 = vmatpush.xpose.msra.mxu0 0.0
    %1230 = vmatpush.xpose.msra.mxu0 0.0
    %1231 = vmatpush.xpose.msra.mxu0 0.0
    %1232 = vmatpush.xpose.msra.mxu0 0.0
    %1233 = vmatpush.xpose.msra.mxu0 0.0
    %1234 = vmatpush.xpose.msra.mxu0 0.0
    %1235 = vmatpush.xpose.msra.mxu0 0.0
    %1236 = vmatpush.xpose.msra.mxu0 0.0
    %1237 = vmatpush.xpose.msra.mxu0 0.0
    %1238 = vmatpush.xpose.msra.mxu0 0.0
    %1239 = vmatpush.xpose.msra.mxu0 0.0
    %1240 = vmatpush.xpose.msra.mxu0 %v1223
    %1241 = vmatmul.f32.gmra.mxu0 %v1221
    %v1242 = vpop.f32.mrf.mxu0
    %v1243 = vadd.f32 0.0, %v1242
    %1244 = vdwg.mxu0
    %v1245 = vsel %vm186, %v1243, -100000.0
    %v1246 = vsel %vm354, %v1245, -inf
    %1247 = vmax.xlane.f32.xlu0 %v1246
    %v1248 = vpop.xlane.xlu0 %1247
    %v1249 = vsub.f32 %v1245, %v1248
    %v1250 = vmul.f32 %v1249, 1.442695
    %v1251 = vpow.pop %v1250
    %v1252 = vsel %vm354, %v1251, 0.0
    %1253 = vadd.xlane.f32.xlu0 %v1252
    %v1254 = vpop.xlane.xlu0 %1253
    %v1255 = vrcp.pop %v1254
    %v1256 = vmul.f32 %v1251, %v1255
    %v1258 = vsel %vm354, %v1256, 0
    %1260 = vmatpush.msra.mxu0 0.0
    %1261 = vmatpush.msra.mxu0 0.0
    %1262 = vmatpush.msra.mxu0 0.0
    %1263 = vmatpush.msra.mxu0 0.0
    %1264 = vmatpush.msra.mxu0 0.0
    %1265 = vmatpush.msra.mxu0 0.0
    %1266 = vmatpush.msra.mxu0 0.0
    %1267 = vmatpush.msra.mxu0 0.0
    %1268 = vmatpush.msra.mxu0 0.0
    %1269 = vmatpush.msra.mxu0 0.0
    %1270 = vmatpush.msra.mxu0 0.0
    %1271 = vmatpush.msra.mxu0 0.0
    %1272 = vmatpush.msra.mxu0 0.0
    %1273 = vmatpush.msra.mxu0 0.0
    %1274 = vmatpush.msra.mxu0 0.0
    %1275 = vmatpush.msra.mxu0 %v1213
    %1276 = vmatmul.f32.gmra.mxu0 %v1258
    %v1277 = vpop.f32.mrf.mxu0
    %v1278 = vadd.f32 0.0, %v1277
    %1279 = vdwg.mxu0
    %1280 = vrot.lane.b32.xlu0 %v1190, 112
    %v1281 = vpop.permute.xlu0 %1280
    %1282 = vrot.lane.b32.xlu0 %v1190, 48
    %v1283 = vpop.permute.xlu0 %1282
    %v1284 = vsel %vm328, %v1281, 0
    %v1286 = vsel %vm328, %v1283, 0
    %1288 = vmatpush.xpose.msra.mxu0 0.0
    %1289 = vmatpush.xpose.msra.mxu0 0.0
    %1290 = vmatpush.xpose.msra.mxu0 0.0
    %1291 = vmatpush.xpose.msra.mxu0 0.0
    %1292 = vmatpush.xpose.msra.mxu0 0.0
    %1293 = vmatpush.xpose.msra.mxu0 0.0
    %1294 = vmatpush.xpose.msra.mxu0 0.0
    %1295 = vmatpush.xpose.msra.mxu0 0.0
    %1296 = vmatpush.xpose.msra.mxu0 0.0
    %1297 = vmatpush.xpose.msra.mxu0 0.0
    %1298 = vmatpush.xpose.msra.mxu0 0.0
    %1299 = vmatpush.xpose.msra.mxu0 0.0
    %1300 = vmatpush.xpose.msra.mxu0 0.0
    %1301 = vmatpush.xpose.msra.mxu0 0.0
    %1302 = vmatpush.xpose.msra.mxu0 0.0
    %1303 = vmatpush.xpose.msra.mxu0 %v1286
    %1304 = vmatmul.f32.gmra.mxu0 %v1284
    %v1305 = vpop.f32.mrf.mxu0
    %v1306 = vadd.f32 0.0, %v1305
    %1307 = vdwg.mxu0
    %v1308 = vsel %vm186, %v1306, -100000.0
    %v1309 = vsel %vm354, %v1308, -inf
    %1310 = vmax.xlane.f32.xlu0 %v1309
    %v1311 = vpop.xlane.xlu0 %1310
    %v1312 = vsub.f32 %v1308, %v1311
    %v1313 = vmul.f32 %v1312, 1.442695
    %v1314 = vpow.pop %v1313
    %v1315 = vsel %vm354, %v1314, 0.0
    %1316 = vadd.xlane.f32.xlu0 %v1315
    %v1317 = vpop.xlane.xlu0 %1316
    %v1318 = vrcp.pop %v1317
    %v1319 = vmul.f32 %v1314, %v1318
    %1321 = vrot.lane.b32.xlu0 %v1213, 112
    %v1322 = vpop.permute.xlu0 %1321
    %v1325 = vsel %vm354, %v1319, 0
    %1327 = vmatpush.msra.mxu0 0.0
    %1328 = vmatpush.msra.mxu0 0.0
    %1329 = vmatpush.msra.mxu0 0.0
    %1330 = vmatpush.msra.mxu0 0.0
    %1331 = vmatpush.msra.mxu0 0.0
    %1332 = vmatpush.msra.mxu0 0.0
    %1333 = vmatpush.msra.mxu0 0.0
    %1334 = vmatpush.msra.mxu0 0.0
    %1335 = vmatpush.msra.mxu0 0.0
    %1336 = vmatpush.msra.mxu0 0.0
    %1337 = vmatpush.msra.mxu0 0.0
    %1338 = vmatpush.msra.mxu0 0.0
    %1339 = vmatpush.msra.mxu0 0.0
    %1340 = vmatpush.msra.mxu0 0.0
    %1341 = vmatpush.msra.mxu0 0.0
    %1342 = vmatpush.msra.mxu0 %v1322
    %1343 = vmatmul.f32.gmra.mxu0 %v1325
    %v1344 = vpop.f32.mrf.mxu0
    %v1345 = vadd.f32 0.0, %v1344
    %1346 = vdwg.mxu0
    %1347 = vrot.lane.b32.xlu0 %v1190, 96
    %v1348 = vpop.permute.xlu0 %1347
    %1349 = vrot.lane.b32.xlu0 %v1190, 32
    %v1350 = vpop.permute.xlu0 %1349
    %v1351 = vsel %vm328, %v1348, 0
    %v1353 = vsel %vm328, %v1350, 0
    %1355 = vmatpush.xpose.msra.mxu0 0.0
    %1356 = vmatpush.xpose.msra.mxu0 0.0
    %1357 = vmatpush.xpose.msra.mxu0 0.0
    %1358 = vmatpush.xpose.msra.mxu0 0.0
    %1359 = vmatpush.xpose.msra.mxu0 0.0
    %1360 = vmatpush.xpose.msra.mxu0 0.0
    %1361 = vmatpush.xpose.msra.mxu0 0.0
    %1362 = vmatpush.xpose.msra.mxu0 0.0
    %1363 = vmatpush.xpose.msra.mxu0 0.0
    %1364 = vmatpush.xpose.msra.mxu0 0.0
    %1365 = vmatpush.xpose.msra.mxu0 0.0
    %1366 = vmatpush.xpose.msra.mxu0 0.0
    %1367 = vmatpush.xpose.msra.mxu0 0.0
    %1368 = vmatpush.xpose.msra.mxu0 0.0
    %1369 = vmatpush.xpose.msra.mxu0 0.0
    %1370 = vmatpush.xpose.msra.mxu0 %v1353
    %1371 = vmatmul.f32.gmra.mxu0 %v1351
    %v1372 = vpop.f32.mrf.mxu0
    %v1373 = vadd.f32 0.0, %v1372
    %1374 = vdwg.mxu0
    %v1375 = vsel %vm186, %v1373, -100000.0
    %v1376 = vsel %vm354, %v1375, -inf
    %1377 = vmax.xlane.f32.xlu0 %v1376
    %v1378 = vpop.xlane.xlu0 %1377
    %v1379 = vsub.f32 %v1375, %v1378
    %v1380 = vmul.f32 %v1379, 1.442695
    %v1381 = vpow.pop %v1380
    %v1382 = vsel %vm354, %v1381, 0.0
    %1383 = vadd.xlane.f32.xlu0 %v1382
    %v1384 = vpop.xlane.xlu0 %1383
    %v1385 = vrcp.pop %v1384
    %v1386 = vmul.f32 %v1381, %v1385
    %1387 = vrot.lane.b32.xlu0 %v1213, 96
    %v1388 = vpop.permute.xlu0 %1387
    %v1391 = vsel %vm354, %v1386, 0
    %1393 = vmatpush.msra.mxu0 0.0
    %1394 = vmatpush.msra.mxu0 0.0
    %1395 = vmatpush.msra.mxu0 0.0
    %1396 = vmatpush.msra.mxu0 0.0
    %1397 = vmatpush.msra.mxu0 0.0
    %1398 = vmatpush.msra.mxu0 0.0
    %1399 = vmatpush.msra.mxu0 0.0
    %1400 = vmatpush.msra.mxu0 0.0
    %1401 = vmatpush.msra.mxu0 0.0
    %1402 = vmatpush.msra.mxu0 0.0
    %1403 = vmatpush.msra.mxu0 0.0
    %1404 = vmatpush.msra.mxu0 0.0
    %1405 = vmatpush.msra.mxu0 0.0
    %1406 = vmatpush.msra.mxu0 0.0
    %1407 = vmatpush.msra.mxu0 0.0
    %1408 = vmatpush.msra.mxu0 %v1388
    %1409 = vmatmul.f32.gmra.mxu0 %v1391
    %v1410 = vpop.f32.mrf.mxu0
    %v1411 = vadd.f32 0.0, %v1410
    %1412 = vdwg.mxu0
    %1413 = vrot.lane.b32.xlu0 %v1190, 80
    %v1414 = vpop.permute.xlu0 %1413
    %1415 = vrot.lane.b32.xlu0 %v1190, 16
    %v1416 = vpop.permute.xlu0 %1415
    %v1417 = vsel %vm328, %v1414, 0
    %v1419 = vsel %vm328, %v1416, 0
    %1421 = vmatpush.xpose.msra.mxu0 0.0
    %1422 = vmatpush.xpose.msra.mxu0 0.0
    %1423 = vmatpush.xpose.msra.mxu0 0.0
    %1424 = vmatpush.xpose.msra.mxu0 0.0
    %1425 = vmatpush.xpose.msra.mxu0 0.0
    %1426 = vmatpush.xpose.msra.mxu0 0.0
    %1427 = vmatpush.xpose.msra.mxu0 0.0
    %1428 = vmatpush.xpose.msra.mxu0 0.0
    %1429 = vmatpush.xpose.msra.mxu0 0.0
    %1430 = vmatpush.xpose.msra.mxu0 0.0
    %1431 = vmatpush.xpose.msra.mxu0 0.0
    %1432 = vmatpush.xpose.msra.mxu0 0.0
    %1433 = vmatpush.xpose.msra.mxu0 0.0
    %1434 = vmatpush.xpose.msra.mxu0 0.0
    %1435 = vmatpush.xpose.msra.mxu0 0.0
    %1436 = vmatpush.xpose.msra.mxu0 %v1419
    %1437 = vmatmul.f32.gmra.mxu0 %v1417
    %v1438 = vpop.f32.mrf.mxu0
    %v1439 = vadd.f32 0.0, %v1438
    %1440 = vdwg.mxu0
    %v1441 = vsel %vm186, %v1439, -100000.0
    %v1442 = vsel %vm354, %v1441, -inf
    %1443 = vmax.xlane.f32.xlu0 %v1442
    %v1444 = vpop.xlane.xlu0 %1443
    %v1445 = vsub.f32 %v1441, %v1444
    %v1446 = vmul.f32 %v1445, 1.442695
    %v1447 = vpow.pop %v1446
    %v1448 = vsel %vm354, %v1447, 0.0
    %1449 = vadd.xlane.f32.xlu0 %v1448
    %v1450 = vpop.xlane.xlu0 %1449
    %v1451 = vrcp.pop %v1450
    %v1452 = vmul.f32 %v1447, %v1451
    %1453 = vrot.lane.b32.xlu0 %v1213, 80
    %v1454 = vpop.permute.xlu0 %1453
    %v1457 = vsel %vm354, %v1452, 0
    %1459 = vmatpush.msra.mxu0 0.0
    %1460 = vmatpush.msra.mxu0 0.0
    %1461 = vmatpush.msra.mxu0 0.0
    %1462 = vmatpush.msra.mxu0 0.0
    %1463 = vmatpush.msra.mxu0 0.0
    %1464 = vmatpush.msra.mxu0 0.0
    %1465 = vmatpush.msra.mxu0 0.0
    %1466 = vmatpush.msra.mxu0 0.0
    %1467 = vmatpush.msra.mxu0 0.0
    %1468 = vmatpush.msra.mxu0 0.0
    %1469 = vmatpush.msra.mxu0 0.0
    %1470 = vmatpush.msra.mxu0 0.0
    %1471 = vmatpush.msra.mxu0 0.0
    %1472 = vmatpush.msra.mxu0 0.0
    %1473 = vmatpush.msra.mxu0 0.0
    %1474 = vmatpush.msra.mxu0 %v1454
    %1475 = vmatmul.f32.gmra.mxu0 %v1457
    %v1476 = vpop.f32.mrf.mxu0
    %v1477 = vadd.f32 0.0, %v1476
    %1478 = vdwg.mxu0
    %1480 = vrot.lane.b32.xlu0 %v1345, 16
    %v1481 = vpop.permute.xlu0 %1480
    %1484 = vrot.lane.b32.xlu0 %v1411, 32
    %v1485 = vpop.permute.xlu0 %1484
    %1488 = vrot.lane.b32.xlu0 %v1477, 48
    %v1489 = vpop.permute.xlu0 %1488
    %v1491 = vsel %vm328, %v1278, %v1481
    %v1492 = vsel %vm601, %v1491, %v1485
    %v1493 = vsel %vm603, %v1492, %v1489
    %1495 = vrot.lane.b32.xlu0 %v1193, 64
    %v1496 = vpop.permute.xlu0 %1495
    %v1497 = vsel %vm328, %v1193, 0
    %v1499 = vsel %vm328, %v1496, 0
    %1501 = vmatpush.xpose.msra.mxu0 0.0
    %1502 = vmatpush.xpose.msra.mxu0 0.0
    %1503 = vmatpush.xpose.msra.mxu0 0.0
    %1504 = vmatpush.xpose.msra.mxu0 0.0
    %1505 = vmatpush.xpose.msra.mxu0 0.0
    %1506 = vmatpush.xpose.msra.mxu0 0.0
    %1507 = vmatpush.xpose.msra.mxu0 0.0
    %1508 = vmatpush.xpose.msra.mxu0 0.0
    %1509 = vmatpush.xpose.msra.mxu0 0.0
    %1510 = vmatpush.xpose.msra.mxu0 0.0
    %1511 = vmatpush.xpose.msra.mxu0 0.0
    %1512 = vmatpush.xpose.msra.mxu0 0.0
    %1513 = vmatpush.xpose.msra.mxu0 0.0
    %1514 = vmatpush.xpose.msra.mxu0 0.0
    %1515 = vmatpush.xpose.msra.mxu0 0.0
    %1516 = vmatpush.xpose.msra.mxu0 %v1499
    %1517 = vmatmul.f32.gmra.mxu0 %v1497
    %v1518 = vpop.f32.mrf.mxu0
    %v1519 = vadd.f32 0.0, %v1518
    %1520 = vdwg.mxu0
    %v1521 = vsel %vm186, %v1519, -100000.0
    %v1522 = vsel %vm354, %v1521, -inf
    %1523 = vmax.xlane.f32.xlu0 %v1522
    %v1524 = vpop.xlane.xlu0 %1523
    %v1525 = vsub.f32 %v1521, %v1524
    %v1526 = vmul.f32 %v1525, 1.442695
    %v1527 = vpow.pop %v1526
    %v1528 = vsel %vm354, %v1527, 0.0
    %1529 = vadd.xlane.f32.xlu0 %v1528
    %v1530 = vpop.xlane.xlu0 %1529
    %v1531 = vrcp.pop %v1530
    %v1532 = vmul.f32 %v1527, %v1531
    %v1534 = vsel %vm354, %v1532, 0
    %1536 = vmatpush.msra.mxu0 0.0
    %1537 = vmatpush.msra.mxu0 0.0
    %1538 = vmatpush.msra.mxu0 0.0
    %1539 = vmatpush.msra.mxu0 0.0
    %1540 = vmatpush.msra.mxu0 0.0
    %1541 = vmatpush.msra.mxu0 0.0
    %1542 = vmatpush.msra.mxu0 0.0
    %1543 = vmatpush.msra.mxu0 0.0
    %1544 = vmatpush.msra.mxu0 0.0
    %1545 = vmatpush.msra.mxu0 0.0
    %1546 = vmatpush.msra.mxu0 0.0
    %1547 = vmatpush.msra.mxu0 0.0
    %1548 = vmatpush.msra.mxu0 0.0
    %1549 = vmatpush.msra.mxu0 0.0
    %1550 = vmatpush.msra.mxu0 0.0
    %1551 = vmatpush.msra.mxu0 %v1216
    %1552 = vmatmul.f32.gmra.mxu0 %v1534
    %v1553 = vpop.f32.mrf.mxu0
    %v1554 = vadd.f32 0.0, %v1553
    %1555 = vdwg.mxu0
    %1556 = vrot.lane.b32.xlu0 %v1193, 112
    %v1557 = vpop.permute.xlu0 %1556
    %1558 = vrot.lane.b32.xlu0 %v1193, 48
    %v1559 = vpop.permute.xlu0 %1558
    %v1560 = vsel %vm328, %v1557, 0
    %v1562 = vsel %vm328, %v1559, 0
    %1564 = vmatpush.xpose.msra.mxu0 0.0
    %1565 = vmatpush.xpose.msra.mxu0 0.0
    %1566 = vmatpush.xpose.msra.mxu0 0.0
    %1567 = vmatpush.xpose.msra.mxu0 0.0
    %1568 = vmatpush.xpose.msra.mxu0 0.0
    %1569 = vmatpush.xpose.msra.mxu0 0.0
    %1570 = vmatpush.xpose.msra.mxu0 0.0
    %1571 = vmatpush.xpose.msra.mxu0 0.0
    %1572 = vmatpush.xpose.msra.mxu0 0.0
    %1573 = vmatpush.xpose.msra.mxu0 0.0
    %1574 = vmatpush.xpose.msra.mxu0 0.0
    %1575 = vmatpush.xpose.msra.mxu0 0.0
    %1576 = vmatpush.xpose.msra.mxu0 0.0
    %1577 = vmatpush.xpose.msra.mxu0 0.0
    %1578 = vmatpush.xpose.msra.mxu0 0.0
    %1579 = vmatpush.xpose.msra.mxu0 %v1562
    %1580 = vmatmul.f32.gmra.mxu0 %v1560
    %v1581 = vpop.f32.mrf.mxu0
    %v1582 = vadd.f32 0.0, %v1581
    %1583 = vdwg.mxu0
    %v1584 = vsel %vm186, %v1582, -100000.0
    %v1585 = vsel %vm354, %v1584, -inf
    %1586 = vmax.xlane.f32.xlu0 %v1585
    %v1587 = vpop.xlane.xlu0 %1586
    %v1588 = vsub.f32 %v1584, %v1587
    %v1589 = vmul.f32 %v1588, 1.442695
    %v1590 = vpow.pop %v1589
    %v1591 = vsel %vm354, %v1590, 0.0
    %1592 = vadd.xlane.f32.xlu0 %v1591
    %v1593 = vpop.xlane.xlu0 %1592
    %v1594 = vrcp.pop %v1593
    %v1595 = vmul.f32 %v1590, %v1594
    %1597 = vrot.lane.b32.xlu0 %v1216, 112
    %v1598 = vpop.permute.xlu0 %1597
    %v1601 = vsel %vm354, %v1595, 0
    %1603 = vmatpush.msra.mxu0 0.0
    %1604 = vmatpush.msra.mxu0 0.0
    %1605 = vmatpush.msra.mxu0 0.0
    %1606 = vmatpush.msra.mxu0 0.0
    %1607 = vmatpush.msra.mxu0 0.0
    %1608 = vmatpush.msra.mxu0 0.0
    %1609 = vmatpush.msra.mxu0 0.0
    %1610 = vmatpush.msra.mxu0 0.0
    %1611 = vmatpush.msra.mxu0 0.0
    %1612 = vmatpush.msra.mxu0 0.0
    %1613 = vmatpush.msra.mxu0 0.0
    %1614 = vmatpush.msra.mxu0 0.0
    %1615 = vmatpush.msra.mxu0 0.0
    %1616 = vmatpush.msra.mxu0 0.0
    %1617 = vmatpush.msra.mxu0 0.0
    %1618 = vmatpush.msra.mxu0 %v1598
    %1619 = vmatmul.f32.gmra.mxu0 %v1601
    %v1620 = vpop.f32.mrf.mxu0
    %v1621 = vadd.f32 0.0, %v1620
    %1622 = vdwg.mxu0
    %1623 = vrot.lane.b32.xlu0 %v1193, 96
    %v1624 = vpop.permute.xlu0 %1623
    %1625 = vrot.lane.b32.xlu0 %v1193, 32
    %v1626 = vpop.permute.xlu0 %1625
    %v1627 = vsel %vm328, %v1624, 0
    %v1629 = vsel %vm328, %v1626, 0
    %1631 = vmatpush.xpose.msra.mxu0 0.0
    %1632 = vmatpush.xpose.msra.mxu0 0.0
    %1633 = vmatpush.xpose.msra.mxu0 0.0
    %1634 = vmatpush.xpose.msra.mxu0 0.0
    %1635 = vmatpush.xpose.msra.mxu0 0.0
    %1636 = vmatpush.xpose.msra.mxu0 0.0
    %1637 = vmatpush.xpose.msra.mxu0 0.0
    %1638 = vmatpush.xpose.msra.mxu0 0.0
    %1639 = vmatpush.xpose.msra.mxu0 0.0
    %1640 = vmatpush.xpose.msra.mxu0 0.0
    %1641 = vmatpush.xpose.msra.mxu0 0.0
    %1642 = vmatpush.xpose.msra.mxu0 0.0
    %1643 = vmatpush.xpose.msra.mxu0 0.0
    %1644 = vmatpush.xpose.msra.mxu0 0.0
    %1645 = vmatpush.xpose.msra.mxu0 0.0
    %1646 = vmatpush.xpose.msra.mxu0 %v1629
    %1647 = vmatmul.f32.gmra.mxu0 %v1627
    %v1648 = vpop.f32.mrf.mxu0
    %v1649 = vadd.f32 0.0, %v1648
    %1650 = vdwg.mxu0
    %v1651 = vsel %vm186, %v1649, -100000.0
    %v1652 = vsel %vm354, %v1651, -inf
    %1653 = vmax.xlane.f32.xlu0 %v1652
    %v1654 = vpop.xlane.xlu0 %1653
    %v1655 = vsub.f32 %v1651, %v1654
    %v1656 = vmul.f32 %v1655, 1.442695
    %v1657 = vpow.pop %v1656
    %v1658 = vsel %vm354, %v1657, 0.0
    %1659 = vadd.xlane.f32.xlu0 %v1658
    %v1660 = vpop.xlane.xlu0 %1659
    %v1661 = vrcp.pop %v1660
    %v1662 = vmul.f32 %v1657, %v1661
    %1663 = vrot.lane.b32.xlu0 %v1216, 96
    %v1664 = vpop.permute.xlu0 %1663
    %v1667 = vsel %vm354, %v1662, 0
    %1669 = vmatpush.msra.mxu0 0.0
    %1670 = vmatpush.msra.mxu0 0.0
    %1671 = vmatpush.msra.mxu0 0.0
    %1672 = vmatpush.msra.mxu0 0.0
    %1673 = vmatpush.msra.mxu0 0.0
    %1674 = vmatpush.msra.mxu0 0.0
    %1675 = vmatpush.msra.mxu0 0.0
    %1676 = vmatpush.msra.mxu0 0.0
    %1677 = vmatpush.msra.mxu0 0.0
    %1678 = vmatpush.msra.mxu0 0.0
    %1679 = vmatpush.msra.mxu0 0.0
    %1680 = vmatpush.msra.mxu0 0.0
    %1681 = vmatpush.msra.mxu0 0.0
    %1682 = vmatpush.msra.mxu0 0.0
    %1683 = vmatpush.msra.mxu0 0.0
    %1684 = vmatpush.msra.mxu0 %v1664
    %1685 = vmatmul.f32.gmra.mxu0 %v1667
    %v1686 = vpop.f32.mrf.mxu0
    %v1687 = vadd.f32 0.0, %v1686
    %1688 = vdwg.mxu0
    %1689 = vrot.lane.b32.xlu0 %v1193, 80
    %v1690 = vpop.permute.xlu0 %1689
    %1691 = vrot.lane.b32.xlu0 %v1193, 16
    %v1692 = vpop.permute.xlu0 %1691
    %v1693 = vsel %vm328, %v1690, 0
    %v1695 = vsel %vm328, %v1692, 0
    %1697 = vmatpush.xpose.msra.mxu0 0.0
    %1698 = vmatpush.xpose.msra.mxu0 0.0
    %1699 = vmatpush.xpose.msra.mxu0 0.0
    %1700 = vmatpush.xpose.msra.mxu0 0.0
    %1701 = vmatpush.xpose.msra.mxu0 0.0
    %1702 = vmatpush.xpose.msra.mxu0 0.0
    %1703 = vmatpush.xpose.msra.mxu0 0.0
    %1704 = vmatpush.xpose.msra.mxu0 0.0
    %1705 = vmatpush.xpose.msra.mxu0 0.0
    %1706 = vmatpush.xpose.msra.mxu0 0.0
    %1707 = vmatpush.xpose.msra.mxu0 0.0
    %1708 = vmatpush.xpose.msra.mxu0 0.0
    %1709 = vmatpush.xpose.msra.mxu0 0.0
    %1710 = vmatpush.xpose.msra.mxu0 0.0
    %1711 = vmatpush.xpose.msra.mxu0 0.0
    %1712 = vmatpush.xpose.msra.mxu0 %v1695
    %1713 = vmatmul.f32.gmra.mxu0 %v1693
    %v1714 = vpop.f32.mrf.mxu0
    %v1715 = vadd.f32 0.0, %v1714
    %1716 = vdwg.mxu0
    %v1717 = vsel %vm186, %v1715, -100000.0
    %v1718 = vsel %vm354, %v1717, -inf
    %1719 = vmax.xlane.f32.xlu0 %v1718
    %v1720 = vpop.xlane.xlu0 %1719
    %v1721 = vsub.f32 %v1717, %v1720
    %v1722 = vmul.f32 %v1721, 1.442695
    %v1723 = vpow.pop %v1722
    %v1724 = vsel %vm354, %v1723, 0.0
    %1725 = vadd.xlane.f32.xlu0 %v1724
    %v1726 = vpop.xlane.xlu0 %1725
    %v1727 = vrcp.pop %v1726
    %v1728 = vmul.f32 %v1723, %v1727
    %1729 = vrot.lane.b32.xlu0 %v1216, 80
    %v1730 = vpop.permute.xlu0 %1729
    %v1733 = vsel %vm354, %v1728, 0
    %1735 = vmatpush.msra.mxu0 0.0
    %1736 = vmatpush.msra.mxu0 0.0
    %1737 = vmatpush.msra.mxu0 0.0
    %1738 = vmatpush.msra.mxu0 0.0
    %1739 = vmatpush.msra.mxu0 0.0
    %1740 = vmatpush.msra.mxu0 0.0
    %1741 = vmatpush.msra.mxu0 0.0
    %1742 = vmatpush.msra.mxu0 0.0
    %1743 = vmatpush.msra.mxu0 0.0
    %1744 = vmatpush.msra.mxu0 0.0
    %1745 = vmatpush.msra.mxu0 0.0
    %1746 = vmatpush.msra.mxu0 0.0
    %1747 = vmatpush.msra.mxu0 0.0
    %1748 = vmatpush.msra.mxu0 0.0
    %1749 = vmatpush.msra.mxu0 0.0
    %1750 = vmatpush.msra.mxu0 %v1730
    %1751 = vmatmul.f32.gmra.mxu0 %v1733
    %v1752 = vpop.f32.mrf.mxu0
    %v1753 = vadd.f32 0.0, %v1752
    %1754 = vdwg.mxu0
    %1756 = vrot.lane.b32.xlu0 %v1621, 16
    %v1757 = vpop.permute.xlu0 %1756
    %1760 = vrot.lane.b32.xlu0 %v1687, 32
    %v1761 = vpop.permute.xlu0 %1760
    %1764 = vrot.lane.b32.xlu0 %v1753, 48
    %v1765 = vpop.permute.xlu0 %1764
    %v1767 = vsel %vm328, %v1554, %v1757
    %v1768 = vsel %vm601, %v1767, %v1761
    %v1769 = vsel %vm603, %v1768, %v1765
    %s1770 = scalar_lea.vmem %s5, 64
    %v1771 = vld [vmem:[%s1770] sm:$0xff]
    %v1772 = vld [vmem:[%s1770 + $0x8] sm:$0xff]
    %v1773 = vld [vmem:[%s1770 + $0x10] sm:$0xff]
    %v1774 = vld [vmem:[%s1770 + $0x18] sm:$0xff]
    %v1775 = vld [vmem:[%s1770 + $0x20] sm:$0xff]
    %v1776 = vld [vmem:[%s1770 + $0x28] sm:$0xff]
    %v1777 = vld [vmem:[%s1770 + $0x30] sm:$0xff]
    %v1778 = vld [vmem:[%s1770 + $0x38] sm:$0xff]
    %s1779 = scalar_lea.vmem %s6, 1
    %v1780 = vld [vmem:[%s1779] sm:$0x1]
    %v1782 = vperm.slane %v1780, 0
    %v1785 = vsel %vm189, %v1493, 0
    %v1788 = vsel %vm189, %v1769, 0
    %1790 = vmatpush.msra.mxu0 0.0
    %1791 = vmatpush.msra.mxu0 0.0
    %1792 = vmatpush.msra.mxu0 0.0
    %1793 = vmatpush.msra.mxu0 0.0
    %1794 = vmatpush.msra.mxu0 0.0
    %1795 = vmatpush.msra.mxu0 0.0
    %1796 = vmatpush.msra.mxu0 0.0
    %1797 = vmatpush.msra.mxu0 0.0
    %1798 = vmatpush.msra.mxu0 %v1778
    %1799 = vmatpush.msra.mxu0 %v1777
    %1800 = vmatpush.msra.mxu0 %v1776
    %1801 = vmatpush.msra.mxu0 %v1775
    %1802 = vmatpush.msra.mxu0 %v1774
    %1803 = vmatpush.msra.mxu0 %v1773
    %1804 = vmatpush.msra.mxu0 %v1772
    %1805 = vmatpush.msra.mxu0 %v1771
    %1806 = vmatmul.f32.gmra.mxu0 %v1785
    %v1807 = vpop.f32.mrf.mxu0
    %v1808 = vadd.f32 %v1782, %v1807
    %1809 = vmatmul.f32.gmra.mxu0 %v1788
    %v1810 = vpop.f32.mrf.mxu0
    %v1811 = vadd.f32 %v1782, %v1810
    %1812 = vdwg.mxu0
    %v1813 = vadd.f32 %v1082, %v1808
    %v1814 = vadd.f32 %v1083, %v1811
    %s1815 = scalar_lea.vmem [#allocation8], 1
    %v1816 = vld [vmem:[%s1815] sm:$0x1]
    %s1817 = scalar_lea.vmem [#allocation10], 1
    %v1818 = vld [vmem:[%s1817] sm:$0x1]
    %v1819 = vsel %vm189, %v1813, 0.0
    %1820 = vadd.xlane.f32.xlu0 %v1819
    %v1821 = vpop.xlane.xlu0 %1820
    %v1822 = vsel %vm189, %v1814, 0.0
    %1823 = vadd.xlane.f32.xlu0 %v1822
    %v1824 = vpop.xlane.xlu0 %1823
    %v1825 = vmul.f32 %v1821, %v202
    %v1826 = vmul.f32 %v1824, %v202
    %v1827 = vsub.f32 %v1813, %v1825
    %v1828 = vsub.f32 %v1814, %v1826
    %v1829 = vmul.f32 %v1827, %v1827
    %v1830 = vmul.f32 %v1828, %v1828
    %v1831 = vsel %vm189, %v1829, 0.0
    %1832 = vadd.xlane.f32.xlu0 %v1831
    %v1833 = vpop.xlane.xlu0 %1832
    %v1834 = vsel %vm189, %v1830, 0.0
    %1835 = vadd.xlane.f32.xlu0 %v1834
    %v1836 = vpop.xlane.xlu0 %1835
    %v1837 = vmul.f32 %v1833, %v202
    %v1838 = vmul.f32 %v1836, %v202
    %v1839 = vadd.f32 %v1837, 1e-05
    %v1840 = vadd.f32 %v1838, 1e-05
    %v1841 = vrsqrt.pop %v1839
    %v1842 = vmul.f32 %v1841, %v1839
    %v1843 = vmul.f32 %v1842, %v1841
    %v1844 = vmul.f32 0.5, %v1843
    %v1845 = vsub.f32 1.5, %v1844
    %v1846 = vmul.f32 %v1841, %v1845
    %vm1847 = vweird.f32 %v1839
    %vm1848 = vweird.f32 %v1841
    %vm1849 = vmor %vm1847, %vm1848
    %v1850 = vsel %vm1849, %v1841, %v1846
    %v1851 = vrsqrt.pop %v1840
    %v1852 = vmul.f32 %v1851, %v1840
    %v1853 = vmul.f32 %v1852, %v1851
    %v1854 = vmul.f32 0.5, %v1853
    %v1855 = vsub.f32 1.5, %v1854
    %v1856 = vmul.f32 %v1851, %v1855
    %vm1857 = vweird.f32 %v1840
    %vm1858 = vweird.f32 %v1851
    %vm1859 = vmor %vm1857, %vm1858
    %v1860 = vsel %vm1859, %v1851, %v1856
    %v1861 = vmul.f32 %v1827, %v1850
    %v1862 = vmul.f32 %v1828, %v1860
    %v1864 = vperm.slane %v1816, 0
    %v1866 = vmul.f32 %v1861, %v1864
    %v1867 = vmul.f32 %v1862, %v1864
    %v1869 = vperm.slane %v1818, 0
    %v1871 = vadd.f32 %v1866, %v1869
    %v1872 = vadd.f32 %v1867, %v1869
    %s1873 = scalar_lea.vmem [#allocation11], 64
    %v1874 = vld [vmem:[%s1873] sm:$0xff]
    %v1875 = vld [vmem:[%s1873 + $0x8] sm:$0xff]
    %v1876 = vld [vmem:[%s1873 + $0x10] sm:$0xff]
    %v1877 = vld [vmem:[%s1873 + $0x18] sm:$0xff]
    %v1878 = vld [vmem:[%s1873 + $0x20] sm:$0xff]
    %v1879 = vld [vmem:[%s1873 + $0x28] sm:$0xff]
    %v1880 = vld [vmem:[%s1873 + $0x30] sm:$0xff]
    %v1881 = vld [vmem:[%s1873 + $0x38] sm:$0xff]
    %s1882 = scalar_lea.vmem %s10, 1
    %v1883 = vld [vmem:[%s1882] sm:$0x1]
    %v1885 = vperm.slane %v1883, 0
    %v1888 = vsel %vm189, %v1871, 0
    %v1891 = vsel %vm189, %v1872, 0
    %1893 = vmatpush.msra.mxu0 0.0
    %1894 = vmatpush.msra.mxu0 0.0
    %1895 = vmatpush.msra.mxu0 0.0
    %1896 = vmatpush.msra.mxu0 0.0
    %1897 = vmatpush.msra.mxu0 0.0
    %1898 = vmatpush.msra.mxu0 0.0
    %1899 = vmatpush.msra.mxu0 0.0
    %1900 = vmatpush.msra.mxu0 0.0
    %1901 = vmatpush.msra.mxu0 %v1881
    %1902 = vmatpush.msra.mxu0 %v1880
    %1903 = vmatpush.msra.mxu0 %v1879
    %1904 = vmatpush.msra.mxu0 %v1878
    %1905 = vmatpush.msra.mxu0 %v1877
    %1906 = vmatpush.msra.mxu0 %v1876
    %1907 = vmatpush.msra.mxu0 %v1875
    %1908 = vmatpush.msra.mxu0 %v1874
    %1909 = vmatmul.f32.gmra.mxu0 %v1888
    %v1910 = vpop.f32.mrf.mxu0
    %v1911 = vadd.f32 %v1885, %v1910
    %1912 = vmatmul.f32.gmra.mxu0 %v1891
    %v1913 = vpop.f32.mrf.mxu0
    %v1914 = vadd.f32 %v1885, %v1913
    %1915 = vdwg.mxu0
    %v1916 = vmul.f32 %v1911, 0.5
    %v1917 = vmul.f32 %v1914, 0.5
    %v1918 = vmul.f32 %v1911, %v1911
    %v1919 = vmul.f32 %v1914, %v1914
    %v1920 = vmul.f32 %v1911, %v1918
    %v1921 = vmul.f32 %v1914, %v1919
    %v1922 = vmul.f32 %v1920, 0.044715
    %v1923 = vmul.f32 %v1921, 0.044715
    %v1924 = vadd.f32 %v1911, %v1922
    %v1925 = vadd.f32 %v1914, %v1923
    %v1926 = vmul.f32 %v1924, 0.7978846
    %v1927 = vmul.f32 %v1925, 0.7978846
    %v1928 = vtanh.pop %v1926
    %v1929 = vtanh.pop %v1927
    %v1930 = vadd.f32 %v1928, 1.0
    %v1931 = vadd.f32 %v1929, 1.0
    %v1932 = vmul.f32 %v1916, %v1930
    %v1933 = vmul.f32 %v1917, %v1931
    %s1934 = scalar_lea.vmem %s11, 128
    %v1935 = vld [vmem:[%s1934] sm:$0xff]
    %v1936 = vld [vmem:[%s1934 + $0x8] sm:$0xff]
    %v1937 = vld [vmem:[%s1934 + $0x10] sm:$0xff]
    %v1938 = vld [vmem:[%s1934 + $0x18] sm:$0xff]
    %v1939 = vld [vmem:[%s1934 + $0x20] sm:$0xff]
    %v1940 = vld [vmem:[%s1934 + $0x28] sm:$0xff]
    %v1941 = vld [vmem:[%s1934 + $0x30] sm:$0xff]
    %v1942 = vld [vmem:[%s1934 + $0x38] sm:$0xff]
    %v1943 = vld [vmem:[%s1934 + $0x40] sm:$0xff]
    %v1944 = vld [vmem:[%s1934 + $0x48] sm:$0xff]
    %v1945 = vld [vmem:[%s1934 + $0x50] sm:$0xff]
    %v1946 = vld [vmem:[%s1934 + $0x58] sm:$0xff]
    %v1947 = vld [vmem:[%s1934 + $0x60] sm:$0xff]
    %v1948 = vld [vmem:[%s1934 + $0x68] sm:$0xff]
    %v1949 = vld [vmem:[%s1934 + $0x70] sm:$0xff]
    %v1950 = vld [vmem:[%s1934 + $0x78] sm:$0xff]
    %s1951 = scalar_lea.vmem %s12, 1
    %v1952 = vld [vmem:[%s1951] sm:$0x1]
    %v1954 = vperm.slane %v1952, 0
    %1956 = vmatpush.msra.mxu0 %v1950
    %1957 = vmatpush.msra.mxu0 %v1949
    %1958 = vmatpush.msra.mxu0 %v1948
    %1959 = vmatpush.msra.mxu0 %v1947
    %1960 = vmatpush.msra.mxu0 %v1946
    %1961 = vmatpush.msra.mxu0 %v1945
    %1962 = vmatpush.msra.mxu0 %v1944
    %1963 = vmatpush.msra.mxu0 %v1943
    %1964 = vmatpush.msra.mxu0 %v1942
    %1965 = vmatpush.msra.mxu0 %v1941
    %1966 = vmatpush.msra.mxu0 %v1940
    %1967 = vmatpush.msra.mxu0 %v1939
    %1968 = vmatpush.msra.mxu0 %v1938
    %1969 = vmatpush.msra.mxu0 %v1937
    %1970 = vmatpush.msra.mxu0 %v1936
    %1971 = vmatpush.msra.mxu0 %v1935
    %1972 = vmatmul.f32.gmra.mxu0 %v1932
    %v1973 = vpop.f32.mrf.mxu0
    %v1974 = vadd.f32 %v1954, %v1973
    %1975 = vmatmul.f32.gmra.mxu0 %v1933
    %v1976 = vpop.f32.mrf.mxu0
    %v1977 = vadd.f32 %v1954, %v1976
    %1978 = vdwg.mxu0
    %v1979 = vadd.f32 %v1813, %v1974
    %v1980 = vadd.f32 %v1814, %v1977
    %v1981 = vld [vmem:[%s13] sm:$0x1]
    %v1982 = vld [vmem:[#allocation13] sm:$0x1]
    %v1983 = vsel %vm189, %v1979, 0.0
    %1984 = vadd.xlane.f32.xlu0 %v1983
    %v1985 = vpop.xlane.xlu0 %1984
    %v1986 = vsel %vm189, %v1980, 0.0
    %1987 = vadd.xlane.f32.xlu0 %v1986
    %v1988 = vpop.xlane.xlu0 %1987
    %v1989 = vmul.f32 %v1985, %v202
    %v1990 = vmul.f32 %v1988, %v202
    %v1991 = vsub.f32 %v1979, %v1989
    %v1992 = vsub.f32 %v1980, %v1990
    %v1993 = vmul.f32 %v1991, %v1991
    %v1994 = vmul.f32 %v1992, %v1992
    %v1995 = vsel %vm189, %v1993, 0.0
    %1996 = vadd.xlane.f32.xlu0 %v1995
    %v1997 = vpop.xlane.xlu0 %1996
    %v1998 = vsel %vm189, %v1994, 0.0
    %1999 = vadd.xlane.f32.xlu0 %v1998
    %v2000 = vpop.xlane.xlu0 %1999
    %v2001 = vmul.f32 %v1997, %v202
    %v2002 = vmul.f32 %v2000, %v202
    %v2003 = vadd.f32 %v2001, 1e-05
    %v2004 = vadd.f32 %v2002, 1e-05
    %v2005 = vrsqrt.pop %v2003
    %v2006 = vmul.f32 %v2005, %v2003
    %v2007 = vmul.f32 %v2006, %v2005
    %v2008 = vmul.f32 0.5, %v2007
    %v2009 = vsub.f32 1.5, %v2008
    %v2010 = vmul.f32 %v2005, %v2009
    %vm2011 = vweird.f32 %v2003
    %vm2012 = vweird.f32 %v2005
    %vm2013 = vmor %vm2011, %vm2012
    %v2014 = vsel %vm2013, %v2005, %v2010
    %v2015 = vrsqrt.pop %v2004
    %v2016 = vmul.f32 %v2015, %v2004
    %v2017 = vmul.f32 %v2016, %v2015
    %v2018 = vmul.f32 0.5, %v2017
    %v2019 = vsub.f32 1.5, %v2018
    %v2020 = vmul.f32 %v2015, %v2019
    %vm2021 = vweird.f32 %v2004
    %vm2022 = vweird.f32 %v2015
    %vm2023 = vmor %vm2021, %vm2022
    %v2024 = vsel %vm2023, %v2015, %v2020
    %v2025 = vmul.f32 %v1991, %v2014
    %v2026 = vmul.f32 %v1992, %v2024
    %v2028 = vperm.slane %v1981, 0
    %v2030 = vmul.f32 %v2025, %v2028
    %v2031 = vmul.f32 %v2026, %v2028
    %v2033 = vperm.slane %v1982, 0
    %v2035 = vadd.f32 %v2030, %v2033
    %v2036 = vadd.f32 %v2031, %v2033
    %v2037 = vld [vmem:[#allocation14] sm:$0xff]
    %v2038 = vld [vmem:[#allocation14 + $0x8] sm:$0xff]
    %v2039 = vld [vmem:[#allocation14 + $0x10] sm:$0xff]
    %v2040 = vld [vmem:[#allocation14 + $0x18] sm:$0xff]
    %v2041 = vld [vmem:[#allocation14 + $0x20] sm:$0xff]
    %v2042 = vld [vmem:[#allocation14 + $0x28] sm:$0xff]
    %v2043 = vld [vmem:[#allocation14 + $0x30] sm:$0xff]
    %v2044 = vld [vmem:[#allocation14 + $0x38] sm:$0xff]
    %v2045 = vld [vmem:[%s16] sm:$0x1]
    %v2047 = vperm.slane %v2045, 0
    %v2050 = vsel %vm189, %v2035, 0
    %v2053 = vsel %vm189, %v2036, 0
    %2055 = vmatpush.msra.mxu0 0.0
    %2056 = vmatpush.msra.mxu0 0.0
    %2057 = vmatpush.msra.mxu0 0.0
    %2058 = vmatpush.msra.mxu0 0.0
    %2059 = vmatpush.msra.mxu0 0.0
    %2060 = vmatpush.msra.mxu0 0.0
    %2061 = vmatpush.msra.mxu0 0.0
    %2062 = vmatpush.msra.mxu0 0.0
    %2063 = vmatpush.msra.mxu0 %v2044
    %2064 = vmatpush.msra.mxu0 %v2043
    %2065 = vmatpush.msra.mxu0 %v2042
    %2066 = vmatpush.msra.mxu0 %v2041
    %2067 = vmatpush.msra.mxu0 %v2040
    %2068 = vmatpush.msra.mxu0 %v2039
    %2069 = vmatpush.msra.mxu0 %v2038
    %2070 = vmatpush.msra.mxu0 %v2037
    %2071 = vmatmul.f32.gmra.mxu0 %v2050
    %v2072 = vpop.f32.mrf.mxu0
    %v2073 = vadd.f32 %v2047, %v2072
    %2074 = vmatmul.f32.gmra.mxu0 %v2053
    %v2075 = vpop.f32.mrf.mxu0
    %v2076 = vadd.f32 %v2047, %v2075
    %2077 = vdwg.mxu0
    %2078 = vst [vmem:[#allocation16] sm:$0xff] %v2073
    %2079 = vst [vmem:[#allocation16 + $0x8] sm:$0xff] %v2076
    // Predicated region
    $region102: #{tpu_custom_call.1} parent=1 // pred_check
      _
    $region103: #{tpu_custom_call.1} parent=1 // pred_check_branch
      %2081 = sbr.rel (0) target = $region105
    $region104: #{tpu_custom_call.1} parent=1 // pred_region
      %2083 = vsyncadd [#allocation4], 0
      %s2084 = sshll.u32 [#allocation16], 4
      %s2085 = int_to_ptr.vmem [resolvable:$true] %s2084
      %s2086 = sshll.u32 %s17, 4
      %s2087 = int_to_ptr.hbm [resolvable:$true] %s2086
      %2092 = dma.vmem_to_hbm [thread:$0]  %s2085, 256, %s2087, [#allocation4], 128, 128, 8
    $region105: #{tpu_custom_call.1} parent=1 // pred_fallthru
      _
    // Predicated region
    $region106: #{tpu_custom_call.1} parent=1 // pred_check
      _
    $region107: #{tpu_custom_call.1} parent=1 // pred_check_branch
      %2094 = sbr.rel (0) target = $region109
    $region108: #{tpu_custom_call.1} parent=1 // pred_region
      %2096 = dma.done [#allocation4], 256
    $region109: #{tpu_custom_call.1} parent=1 // pred_fallthru
      _
    %2097 = vsyncpa [#allocation3], 1
    %2098 = vsyncpa [#allocation6], 1
    %2099 = vsyncpa [#allocation9], 1
    %2100 = vsyncpa [#allocation12], 1
    %2101 = vsyncpa [#allocation15], 1
    %2102 = vsyncpa [#allocation4], 1

</llo_original>
